<compile_context>
chip_gen: v7x
topology: tpu7x:2x2x1
jax: 0.10.0
libtpu: 0.0.40
codegen_flags: <defaults>
</compile_context>

<pallas_src>
import jax
import jax.numpy as jnp
from jax import lax
from jax.experimental import pallas as pl
from jax.experimental.pallas import tpu as pltpu

# ----------------------------- config (small) -----------------------------
VOCAB = 128
B, S, H, NH, FFN, LAYERS = 2, 8, 32, 4, 64, 2
BS = B * S
DH = H // NH
OUT_PAD = 128          # lane-dense padded logits width (real logits live in [:, :2])
EPS = 1e-12
INIT_STD = 0.02
SQRT_2_OVER_PI = 0.7978845608028654
NEG_INF = -1e9


# ----------------------------- fused Pallas kernel -----------------------------
def _fused_qa_kernel(
    ids_ref,        # [BS, 1]   int32
    tt_ref,         # [BS, 1]   f32  token-type ids as float
    addmask_ref,    # [BS, BS]  f32  additive mask (block-diag batch + padding)
    word_emb_ref,   # [VOCAB, H]
    pos_ref,        # [BS, H]   position embeddings already tiled per batch row
    type_emb_ref,   # [2, H]
    emb_ln_g_ref,   # [1, H]
    emb_ln_b_ref,   # [1, H]
    w_q_ref,        # [L, H, H]
    b_q_ref,        # [L, 1, H]
    w_k_ref,        # [L, H, H]
    b_k_ref,        # [L, 1, H]
    w_v_ref,        # [L, H, H]
    b_v_ref,        # [L, 1, H]
    w_o_ref,        # [L, H, H]
    b_o_ref,        # [L, 1, H]
    ln1_g_ref,      # [L, 1, H]
    ln1_b_ref,      # [L, 1, H]
    w_ff1_ref,      # [L, H, FFN]
    b_ff1_ref,      # [L, 1, FFN]
    w_ff2_ref,      # [L, FFN, H]
    b_ff2_ref,      # [L, 1, H]
    ln2_g_ref,      # [L, 1, H]
    ln2_b_ref,      # [L, 1, H]
    qa_w_ref,       # [H, OUT_PAD]  (first 2 cols are the real qa_outputs weights)
    qa_b_ref,       # [1, OUT_PAD]
    logits_ref,     # out: [BS, OUT_PAD]  lane-dense store
):
    def layer_norm(x, g, b):
        mean = jnp.mean(x, axis=-1, keepdims=True)
        xc = x - mean
        var = jnp.mean(xc * xc, axis=-1, keepdims=True)
        return xc * lax.rsqrt(var + EPS) * g + b

    # ---- embeddings: word gather via one-hot matmul (MXU), + pos + type, LN ----
    # TODO(synk): at real vocab sizes the gather should be done outside the kernel.
    ids = ids_ref[...]                                                   # [BS, 1] i32
    vocab_iota = lax.broadcasted_iota(jnp.int32, (BS, VOCAB), 1)         # [BS, VOCAB]
    onehot = (vocab_iota == ids).astype(jnp.float32)
    word = jnp.dot(onehot, word_emb_ref[...],
                   preferred_element_type=jnp.float32)                   # [BS, H]

    # TODO(synk): linear blend assumes token_type_ids in {0,1} (type_vocab_size=2).
    tt = tt_ref[...]                                                     # [BS, 1]
    typ = type_emb_ref[0:1, :] * (1.0 - tt) + type_emb_ref[1:2, :] * tt  # [BS, H]

    h = layer_norm(word + pos_ref[...] + typ,
                   emb_ln_g_ref[...], emb_ln_b_ref[...])                 # [BS, H]

    add_mask = addmask_ref[...]                                          # [BS, BS] f32
    scale = 1.0 / (DH ** 0.5)

    # Head-selector masks over the H lanes (hoisted, reused by every layer).
    lane = lax.broadcasted_iota(jnp.int32, (1, H), 1)
    head_sel = [((lane >= hd * DH) & (lane < (hd + 1) * DH)).astype(jnp.float32)
                for hd in range(NH)]

    # ---- encoder layers: statically unrolled, static ref views of stacked weights ----
    for l in range(LAYERS):
        q = jnp.dot(h, w_q_ref[l], preferred_element_type=jnp.float32) + b_q_ref[l]
        k = jnp.dot(h, w_k_ref[l], preferred_element_type=jnp.float32) + b_k_ref[l]
        v = jnp.dot(h, w_v_ref[l], preferred_element_type=jnp.float32) + b_v_ref[l]

        # Multi-head attention with VPU head masks instead of 8-lane slices/concat:
        #   scores_h = (q * sel_h) @ k^T  (only head-h dims contribute)
        #   ctx     += softmax(scores_h) @ (v * sel_h)  (only head-h columns written)
        ctx = jnp.zeros((BS, H), jnp.float32)
        for hd in range(NH):
            sel = head_sel[hd]                                           # [1, H]
            s = jnp.einsum("qd,kd->qk", q * sel, k,
                           preferred_element_type=jnp.float32) * scale + add_mask
            m = jnp.max(s, axis=-1, keepdims=True)
            p = jnp.exp(s - m)
            denom = jnp.sum(p, axis=-1, keepdims=True)
            o = jnp.dot(p, v * sel, preferred_element_type=jnp.float32)  # [BS, H]
            # normalize the head output; approx reciprocal runs on the idle EUP slot
            ctx = ctx + o * pl.reciprocal(denom, approx=True)

        attn_out = jnp.dot(ctx, w_o_ref[l],
                           preferred_element_type=jnp.float32) + b_o_ref[l]
        h = layer_norm(h + attn_out, ln1_g_ref[l], ln1_b_ref[l])

        ff = jnp.dot(h, w_ff1_ref[l],
                     preferred_element_type=jnp.float32) + b_ff1_ref[l]  # [BS, FFN]
        # TODO(synk): HF BERT default is exact erf GELU; tanh approx (gelu_new) kept.
        ff = 0.5 * ff * (1.0 + jnp.tanh(
            SQRT_2_OVER_PI * (ff + 0.044715 * ff * ff * ff)))
        ff2 = jnp.dot(ff, w_ff2_ref[l],
                      preferred_element_type=jnp.float32) + b_ff2_ref[l]  # [BS, H]
        h = layer_norm(h + ff2, ln2_g_ref[l], ln2_b_ref[l])

    # ---- qa_outputs head, padded to 128 lanes -> unmasked full-lane store ----
    logits_ref[...] = (jnp.dot(h, qa_w_ref[...],
                               preferred_element_type=jnp.float32)
                       + qa_b_ref[...]).astype(logits_ref.dtype)


def _full_spec(shape):
    nd = len(shape)
    return pl.BlockSpec(shape, lambda i, _n=nd: (0,) * _n)


def fused_extractive_qa(params, ids_col, tt_col, add_mask, pos_tiled, qa_w_pad, qa_b_pad):
    """All inputs VMEM-resident, single program, lane-dense [BS, OUT_PAD] output."""
    args = [
        ids_col, tt_col, add_mask,
        params["word_emb"], pos_tiled, params["type_emb"],
        params["emb_ln_g"], params["emb_ln_b"],
        params["w_q"], params["b_q"], params["w_k"], params["b_k"],
        params["w_v"], params["b_v"],
        params["w_o"], params["b_o"], params["ln1_g"], params["ln1_b"],
        params["w_ff1"], params["b_ff1"], params["w_ff2"], params["b_ff2"],
        params["ln2_g"], params["ln2_b"],
        qa_w_pad, qa_b_pad,
    ]
    in_specs = [_full_spec(a.shape) for a in args]

    flops = (2 * BS * VOCAB * H
             + LAYERS * (4 * 2 * BS * H * H              # q,k,v,o projections
                         + NH * 2 * (2 * BS * H * BS)    # masked scores + pv matmuls
                         + 2 * (2 * BS * H * FFN))       # ffn
             + 2 * BS * H * OUT_PAD)
    transcendentals = LAYERS * (NH * BS * BS + BS * FFN) + 8 * BS
    bytes_accessed = int(sum(a.size * a.dtype.itemsize for a in args)
                         + BS * OUT_PAD * 4)

    return pl.pallas_call(
        _fused_qa_kernel,
        out_shape=jax.ShapeDtypeStruct((BS, OUT_PAD), jnp.float32),
        grid=(1,),
        in_specs=in_specs,
        out_specs=pl.BlockSpec((BS, OUT_PAD), lambda i: (0, 0)),
        compiler_params=pltpu.CompilerParams(
            dimension_semantics=("arbitrary",),
            vmem_limit_bytes=64 * 1024 * 1024,
        ),
        cost_estimate=pl.CostEstimate(
            flops=int(flops),
            transcendentals=int(transcendentals),
            bytes_accessed=bytes_accessed,
        ),
    )(*args)


# ----------------------------- parameter init -----------------------------
def init_params(key):
    def nrm(k, shape):
        return (INIT_STD * jax.random.normal(k, shape)).astype(jnp.float32)

    keys = iter(jax.random.split(key, 16))
    return {
        "word_emb": nrm(next(keys), (VOCAB, H)),
        "pos_emb": nrm(next(keys), (S, H)),
        "type_emb": nrm(next(keys), (2, H)),
        "emb_ln_g": jnp.ones((1, H), jnp.float32),
        "emb_ln_b": jnp.zeros((1, H), jnp.float32),
        # stacked per-layer weights [LAYERS, ...]; q/k/v kept separate so the kernel
        # never has to lane-slice a fused qkv slab.
        "w_q": nrm(next(keys), (LAYERS, H, H)),
        "b_q": jnp.zeros((LAYERS, 1, H), jnp.float32),
        "w_k": nrm(next(keys), (LAYERS, H, H)),
        "b_k": jnp.zeros((LAYERS, 1, H), jnp.float32),
        "w_v": nrm(next(keys), (LAYERS, H, H)),
        "b_v": jnp.zeros((LAYERS, 1, H), jnp.float32),
        "w_o": nrm(next(keys), (LAYERS, H, H)),
        "b_o": jnp.zeros((LAYERS, 1, H), jnp.float32),
        "ln1_g": jnp.ones((LAYERS, 1, H), jnp.float32),
        "ln1_b": jnp.zeros((LAYERS, 1, H), jnp.float32),
        "w_ff1": nrm(next(keys), (LAYERS, H, FFN)),
        "b_ff1": jnp.zeros((LAYERS, 1, FFN), jnp.float32),
        "w_ff2": nrm(next(keys), (LAYERS, FFN, H)),
        "b_ff2": jnp.zeros((LAYERS, 1, H), jnp.float32),
        "ln2_g": jnp.ones((LAYERS, 1, H), jnp.float32),
        "ln2_b": jnp.zeros((LAYERS, 1, H), jnp.float32),
        "qa_w": nrm(next(keys), (H, 2)),
        "qa_b": jnp.zeros((1, 2), jnp.float32),
    }


# ----------------------------- forward pass -----------------------------
@jax.jit
def extractive_qa_forward(params, input_ids, token_type_ids, attention_mask):
    ids_col = input_ids.reshape(BS, 1).astype(jnp.int32)
    tt_col = token_type_ids.reshape(BS, 1).astype(jnp.float32)

    # Block-diagonal additive mask: rows may only attend within their own batch
    # element and only to unmasked (attention_mask == 1) key positions.
    batch_ids = jnp.arange(BS, dtype=jnp.int32) // S
    same_batch = batch_ids[:, None] == batch_ids[None, :]
    keep = same_batch & (attention_mask.reshape(BS)[None, :] > 0)
    add_mask = jnp.where(keep, 0.0, NEG_INF).astype(jnp.float32)          # [BS, BS]

    # Position embeddings tiled to every batch row (tiny, done once in XLA).
    pos_tiled = jnp.tile(params["pos_emb"], (B, 1))                        # [BS, H]

    # Pad the qa head to a 128-lane-wide output so the kernel's final store is
    # a full, unmasked lane-dense vst; real logits live in columns [:2].
    qa_w_pad = jnp.zeros((H, OUT_PAD), jnp.float32).at[:, :2].set(params["qa_w"])
    qa_b_pad = jnp.zeros((1, OUT_PAD), jnp.float32).at[:, :2].set(params["qa_b"])

    logits_pad = fused_extractive_qa(
        params, ids_col, tt_col, add_mask, pos_tiled, qa_w_pad, qa_b_pad)  # [BS, 128]
    logits = logits_pad[:, :2].reshape(B, S, 2)
    return {"start_logits": logits[:, :, 0], "end_logits": logits[:, :, 1]}


# ----------------------------- main -----------------------------
if __name__ == "__main__":
    key = jax.random.PRNGKey(0)
    k_params, k_ids = jax.random.split(key)
    params = init_params(k_params)

    input_ids = jax.random.randint(k_ids, (B, S), 0, VOCAB, dtype=jnp.int32)
    token_type_ids = jnp.zeros((B, S), jnp.int32)
    attention_mask = jnp.ones((B, S), jnp.int32)

    out = extractive_qa_forward(params, input_ids, token_type_ids, attention_mask)
    jax.block_until_ready(out)

    assert out["start_logits"].shape == (B, S)
    assert out["end_logits"].shape == (B, S)
    assert bool(jnp.all(jnp.isfinite(out["start_logits"])))
    assert bool(jnp.all(jnp.isfinite(out["end_logits"])))
    print("KERNEL_OK")
</pallas_src>

<mosaic_0001>
module attributes {stable_mosaic.version = 11 : i64} {
  func.func @_fused_qa_kernel(%arg0: i32, %arg1: memref<16x1xi32, #tpu.memory_space<vmem>>, %arg2: memref<16x1xf32, #tpu.memory_space<vmem>>, %arg3: memref<16x16xf32, #tpu.memory_space<vmem>>, %arg4: memref<128x32xf32, #tpu.memory_space<vmem>>, %arg5: memref<16x32xf32, #tpu.memory_space<vmem>>, %arg6: memref<2x32xf32, #tpu.memory_space<vmem>>, %arg7: memref<1x32xf32, #tpu.memory_space<vmem>>, %arg8: memref<1x32xf32, #tpu.memory_space<vmem>>, %arg9: memref<2x32x32xf32, #tpu.memory_space<vmem>>, %arg10: memref<2x1x32xf32, #tpu.memory_space<vmem>>, %arg11: memref<2x32x32xf32, #tpu.memory_space<vmem>>, %arg12: memref<2x1x32xf32, #tpu.memory_space<vmem>>, %arg13: memref<2x32x32xf32, #tpu.memory_space<vmem>>, %arg14: memref<2x1x32xf32, #tpu.memory_space<vmem>>, %arg15: memref<2x32x32xf32, #tpu.memory_space<vmem>>, %arg16: memref<2x1x32xf32, #tpu.memory_space<vmem>>, %arg17: memref<2x1x32xf32, #tpu.memory_space<vmem>>, %arg18: memref<2x1x32xf32, #tpu.memory_space<vmem>>, %arg19: memref<2x32x64xf32, #tpu.memory_space<vmem>>, %arg20: memref<2x1x64xf32, #tpu.memory_space<vmem>>, %arg21: memref<2x64x32xf32, #tpu.memory_space<vmem>>, %arg22: memref<2x1x32xf32, #tpu.memory_space<vmem>>, %arg23: memref<2x1x32xf32, #tpu.memory_space<vmem>>, %arg24: memref<2x1x32xf32, #tpu.memory_space<vmem>>, %arg25: memref<32x128xf32, #tpu.memory_space<vmem>>, %arg26: memref<1x128xf32, #tpu.memory_space<vmem>>, %arg27: memref<16x128xf32, #tpu.memory_space<vmem>>) attributes {dimension_semantics = [#tpu.dimension_semantics<arbitrary>], iteration_bounds = array<i64: 1>, scalar_prefetch = 0 : i64, scratch_operands = 0 : i64, tpu.core_type = #tpu.core_type<tc>, window_params = [{pipeline_mode = #tpu.pipeline_mode<synchronous>, transform_indices = @transform_0, window_bounds = array<i64: 16, 1>}, {pipeline_mode = #tpu.pipeline_mode<synchronous>, transform_indices = @transform_1, window_bounds = array<i64: 16, 1>}, {pipeline_mode = #tpu.pipeline_mode<synchronous>, transform_indices = @transform_2, window_bounds = array<i64: 16, 16>}, {pipeline_mode = #tpu.pipeline_mode<synchronous>, transform_indices = @transform_3, window_bounds = array<i64: 128, 32>}, {pipeline_mode = #tpu.pipeline_mode<synchronous>, transform_indices = @transform_4, window_bounds = array<i64: 16, 32>}, {pipeline_mode = #tpu.pipeline_mode<synchronous>, transform_indices = @transform_5, window_bounds = array<i64: 2, 32>}, {pipeline_mode = #tpu.pipeline_mode<synchronous>, transform_indices = @transform_6, window_bounds = array<i64: 1, 32>}, {pipeline_mode = #tpu.pipeline_mode<synchronous>, transform_indices = @transform_7, window_bounds = array<i64: 1, 32>}, {pipeline_mode = #tpu.pipeline_mode<synchronous>, transform_indices = @transform_8, window_bounds = array<i64: 2, 32, 32>}, {pipeline_mode = #tpu.pipeline_mode<synchronous>, transform_indices = @transform_9, window_bounds = array<i64: 2, 1, 32>}, {pipeline_mode = #tpu.pipeline_mode<synchronous>, transform_indices = @transform_10, window_bounds = array<i64: 2, 32, 32>}, {pipeline_mode = #tpu.pipeline_mode<synchronous>, transform_indices = @transform_11, window_bounds = array<i64: 2, 1, 32>}, {pipeline_mode = #tpu.pipeline_mode<synchronous>, transform_indices = @transform_12, window_bounds = array<i64: 2, 32, 32>}, {pipeline_mode = #tpu.pipeline_mode<synchronous>, transform_indices = @transform_13, window_bounds = array<i64: 2, 1, 32>}, {pipeline_mode = #tpu.pipeline_mode<synchronous>, transform_indices = @transform_14, window_bounds = array<i64: 2, 32, 32>}, {pipeline_mode = #tpu.pipeline_mode<synchronous>, transform_indices = @transform_15, window_bounds = array<i64: 2, 1, 32>}, {pipeline_mode = #tpu.pipeline_mode<synchronous>, transform_indices = @transform_16, window_bounds = array<i64: 2, 1, 32>}, {pipeline_mode = #tpu.pipeline_mode<synchronous>, transform_indices = @transform_17, window_bounds = array<i64: 2, 1, 32>}, {pipeline_mode = #tpu.pipeline_mode<synchronous>, transform_indices = @transform_18, window_bounds = array<i64: 2, 32, 64>}, {pipeline_mode = #tpu.pipeline_mode<synchronous>, transform_indices = @transform_19, window_bounds = array<i64: 2, 1, 64>}, {pipeline_mode = #tpu.pipeline_mode<synchronous>, transform_indices = @transform_20, window_bounds = array<i64: 2, 64, 32>}, {pipeline_mode = #tpu.pipeline_mode<synchronous>, transform_indices = @transform_21, window_bounds = array<i64: 2, 1, 32>}, {pipeline_mode = #tpu.pipeline_mode<synchronous>, transform_indices = @transform_22, window_bounds = array<i64: 2, 1, 32>}, {pipeline_mode = #tpu.pipeline_mode<synchronous>, transform_indices = @transform_23, window_bounds = array<i64: 2, 1, 32>}, {pipeline_mode = #tpu.pipeline_mode<synchronous>, transform_indices = @transform_24, window_bounds = array<i64: 32, 128>}, {pipeline_mode = #tpu.pipeline_mode<synchronous>, transform_indices = @transform_25, window_bounds = array<i64: 1, 128>}, {pipeline_mode = #tpu.pipeline_mode<synchronous>, transform_indices = @transform_26, window_bounds = array<i64: 16, 128>}]} {
    %c0 = arith.constant 0 : index
    %c0_0 = arith.constant 0 : index
    %0 = vector.load %arg1[%c0, %c0_0] : memref<16x1xi32, #tpu.memory_space<vmem>>, vector<16x1xi32>
    %1 = tpu.iota {dimensions = array<i32: 1>} : vector<16x128xi32>
    %2 = vector.broadcast %0 : vector<16x1xi32> to vector<16x128xi32>
    %3 = arith.cmpi eq, %1, %2 : vector<16x128xi32>
    %4 = arith.extui %3 : vector<16x128xi1> to vector<16x128xi32>
    %5 = arith.sitofp %4 : vector<16x128xi32> to vector<16x128xf32>
    %c0_1 = arith.constant 0 : index
    %c0_2 = arith.constant 0 : index
    %6 = vector.load %arg4[%c0_1, %c0_2] : memref<128x32xf32, #tpu.memory_space<vmem>>, vector<128x32xf32>
    %cst = arith.constant dense<0.000000e+00> : vector<16x32xf32>
    %7 = tpu.matmul %5, %6, %cst {dimension_numbers = #tpu.dot_dimension_numbers<[1], [0], [0], [1], [0, 0, 1, 1], [], []>} : vector<16x128xf32>, vector<128x32xf32>, vector<16x32xf32> -> vector<16x32xf32>
    %c0_3 = arith.constant 0 : index
    %c0_4 = arith.constant 0 : index
    %8 = vector.load %arg2[%c0_3, %c0_4] : memref<16x1xf32, #tpu.memory_space<vmem>>, vector<16x1xf32>
    %c0_5 = arith.constant 0 : index
    %c0_6 = arith.constant 0 : index
    %9 = vector.load %arg6[%c0_5, %c0_6] : memref<2x32xf32, #tpu.memory_space<vmem>>, vector<1x32xf32>
    %cst_7 = arith.constant 1.000000e+00 : f32
    %10 = vector.broadcast %cst_7 : f32 to vector<16x1xf32>
    %11 = arith.subf %10, %8 : vector<16x1xf32>
    %12 = vector.broadcast %9 : vector<1x32xf32> to vector<16x32xf32>
    %13 = vector.broadcast %11 : vector<16x1xf32> to vector<16x32xf32>
    %14 = arith.mulf %12, %13 : vector<16x32xf32>
    %c1 = arith.constant 1 : index
    %c0_8 = arith.constant 0 : index
    %15 = vector.load %arg6[%c1, %c0_8] : memref<2x32xf32, #tpu.memory_space<vmem>>, vector<1x32xf32>
    %16 = vector.broadcast %15 : vector<1x32xf32> to vector<16x32xf32>
    %17 = vector.broadcast %8 : vector<16x1xf32> to vector<16x32xf32>
    %18 = arith.mulf %16, %17 : vector<16x32xf32>
    %19 = arith.addf %14, %18 : vector<16x32xf32>
    %c0_9 = arith.constant 0 : index
    %c0_10 = arith.constant 0 : index
    %20 = vector.load %arg5[%c0_9, %c0_10] : memref<16x32xf32, #tpu.memory_space<vmem>>, vector<16x32xf32>
    %21 = arith.addf %7, %20 : vector<16x32xf32>
    %22 = arith.addf %21, %19 : vector<16x32xf32>
    %c0_11 = arith.constant 0 : index
    %c0_12 = arith.constant 0 : index
    %23 = vector.load %arg7[%c0_11, %c0_12] : memref<1x32xf32, #tpu.memory_space<vmem>>, vector<1x32xf32>
    %c0_13 = arith.constant 0 : index
    %c0_14 = arith.constant 0 : index
    %24 = vector.load %arg8[%c0_13, %c0_14] : memref<1x32xf32, #tpu.memory_space<vmem>>, vector<1x32xf32>
    %cst_15 = arith.constant dense<0.000000e+00> : vector<16xf32>
    %25 = vector.multi_reduction <add>, %22, %cst_15 [1] : vector<16x32xf32> to vector<16xf32>
    %26 = vector.shape_cast %25 : vector<16xf32> to vector<16x1xf32>
    %cst_16 = arith.constant 3.200000e+01 : f32
    %27 = vector.broadcast %cst_16 : f32 to vector<16x1xf32>
    %28 = arith.divf %26, %27 : vector<16x1xf32>
    %29 = vector.broadcast %28 : vector<16x1xf32> to vector<16x32xf32>
    %30 = arith.subf %22, %29 : vector<16x32xf32>
    %31 = arith.mulf %30, %30 : vector<16x32xf32>
    %cst_17 = arith.constant dense<0.000000e+00> : vector<16xf32>
    %32 = vector.multi_reduction <add>, %31, %cst_17 [1] : vector<16x32xf32> to vector<16xf32>
    %33 = vector.shape_cast %32 : vector<16xf32> to vector<16x1xf32>
    %cst_18 = arith.constant 3.200000e+01 : f32
    %34 = vector.broadcast %cst_18 : f32 to vector<16x1xf32>
    %35 = arith.divf %33, %34 : vector<16x1xf32>
    %cst_19 = arith.constant 9.99999996E-13 : f32
    %36 = vector.broadcast %cst_19 : f32 to vector<16x1xf32>
    %37 = arith.addf %35, %36 : vector<16x1xf32>
    %38 = math.rsqrt %37 : vector<16x1xf32>
    %39 = vector.broadcast %38 : vector<16x1xf32> to vector<16x32xf32>
    %40 = arith.mulf %30, %39 : vector<16x32xf32>
    %41 = vector.broadcast %23 : vector<1x32xf32> to vector<16x32xf32>
    %42 = arith.mulf %40, %41 : vector<16x32xf32>
    %43 = vector.broadcast %24 : vector<1x32xf32> to vector<16x32xf32>
    %44 = arith.addf %42, %43 : vector<16x32xf32>
    %c0_20 = arith.constant 0 : index
    %c0_21 = arith.constant 0 : index
    %45 = vector.load %arg3[%c0_20, %c0_21] : memref<16x16xf32, #tpu.memory_space<vmem>>, vector<16x16xf32>
    %46 = tpu.iota {dimensions = array<i32: 1>} : vector<1x32xi32>
    %c0_i32 = arith.constant 0 : i32
    %47 = vector.broadcast %c0_i32 : i32 to vector<1x32xi32>
    %48 = arith.cmpi sge, %46, %47 : vector<1x32xi32>
    %c8_i32 = arith.constant 8 : i32
    %49 = vector.broadcast %c8_i32 : i32 to vector<1x32xi32>
    %50 = arith.cmpi slt, %46, %49 : vector<1x32xi32>
    %51 = arith.andi %48, %50 : vector<1x32xi1>
    %52 = arith.extui %51 : vector<1x32xi1> to vector<1x32xi32>
    %53 = arith.sitofp %52 : vector<1x32xi32> to vector<1x32xf32>
    %c8_i32_22 = arith.constant 8 : i32
    %54 = vector.broadcast %c8_i32_22 : i32 to vector<1x32xi32>
    %55 = arith.cmpi sge, %46, %54 : vector<1x32xi32>
    %c16_i32 = arith.constant 16 : i32
    %56 = vector.broadcast %c16_i32 : i32 to vector<1x32xi32>
    %57 = arith.cmpi slt, %46, %56 : vector<1x32xi32>
    %58 = arith.andi %55, %57 : vector<1x32xi1>
    %59 = arith.extui %58 : vector<1x32xi1> to vector<1x32xi32>
    %60 = arith.sitofp %59 : vector<1x32xi32> to vector<1x32xf32>
    %c16_i32_23 = arith.constant 16 : i32
    %61 = vector.broadcast %c16_i32_23 : i32 to vector<1x32xi32>
    %62 = arith.cmpi sge, %46, %61 : vector<1x32xi32>
    %c24_i32 = arith.constant 24 : i32
    %63 = vector.broadcast %c24_i32 : i32 to vector<1x32xi32>
    %64 = arith.cmpi slt, %46, %63 : vector<1x32xi32>
    %65 = arith.andi %62, %64 : vector<1x32xi1>
    %66 = arith.extui %65 : vector<1x32xi1> to vector<1x32xi32>
    %67 = arith.sitofp %66 : vector<1x32xi32> to vector<1x32xf32>
    %c24_i32_24 = arith.constant 24 : i32
    %68 = vector.broadcast %c24_i32_24 : i32 to vector<1x32xi32>
    %69 = arith.cmpi sge, %46, %68 : vector<1x32xi32>
    %c32_i32 = arith.constant 32 : i32
    %70 = vector.broadcast %c32_i32 : i32 to vector<1x32xi32>
    %71 = arith.cmpi slt, %46, %70 : vector<1x32xi32>
    %72 = arith.andi %69, %71 : vector<1x32xi1>
    %73 = arith.extui %72 : vector<1x32xi1> to vector<1x32xi32>
    %74 = arith.sitofp %73 : vector<1x32xi32> to vector<1x32xf32>
    %c0_25 = arith.constant 0 : index
    %c0_26 = arith.constant 0 : index
    %c0_27 = arith.constant 0 : index
    %75 = vector.load %arg9[%c0_25, %c0_26, %c0_27] : memref<2x32x32xf32, #tpu.memory_space<vmem>>, vector<1x32x32xf32>
    %76 = vector.shape_cast %75 : vector<1x32x32xf32> to vector<32x32xf32>
    %cst_28 = arith.constant dense<0.000000e+00> : vector<16x32xf32>
    %77 = tpu.matmul %44, %76, %cst_28 {dimension_numbers = #tpu.dot_dimension_numbers<[1], [0], [0], [1], [0, 0, 1, 1], [], []>} : vector<16x32xf32>, vector<32x32xf32>, vector<16x32xf32> -> vector<16x32xf32>
    %c0_29 = arith.constant 0 : index
    %c0_30 = arith.constant 0 : index
    %c0_31 = arith.constant 0 : index
    %78 = vector.load %arg10[%c0_29, %c0_30, %c0_31] : memref<2x1x32xf32, #tpu.memory_space<vmem>>, vector<1x1x32xf32>
    %79 = vector.shape_cast %78 : vector<1x1x32xf32> to vector<1x32xf32>
    %80 = vector.broadcast %79 : vector<1x32xf32> to vector<16x32xf32>
    %81 = arith.addf %77, %80 : vector<16x32xf32>
    %c0_32 = arith.constant 0 : index
    %c0_33 = arith.constant 0 : index
    %c0_34 = arith.constant 0 : index
    %82 = vector.load %arg11[%c0_32, %c0_33, %c0_34] : memref<2x32x32xf32, #tpu.memory_space<vmem>>, vector<1x32x32xf32>
    %83 = vector.shape_cast %82 : vector<1x32x32xf32> to vector<32x32xf32>
    %cst_35 = arith.constant dense<0.000000e+00> : vector<16x32xf32>
    %84 = tpu.matmul %44, %83, %cst_35 {dimension_numbers = #tpu.dot_dimension_numbers<[1], [0], [0], [1], [0, 0, 1, 1], [], []>} : vector<16x32xf32>, vector<32x32xf32>, vector<16x32xf32> -> vector<16x32xf32>
    %c0_36 = arith.constant 0 : index
    %c0_37 = arith.constant 0 : index
    %c0_38 = arith.constant 0 : index
    %85 = vector.load %arg12[%c0_36, %c0_37, %c0_38] : memref<2x1x32xf32, #tpu.memory_space<vmem>>, vector<1x1x32xf32>
    %86 = vector.shape_cast %85 : vector<1x1x32xf32> to vector<1x32xf32>
    %87 = vector.broadcast %86 : vector<1x32xf32> to vector<16x32xf32>
    %88 = arith.addf %84, %87 : vector<16x32xf32>
    %c0_39 = arith.constant 0 : index
    %c0_40 = arith.constant 0 : index
    %c0_41 = arith.constant 0 : index
    %89 = vector.load %arg13[%c0_39, %c0_40, %c0_41] : memref<2x32x32xf32, #tpu.memory_space<vmem>>, vector<1x32x32xf32>
    %90 = vector.shape_cast %89 : vector<1x32x32xf32> to vector<32x32xf32>
    %cst_42 = arith.constant dense<0.000000e+00> : vector<16x32xf32>
    %91 = tpu.matmul %44, %90, %cst_42 {dimension_numbers = #tpu.dot_dimension_numbers<[1], [0], [0], [1], [0, 0, 1, 1], [], []>} : vector<16x32xf32>, vector<32x32xf32>, vector<16x32xf32> -> vector<16x32xf32>
    %c0_43 = arith.constant 0 : index
    %c0_44 = arith.constant 0 : index
    %c0_45 = arith.constant 0 : index
    %92 = vector.load %arg14[%c0_43, %c0_44, %c0_45] : memref<2x1x32xf32, #tpu.memory_space<vmem>>, vector<1x1x32xf32>
    %93 = vector.shape_cast %92 : vector<1x1x32xf32> to vector<1x32xf32>
    %94 = vector.broadcast %93 : vector<1x32xf32> to vector<16x32xf32>
    %95 = arith.addf %91, %94 : vector<16x32xf32>
    %cst_46 = arith.constant 0.000000e+00 : f32
    %96 = vector.broadcast %cst_46 : f32 to vector<16x32xf32>
    %97 = vector.broadcast %53 : vector<1x32xf32> to vector<16x32xf32>
    %98 = arith.mulf %81, %97 : vector<16x32xf32>
    "tpu.trace_start"() <{level = 10 : i32, message = "qd,kd->qk"}> : () -> ()
    %cst_47 = arith.constant dense<0.000000e+00> : vector<16x16xf32>
    %99 = tpu.matmul %98, %88, %cst_47 {dimension_numbers = #tpu.dot_dimension_numbers<[1], [1], [0], [0], [0, 0, 1, 0], [], []>} : vector<16x32xf32>, vector<16x32xf32>, vector<16x16xf32> -> vector<16x16xf32>
    "tpu.trace_stop"() : () -> ()
    %cst_48 = arith.constant 0.353553385 : f32
    %100 = vector.broadcast %cst_48 : f32 to vector<16x16xf32>
    %101 = arith.mulf %99, %100 : vector<16x16xf32>
    %102 = arith.addf %101, %45 : vector<16x16xf32>
    %cst_49 = arith.constant dense<0xFF800000> : vector<16xf32>
    %103 = vector.multi_reduction <maximumf>, %102, %cst_49 [1] : vector<16x16xf32> to vector<16xf32>
    %104 = vector.shape_cast %103 : vector<16xf32> to vector<16x1xf32>
    %105 = vector.broadcast %104 : vector<16x1xf32> to vector<16x16xf32>
    %106 = arith.subf %102, %105 : vector<16x16xf32>
    %107 = math.exp %106 : vector<16x16xf32>
    %cst_50 = arith.constant dense<0.000000e+00> : vector<16xf32>
    %108 = vector.multi_reduction <add>, %107, %cst_50 [1] : vector<16x16xf32> to vector<16xf32>
    %109 = vector.shape_cast %108 : vector<16xf32> to vector<16x1xf32>
    %110 = vector.broadcast %53 : vector<1x32xf32> to vector<16x32xf32>
    %111 = arith.mulf %95, %110 : vector<16x32xf32>
    %cst_51 = arith.constant dense<0.000000e+00> : vector<16x32xf32>
    %112 = tpu.matmul %107, %111, %cst_51 {dimension_numbers = #tpu.dot_dimension_numbers<[1], [0], [0], [1], [0, 0, 1, 1], [], []>} : vector<16x16xf32>, vector<16x32xf32>, vector<16x32xf32> -> vector<16x32xf32>
    %113 = tpu.reciprocal %109 {approx = true} : vector<16x1xf32> -> vector<16x1xf32>
    %114 = vector.broadcast %113 : vector<16x1xf32> to vector<16x32xf32>
    %115 = arith.mulf %112, %114 : vector<16x32xf32>
    %116 = arith.addf %96, %115 : vector<16x32xf32>
    %117 = vector.broadcast %60 : vector<1x32xf32> to vector<16x32xf32>
    %118 = arith.mulf %81, %117 : vector<16x32xf32>
    "tpu.trace_start"() <{level = 10 : i32, message = "qd,kd->qk"}> : () -> ()
    %cst_52 = arith.constant dense<0.000000e+00> : vector<16x16xf32>
    %119 = tpu.matmul %118, %88, %cst_52 {dimension_numbers = #tpu.dot_dimension_numbers<[1], [1], [0], [0], [0, 0, 1, 0], [], []>} : vector<16x32xf32>, vector<16x32xf32>, vector<16x16xf32> -> vector<16x16xf32>
    "tpu.trace_stop"() : () -> ()
    %cst_53 = arith.constant 0.353553385 : f32
    %120 = vector.broadcast %cst_53 : f32 to vector<16x16xf32>
    %121 = arith.mulf %119, %120 : vector<16x16xf32>
    %122 = arith.addf %121, %45 : vector<16x16xf32>
    %cst_54 = arith.constant dense<0xFF800000> : vector<16xf32>
    %123 = vector.multi_reduction <maximumf>, %122, %cst_54 [1] : vector<16x16xf32> to vector<16xf32>
    %124 = vector.shape_cast %123 : vector<16xf32> to vector<16x1xf32>
    %125 = vector.broadcast %124 : vector<16x1xf32> to vector<16x16xf32>
    %126 = arith.subf %122, %125 : vector<16x16xf32>
    %127 = math.exp %126 : vector<16x16xf32>
    %cst_55 = arith.constant dense<0.000000e+00> : vector<16xf32>
    %128 = vector.multi_reduction <add>, %127, %cst_55 [1] : vector<16x16xf32> to vector<16xf32>
    %129 = vector.shape_cast %128 : vector<16xf32> to vector<16x1xf32>
    %130 = vector.broadcast %60 : vector<1x32xf32> to vector<16x32xf32>
    %131 = arith.mulf %95, %130 : vector<16x32xf32>
    %cst_56 = arith.constant dense<0.000000e+00> : vector<16x32xf32>
    %132 = tpu.matmul %127, %131, %cst_56 {dimension_numbers = #tpu.dot_dimension_numbers<[1], [0], [0], [1], [0, 0, 1, 1], [], []>} : vector<16x16xf32>, vector<16x32xf32>, vector<16x32xf32> -> vector<16x32xf32>
    %133 = tpu.reciprocal %129 {approx = true} : vector<16x1xf32> -> vector<16x1xf32>
    %134 = vector.broadcast %133 : vector<16x1xf32> to vector<16x32xf32>
    %135 = arith.mulf %132, %134 : vector<16x32xf32>
    %136 = arith.addf %116, %135 : vector<16x32xf32>
    %137 = vector.broadcast %67 : vector<1x32xf32> to vector<16x32xf32>
    %138 = arith.mulf %81, %137 : vector<16x32xf32>
    "tpu.trace_start"() <{level = 10 : i32, message = "qd,kd->qk"}> : () -> ()
    %cst_57 = arith.constant dense<0.000000e+00> : vector<16x16xf32>
    %139 = tpu.matmul %138, %88, %cst_57 {dimension_numbers = #tpu.dot_dimension_numbers<[1], [1], [0], [0], [0, 0, 1, 0], [], []>} : vector<16x32xf32>, vector<16x32xf32>, vector<16x16xf32> -> vector<16x16xf32>
    "tpu.trace_stop"() : () -> ()
    %cst_58 = arith.constant 0.353553385 : f32
    %140 = vector.broadcast %cst_58 : f32 to vector<16x16xf32>
    %141 = arith.mulf %139, %140 : vector<16x16xf32>
    %142 = arith.addf %141, %45 : vector<16x16xf32>
    %cst_59 = arith.constant dense<0xFF800000> : vector<16xf32>
    %143 = vector.multi_reduction <maximumf>, %142, %cst_59 [1] : vector<16x16xf32> to vector<16xf32>
    %144 = vector.shape_cast %143 : vector<16xf32> to vector<16x1xf32>
    %145 = vector.broadcast %144 : vector<16x1xf32> to vector<16x16xf32>
    %146 = arith.subf %142, %145 : vector<16x16xf32>
    %147 = math.exp %146 : vector<16x16xf32>
    %cst_60 = arith.constant dense<0.000000e+00> : vector<16xf32>
    %148 = vector.multi_reduction <add>, %147, %cst_60 [1] : vector<16x16xf32> to vector<16xf32>
    %149 = vector.shape_cast %148 : vector<16xf32> to vector<16x1xf32>
    %150 = vector.broadcast %67 : vector<1x32xf32> to vector<16x32xf32>
    %151 = arith.mulf %95, %150 : vector<16x32xf32>
    %cst_61 = arith.constant dense<0.000000e+00> : vector<16x32xf32>
    %152 = tpu.matmul %147, %151, %cst_61 {dimension_numbers = #tpu.dot_dimension_numbers<[1], [0], [0], [1], [0, 0, 1, 1], [], []>} : vector<16x16xf32>, vector<16x32xf32>, vector<16x32xf32> -> vector<16x32xf32>
    %153 = tpu.reciprocal %149 {approx = true} : vector<16x1xf32> -> vector<16x1xf32>
    %154 = vector.broadcast %153 : vector<16x1xf32> to vector<16x32xf32>
    %155 = arith.mulf %152, %154 : vector<16x32xf32>
    %156 = arith.addf %136, %155 : vector<16x32xf32>
    %157 = vector.broadcast %74 : vector<1x32xf32> to vector<16x32xf32>
    %158 = arith.mulf %81, %157 : vector<16x32xf32>
    "tpu.trace_start"() <{level = 10 : i32, message = "qd,kd->qk"}> : () -> ()
    %cst_62 = arith.constant dense<0.000000e+00> : vector<16x16xf32>
    %159 = tpu.matmul %158, %88, %cst_62 {dimension_numbers = #tpu.dot_dimension_numbers<[1], [1], [0], [0], [0, 0, 1, 0], [], []>} : vector<16x32xf32>, vector<16x32xf32>, vector<16x16xf32> -> vector<16x16xf32>
    "tpu.trace_stop"() : () -> ()
    %cst_63 = arith.constant 0.353553385 : f32
    %160 = vector.broadcast %cst_63 : f32 to vector<16x16xf32>
    %161 = arith.mulf %159, %160 : vector<16x16xf32>
    %162 = arith.addf %161, %45 : vector<16x16xf32>
    %cst_64 = arith.constant dense<0xFF800000> : vector<16xf32>
    %163 = vector.multi_reduction <maximumf>, %162, %cst_64 [1] : vector<16x16xf32> to vector<16xf32>
    %164 = vector.shape_cast %163 : vector<16xf32> to vector<16x1xf32>
    %165 = vector.broadcast %164 : vector<16x1xf32> to vector<16x16xf32>
    %166 = arith.subf %162, %165 : vector<16x16xf32>
    %167 = math.exp %166 : vector<16x16xf32>
    %cst_65 = arith.constant dense<0.000000e+00> : vector<16xf32>
    %168 = vector.multi_reduction <add>, %167, %cst_65 [1] : vector<16x16xf32> to vector<16xf32>
    %169 = vector.shape_cast %168 : vector<16xf32> to vector<16x1xf32>
    %170 = vector.broadcast %74 : vector<1x32xf32> to vector<16x32xf32>
    %171 = arith.mulf %95, %170 : vector<16x32xf32>
    %cst_66 = arith.constant dense<0.000000e+00> : vector<16x32xf32>
    %172 = tpu.matmul %167, %171, %cst_66 {dimension_numbers = #tpu.dot_dimension_numbers<[1], [0], [0], [1], [0, 0, 1, 1], [], []>} : vector<16x16xf32>, vector<16x32xf32>, vector<16x32xf32> -> vector<16x32xf32>
    %173 = tpu.reciprocal %169 {approx = true} : vector<16x1xf32> -> vector<16x1xf32>
    %174 = vector.broadcast %173 : vector<16x1xf32> to vector<16x32xf32>
    %175 = arith.mulf %172, %174 : vector<16x32xf32>
    %176 = arith.addf %156, %175 : vector<16x32xf32>
    %c0_67 = arith.constant 0 : index
    %c0_68 = arith.constant 0 : index
    %c0_69 = arith.constant 0 : index
    %177 = vector.load %arg15[%c0_67, %c0_68, %c0_69] : memref<2x32x32xf32, #tpu.memory_space<vmem>>, vector<1x32x32xf32>
    %178 = vector.shape_cast %177 : vector<1x32x32xf32> to vector<32x32xf32>
    %cst_70 = arith.constant dense<0.000000e+00> : vector<16x32xf32>
    %179 = tpu.matmul %176, %178, %cst_70 {dimension_numbers = #tpu.dot_dimension_numbers<[1], [0], [0], [1], [0, 0, 1, 1], [], []>} : vector<16x32xf32>, vector<32x32xf32>, vector<16x32xf32> -> vector<16x32xf32>
    %c0_71 = arith.constant 0 : index
    %c0_72 = arith.constant 0 : index
    %c0_73 = arith.constant 0 : index
    %180 = vector.load %arg16[%c0_71, %c0_72, %c0_73] : memref<2x1x32xf32, #tpu.memory_space<vmem>>, vector<1x1x32xf32>
    %181 = vector.shape_cast %180 : vector<1x1x32xf32> to vector<1x32xf32>
    %182 = vector.broadcast %181 : vector<1x32xf32> to vector<16x32xf32>
    %183 = arith.addf %179, %182 : vector<16x32xf32>
    %184 = arith.addf %44, %183 : vector<16x32xf32>
    %c0_74 = arith.constant 0 : index
    %c0_75 = arith.constant 0 : index
    %c0_76 = arith.constant 0 : index
    %185 = vector.load %arg17[%c0_74, %c0_75, %c0_76] : memref<2x1x32xf32, #tpu.memory_space<vmem>>, vector<1x1x32xf32>
    %186 = vector.shape_cast %185 : vector<1x1x32xf32> to vector<1x32xf32>
    %c0_77 = arith.constant 0 : index
    %c0_78 = arith.constant 0 : index
    %c0_79 = arith.constant 0 : index
    %187 = vector.load %arg18[%c0_77, %c0_78, %c0_79] : memref<2x1x32xf32, #tpu.memory_space<vmem>>, vector<1x1x32xf32>
    %188 = vector.shape_cast %187 : vector<1x1x32xf32> to vector<1x32xf32>
    %cst_80 = arith.constant dense<0.000000e+00> : vector<16xf32>
    %189 = vector.multi_reduction <add>, %184, %cst_80 [1] : vector<16x32xf32> to vector<16xf32>
    %190 = vector.shape_cast %189 : vector<16xf32> to vector<16x1xf32>
    %cst_81 = arith.constant 3.200000e+01 : f32
    %191 = vector.broadcast %cst_81 : f32 to vector<16x1xf32>
    %192 = arith.divf %190, %191 : vector<16x1xf32>
    %193 = vector.broadcast %192 : vector<16x1xf32> to vector<16x32xf32>
    %194 = arith.subf %184, %193 : vector<16x32xf32>
    %195 = arith.mulf %194, %194 : vector<16x32xf32>
    %cst_82 = arith.constant dense<0.000000e+00> : vector<16xf32>
    %196 = vector.multi_reduction <add>, %195, %cst_82 [1] : vector<16x32xf32> to vector<16xf32>
    %197 = vector.shape_cast %196 : vector<16xf32> to vector<16x1xf32>
    %cst_83 = arith.constant 3.200000e+01 : f32
    %198 = vector.broadcast %cst_83 : f32 to vector<16x1xf32>
    %199 = arith.divf %197, %198 : vector<16x1xf32>
    %cst_84 = arith.constant 9.99999996E-13 : f32
    %200 = vector.broadcast %cst_84 : f32 to vector<16x1xf32>
    %201 = arith.addf %199, %200 : vector<16x1xf32>
    %202 = math.rsqrt %201 : vector<16x1xf32>
    %203 = vector.broadcast %202 : vector<16x1xf32> to vector<16x32xf32>
    %204 = arith.mulf %194, %203 : vector<16x32xf32>
    %205 = vector.broadcast %186 : vector<1x32xf32> to vector<16x32xf32>
    %206 = arith.mulf %204, %205 : vector<16x32xf32>
    %207 = vector.broadcast %188 : vector<1x32xf32> to vector<16x32xf32>
    %208 = arith.addf %206, %207 : vector<16x32xf32>
    %c0_85 = arith.constant 0 : index
    %c0_86 = arith.constant 0 : index
    %c0_87 = arith.constant 0 : index
    %209 = vector.load %arg19[%c0_85, %c0_86, %c0_87] : memref<2x32x64xf32, #tpu.memory_space<vmem>>, vector<1x32x64xf32>
    %210 = vector.shape_cast %209 : vector<1x32x64xf32> to vector<32x64xf32>
    %cst_88 = arith.constant dense<0.000000e+00> : vector<16x64xf32>
    %211 = tpu.matmul %208, %210, %cst_88 {dimension_numbers = #tpu.dot_dimension_numbers<[1], [0], [0], [1], [0, 0, 1, 1], [], []>} : vector<16x32xf32>, vector<32x64xf32>, vector<16x64xf32> -> vector<16x64xf32>
    %c0_89 = arith.constant 0 : index
    %c0_90 = arith.constant 0 : index
    %c0_91 = arith.constant 0 : index
    %212 = vector.load %arg20[%c0_89, %c0_90, %c0_91] : memref<2x1x64xf32, #tpu.memory_space<vmem>>, vector<1x1x64xf32>
    %213 = vector.shape_cast %212 : vector<1x1x64xf32> to vector<1x64xf32>
    %214 = vector.broadcast %213 : vector<1x64xf32> to vector<16x64xf32>
    %215 = arith.addf %211, %214 : vector<16x64xf32>
    %cst_92 = arith.constant 5.000000e-01 : f32
    %216 = vector.broadcast %cst_92 : f32 to vector<16x64xf32>
    %217 = arith.mulf %216, %215 : vector<16x64xf32>
    %cst_93 = arith.constant 4.471500e-02 : f32
    %218 = vector.broadcast %cst_93 : f32 to vector<16x64xf32>
    %219 = arith.mulf %218, %215 : vector<16x64xf32>
    %220 = arith.mulf %219, %215 : vector<16x64xf32>
    %221 = arith.mulf %220, %215 : vector<16x64xf32>
    %222 = arith.addf %215, %221 : vector<16x64xf32>
    %cst_94 = arith.constant 0.797884583 : f32
    %223 = vector.broadcast %cst_94 : f32 to vector<16x64xf32>
    %224 = arith.mulf %223, %222 : vector<16x64xf32>
    %225 = math.tanh %224 : vector<16x64xf32>
    %cst_95 = arith.constant 1.000000e+00 : f32
    %226 = vector.broadcast %cst_95 : f32 to vector<16x64xf32>
    %227 = arith.addf %226, %225 : vector<16x64xf32>
    %228 = arith.mulf %217, %227 : vector<16x64xf32>
    %c0_96 = arith.constant 0 : index
    %c0_97 = arith.constant 0 : index
    %c0_98 = arith.constant 0 : index
    %229 = vector.load %arg21[%c0_96, %c0_97, %c0_98] : memref<2x64x32xf32, #tpu.memory_space<vmem>>, vector<1x64x32xf32>
    %230 = vector.shape_cast %229 : vector<1x64x32xf32> to vector<64x32xf32>
    %cst_99 = arith.constant dense<0.000000e+00> : vector<16x32xf32>
    %231 = tpu.matmul %228, %230, %cst_99 {dimension_numbers = #tpu.dot_dimension_numbers<[1], [0], [0], [1], [0, 0, 1, 1], [], []>} : vector<16x64xf32>, vector<64x32xf32>, vector<16x32xf32> -> vector<16x32xf32>
    %c0_100 = arith.constant 0 : index
    %c0_101 = arith.constant 0 : index
    %c0_102 = arith.constant 0 : index
    %232 = vector.load %arg22[%c0_100, %c0_101, %c0_102] : memref<2x1x32xf32, #tpu.memory_space<vmem>>, vector<1x1x32xf32>
    %233 = vector.shape_cast %232 : vector<1x1x32xf32> to vector<1x32xf32>
    %234 = vector.broadcast %233 : vector<1x32xf32> to vector<16x32xf32>
    %235 = arith.addf %231, %234 : vector<16x32xf32>
    %236 = arith.addf %208, %235 : vector<16x32xf32>
    %c0_103 = arith.constant 0 : index
    %c0_104 = arith.constant 0 : index
    %c0_105 = arith.constant 0 : index
    %237 = vector.load %arg23[%c0_103, %c0_104, %c0_105] : memref<2x1x32xf32, #tpu.memory_space<vmem>>, vector<1x1x32xf32>
    %238 = vector.shape_cast %237 : vector<1x1x32xf32> to vector<1x32xf32>
    %c0_106 = arith.constant 0 : index
    %c0_107 = arith.constant 0 : index
    %c0_108 = arith.constant 0 : index
    %239 = vector.load %arg24[%c0_106, %c0_107, %c0_108] : memref<2x1x32xf32, #tpu.memory_space<vmem>>, vector<1x1x32xf32>
    %240 = vector.shape_cast %239 : vector<1x1x32xf32> to vector<1x32xf32>
    %cst_109 = arith.constant dense<0.000000e+00> : vector<16xf32>
    %241 = vector.multi_reduction <add>, %236, %cst_109 [1] : vector<16x32xf32> to vector<16xf32>
    %242 = vector.shape_cast %241 : vector<16xf32> to vector<16x1xf32>
    %cst_110 = arith.constant 3.200000e+01 : f32
    %243 = vector.broadcast %cst_110 : f32 to vector<16x1xf32>
    %244 = arith.divf %242, %243 : vector<16x1xf32>
    %245 = vector.broadcast %244 : vector<16x1xf32> to vector<16x32xf32>
    %246 = arith.subf %236, %245 : vector<16x32xf32>
    %247 = arith.mulf %246, %246 : vector<16x32xf32>
    %cst_111 = arith.constant dense<0.000000e+00> : vector<16xf32>
    %248 = vector.multi_reduction <add>, %247, %cst_111 [1] : vector<16x32xf32> to vector<16xf32>
    %249 = vector.shape_cast %248 : vector<16xf32> to vector<16x1xf32>
    %cst_112 = arith.constant 3.200000e+01 : f32
    %250 = vector.broadcast %cst_112 : f32 to vector<16x1xf32>
    %251 = arith.divf %249, %250 : vector<16x1xf32>
    %cst_113 = arith.constant 9.99999996E-13 : f32
    %252 = vector.broadcast %cst_113 : f32 to vector<16x1xf32>
    %253 = arith.addf %251, %252 : vector<16x1xf32>
    %254 = math.rsqrt %253 : vector<16x1xf32>
    %255 = vector.broadcast %254 : vector<16x1xf32> to vector<16x32xf32>
    %256 = arith.mulf %246, %255 : vector<16x32xf32>
    %257 = vector.broadcast %238 : vector<1x32xf32> to vector<16x32xf32>
    %258 = arith.mulf %256, %257 : vector<16x32xf32>
    %259 = vector.broadcast %240 : vector<1x32xf32> to vector<16x32xf32>
    %260 = arith.addf %258, %259 : vector<16x32xf32>
    %c1_114 = arith.constant 1 : index
    %c0_115 = arith.constant 0 : index
    %c0_116 = arith.constant 0 : index
    %261 = vector.load %arg9[%c1_114, %c0_115, %c0_116] : memref<2x32x32xf32, #tpu.memory_space<vmem>>, vector<1x32x32xf32>
    %262 = vector.shape_cast %261 : vector<1x32x32xf32> to vector<32x32xf32>
    %cst_117 = arith.constant dense<0.000000e+00> : vector<16x32xf32>
    %263 = tpu.matmul %260, %262, %cst_117 {dimension_numbers = #tpu.dot_dimension_numbers<[1], [0], [0], [1], [0, 0, 1, 1], [], []>} : vector<16x32xf32>, vector<32x32xf32>, vector<16x32xf32> -> vector<16x32xf32>
    %c1_118 = arith.constant 1 : index
    %c0_119 = arith.constant 0 : index
    %c0_120 = arith.constant 0 : index
    %264 = vector.load %arg10[%c1_118, %c0_119, %c0_120] : memref<2x1x32xf32, #tpu.memory_space<vmem>>, vector<1x1x32xf32>
    %265 = vector.shape_cast %264 : vector<1x1x32xf32> to vector<1x32xf32>
    %266 = vector.broadcast %265 : vector<1x32xf32> to vector<16x32xf32>
    %267 = arith.addf %263, %266 : vector<16x32xf32>
    %c1_121 = arith.constant 1 : index
    %c0_122 = arith.constant 0 : index
    %c0_123 = arith.constant 0 : index
    %268 = vector.load %arg11[%c1_121, %c0_122, %c0_123] : memref<2x32x32xf32, #tpu.memory_space<vmem>>, vector<1x32x32xf32>
    %269 = vector.shape_cast %268 : vector<1x32x32xf32> to vector<32x32xf32>
    %cst_124 = arith.constant dense<0.000000e+00> : vector<16x32xf32>
    %270 = tpu.matmul %260, %269, %cst_124 {dimension_numbers = #tpu.dot_dimension_numbers<[1], [0], [0], [1], [0, 0, 1, 1], [], []>} : vector<16x32xf32>, vector<32x32xf32>, vector<16x32xf32> -> vector<16x32xf32>
    %c1_125 = arith.constant 1 : index
    %c0_126 = arith.constant 0 : index
    %c0_127 = arith.constant 0 : index
    %271 = vector.load %arg12[%c1_125, %c0_126, %c0_127] : memref<2x1x32xf32, #tpu.memory_space<vmem>>, vector<1x1x32xf32>
    %272 = vector.shape_cast %271 : vector<1x1x32xf32> to vector<1x32xf32>
    %273 = vector.broadcast %272 : vector<1x32xf32> to vector<16x32xf32>
    %274 = arith.addf %270, %273 : vector<16x32xf32>
    %c1_128 = arith.constant 1 : index
    %c0_129 = arith.constant 0 : index
    %c0_130 = arith.constant 0 : index
    %275 = vector.load %arg13[%c1_128, %c0_129, %c0_130] : memref<2x32x32xf32, #tpu.memory_space<vmem>>, vector<1x32x32xf32>
    %276 = vector.shape_cast %275 : vector<1x32x32xf32> to vector<32x32xf32>
    %cst_131 = arith.constant dense<0.000000e+00> : vector<16x32xf32>
    %277 = tpu.matmul %260, %276, %cst_131 {dimension_numbers = #tpu.dot_dimension_numbers<[1], [0], [0], [1], [0, 0, 1, 1], [], []>} : vector<16x32xf32>, vector<32x32xf32>, vector<16x32xf32> -> vector<16x32xf32>
    %c1_132 = arith.constant 1 : index
    %c0_133 = arith.constant 0 : index
    %c0_134 = arith.constant 0 : index
    %278 = vector.load %arg14[%c1_132, %c0_133, %c0_134] : memref<2x1x32xf32, #tpu.memory_space<vmem>>, vector<1x1x32xf32>
    %279 = vector.shape_cast %278 : vector<1x1x32xf32> to vector<1x32xf32>
    %280 = vector.broadcast %279 : vector<1x32xf32> to vector<16x32xf32>
    %281 = arith.addf %277, %280 : vector<16x32xf32>
    %cst_135 = arith.constant 0.000000e+00 : f32
    %282 = vector.broadcast %cst_135 : f32 to vector<16x32xf32>
    %283 = vector.broadcast %53 : vector<1x32xf32> to vector<16x32xf32>
    %284 = arith.mulf %267, %283 : vector<16x32xf32>
    "tpu.trace_start"() <{level = 10 : i32, message = "qd,kd->qk"}> : () -> ()
    %cst_136 = arith.constant dense<0.000000e+00> : vector<16x16xf32>
    %285 = tpu.matmul %284, %274, %cst_136 {dimension_numbers = #tpu.dot_dimension_numbers<[1], [1], [0], [0], [0, 0, 1, 0], [], []>} : vector<16x32xf32>, vector<16x32xf32>, vector<16x16xf32> -> vector<16x16xf32>
    "tpu.trace_stop"() : () -> ()
    %cst_137 = arith.constant 0.353553385 : f32
    %286 = vector.broadcast %cst_137 : f32 to vector<16x16xf32>
    %287 = arith.mulf %285, %286 : vector<16x16xf32>
    %288 = arith.addf %287, %45 : vector<16x16xf32>
    %cst_138 = arith.constant dense<0xFF800000> : vector<16xf32>
    %289 = vector.multi_reduction <maximumf>, %288, %cst_138 [1] : vector<16x16xf32> to vector<16xf32>
    %290 = vector.shape_cast %289 : vector<16xf32> to vector<16x1xf32>
    %291 = vector.broadcast %290 : vector<16x1xf32> to vector<16x16xf32>
    %292 = arith.subf %288, %291 : vector<16x16xf32>
    %293 = math.exp %292 : vector<16x16xf32>
    %cst_139 = arith.constant dense<0.000000e+00> : vector<16xf32>
    %294 = vector.multi_reduction <add>, %293, %cst_139 [1] : vector<16x16xf32> to vector<16xf32>
    %295 = vector.shape_cast %294 : vector<16xf32> to vector<16x1xf32>
    %296 = vector.broadcast %53 : vector<1x32xf32> to vector<16x32xf32>
    %297 = arith.mulf %281, %296 : vector<16x32xf32>
    %cst_140 = arith.constant dense<0.000000e+00> : vector<16x32xf32>
    %298 = tpu.matmul %293, %297, %cst_140 {dimension_numbers = #tpu.dot_dimension_numbers<[1], [0], [0], [1], [0, 0, 1, 1], [], []>} : vector<16x16xf32>, vector<16x32xf32>, vector<16x32xf32> -> vector<16x32xf32>
    %299 = tpu.reciprocal %295 {approx = true} : vector<16x1xf32> -> vector<16x1xf32>
    %300 = vector.broadcast %299 : vector<16x1xf32> to vector<16x32xf32>
    %301 = arith.mulf %298, %300 : vector<16x32xf32>
    %302 = arith.addf %282, %301 : vector<16x32xf32>
    %303 = vector.broadcast %60 : vector<1x32xf32> to vector<16x32xf32>
    %304 = arith.mulf %267, %303 : vector<16x32xf32>
    "tpu.trace_start"() <{level = 10 : i32, message = "qd,kd->qk"}> : () -> ()
    %cst_141 = arith.constant dense<0.000000e+00> : vector<16x16xf32>
    %305 = tpu.matmul %304, %274, %cst_141 {dimension_numbers = #tpu.dot_dimension_numbers<[1], [1], [0], [0], [0, 0, 1, 0], [], []>} : vector<16x32xf32>, vector<16x32xf32>, vector<16x16xf32> -> vector<16x16xf32>
    "tpu.trace_stop"() : () -> ()
    %cst_142 = arith.constant 0.353553385 : f32
    %306 = vector.broadcast %cst_142 : f32 to vector<16x16xf32>
    %307 = arith.mulf %305, %306 : vector<16x16xf32>
    %308 = arith.addf %307, %45 : vector<16x16xf32>
    %cst_143 = arith.constant dense<0xFF800000> : vector<16xf32>
    %309 = vector.multi_reduction <maximumf>, %308, %cst_143 [1] : vector<16x16xf32> to vector<16xf32>
    %310 = vector.shape_cast %309 : vector<16xf32> to vector<16x1xf32>
    %311 = vector.broadcast %310 : vector<16x1xf32> to vector<16x16xf32>
    %312 = arith.subf %308, %311 : vector<16x16xf32>
    %313 = math.exp %312 : vector<16x16xf32>
    %cst_144 = arith.constant dense<0.000000e+00> : vector<16xf32>
    %314 = vector.multi_reduction <add>, %313, %cst_144 [1] : vector<16x16xf32> to vector<16xf32>
    %315 = vector.shape_cast %314 : vector<16xf32> to vector<16x1xf32>
    %316 = vector.broadcast %60 : vector<1x32xf32> to vector<16x32xf32>
    %317 = arith.mulf %281, %316 : vector<16x32xf32>
    %cst_145 = arith.constant dense<0.000000e+00> : vector<16x32xf32>
    %318 = tpu.matmul %313, %317, %cst_145 {dimension_numbers = #tpu.dot_dimension_numbers<[1], [0], [0], [1], [0, 0, 1, 1], [], []>} : vector<16x16xf32>, vector<16x32xf32>, vector<16x32xf32> -> vector<16x32xf32>
    %319 = tpu.reciprocal %315 {approx = true} : vector<16x1xf32> -> vector<16x1xf32>
    %320 = vector.broadcast %319 : vector<16x1xf32> to vector<16x32xf32>
    %321 = arith.mulf %318, %320 : vector<16x32xf32>
    %322 = arith.addf %302, %321 : vector<16x32xf32>
    %323 = vector.broadcast %67 : vector<1x32xf32> to vector<16x32xf32>
    %324 = arith.mulf %267, %323 : vector<16x32xf32>
    "tpu.trace_start"() <{level = 10 : i32, message = "qd,kd->qk"}> : () -> ()
    %cst_146 = arith.constant dense<0.000000e+00> : vector<16x16xf32>
    %325 = tpu.matmul %324, %274, %cst_146 {dimension_numbers = #tpu.dot_dimension_numbers<[1], [1], [0], [0], [0, 0, 1, 0], [], []>} : vector<16x32xf32>, vector<16x32xf32>, vector<16x16xf32> -> vector<16x16xf32>
    "tpu.trace_stop"() : () -> ()
    %cst_147 = arith.constant 0.353553385 : f32
    %326 = vector.broadcast %cst_147 : f32 to vector<16x16xf32>
    %327 = arith.mulf %325, %326 : vector<16x16xf32>
    %328 = arith.addf %327, %45 : vector<16x16xf32>
    %cst_148 = arith.constant dense<0xFF800000> : vector<16xf32>
    %329 = vector.multi_reduction <maximumf>, %328, %cst_148 [1] : vector<16x16xf32> to vector<16xf32>
    %330 = vector.shape_cast %329 : vector<16xf32> to vector<16x1xf32>
    %331 = vector.broadcast %330 : vector<16x1xf32> to vector<16x16xf32>
    %332 = arith.subf %328, %331 : vector<16x16xf32>
    %333 = math.exp %332 : vector<16x16xf32>
    %cst_149 = arith.constant dense<0.000000e+00> : vector<16xf32>
    %334 = vector.multi_reduction <add>, %333, %cst_149 [1] : vector<16x16xf32> to vector<16xf32>
    %335 = vector.shape_cast %334 : vector<16xf32> to vector<16x1xf32>
    %336 = vector.broadcast %67 : vector<1x32xf32> to vector<16x32xf32>
    %337 = arith.mulf %281, %336 : vector<16x32xf32>
    %cst_150 = arith.constant dense<0.000000e+00> : vector<16x32xf32>
    %338 = tpu.matmul %333, %337, %cst_150 {dimension_numbers = #tpu.dot_dimension_numbers<[1], [0], [0], [1], [0, 0, 1, 1], [], []>} : vector<16x16xf32>, vector<16x32xf32>, vector<16x32xf32> -> vector<16x32xf32>
    %339 = tpu.reciprocal %335 {approx = true} : vector<16x1xf32> -> vector<16x1xf32>
    %340 = vector.broadcast %339 : vector<16x1xf32> to vector<16x32xf32>
    %341 = arith.mulf %338, %340 : vector<16x32xf32>
    %342 = arith.addf %322, %341 : vector<16x32xf32>
    %343 = vector.broadcast %74 : vector<1x32xf32> to vector<16x32xf32>
    %344 = arith.mulf %267, %343 : vector<16x32xf32>
    "tpu.trace_start"() <{level = 10 : i32, message = "qd,kd->qk"}> : () -> ()
    %cst_151 = arith.constant dense<0.000000e+00> : vector<16x16xf32>
    %345 = tpu.matmul %344, %274, %cst_151 {dimension_numbers = #tpu.dot_dimension_numbers<[1], [1], [0], [0], [0, 0, 1, 0], [], []>} : vector<16x32xf32>, vector<16x32xf32>, vector<16x16xf32> -> vector<16x16xf32>
    "tpu.trace_stop"() : () -> ()
    %cst_152 = arith.constant 0.353553385 : f32
    %346 = vector.broadcast %cst_152 : f32 to vector<16x16xf32>
    %347 = arith.mulf %345, %346 : vector<16x16xf32>
    %348 = arith.addf %347, %45 : vector<16x16xf32>
    %cst_153 = arith.constant dense<0xFF800000> : vector<16xf32>
    %349 = vector.multi_reduction <maximumf>, %348, %cst_153 [1] : vector<16x16xf32> to vector<16xf32>
    %350 = vector.shape_cast %349 : vector<16xf32> to vector<16x1xf32>
    %351 = vector.broadcast %350 : vector<16x1xf32> to vector<16x16xf32>
    %352 = arith.subf %348, %351 : vector<16x16xf32>
    %353 = math.exp %352 : vector<16x16xf32>
    %cst_154 = arith.constant dense<0.000000e+00> : vector<16xf32>
    %354 = vector.multi_reduction <add>, %353, %cst_154 [1] : vector<16x16xf32> to vector<16xf32>
    %355 = vector.shape_cast %354 : vector<16xf32> to vector<16x1xf32>
    %356 = vector.broadcast %74 : vector<1x32xf32> to vector<16x32xf32>
    %357 = arith.mulf %281, %356 : vector<16x32xf32>
    %cst_155 = arith.constant dense<0.000000e+00> : vector<16x32xf32>
    %358 = tpu.matmul %353, %357, %cst_155 {dimension_numbers = #tpu.dot_dimension_numbers<[1], [0], [0], [1], [0, 0, 1, 1], [], []>} : vector<16x16xf32>, vector<16x32xf32>, vector<16x32xf32> -> vector<16x32xf32>
    %359 = tpu.reciprocal %355 {approx = true} : vector<16x1xf32> -> vector<16x1xf32>
    %360 = vector.broadcast %359 : vector<16x1xf32> to vector<16x32xf32>
    %361 = arith.mulf %358, %360 : vector<16x32xf32>
    %362 = arith.addf %342, %361 : vector<16x32xf32>
    %c1_156 = arith.constant 1 : index
    %c0_157 = arith.constant 0 : index
    %c0_158 = arith.constant 0 : index
    %363 = vector.load %arg15[%c1_156, %c0_157, %c0_158] : memref<2x32x32xf32, #tpu.memory_space<vmem>>, vector<1x32x32xf32>
    %364 = vector.shape_cast %363 : vector<1x32x32xf32> to vector<32x32xf32>
    %cst_159 = arith.constant dense<0.000000e+00> : vector<16x32xf32>
    %365 = tpu.matmul %362, %364, %cst_159 {dimension_numbers = #tpu.dot_dimension_numbers<[1], [0], [0], [1], [0, 0, 1, 1], [], []>} : vector<16x32xf32>, vector<32x32xf32>, vector<16x32xf32> -> vector<16x32xf32>
    %c1_160 = arith.constant 1 : index
    %c0_161 = arith.constant 0 : index
    %c0_162 = arith.constant 0 : index
    %366 = vector.load %arg16[%c1_160, %c0_161, %c0_162] : memref<2x1x32xf32, #tpu.memory_space<vmem>>, vector<1x1x32xf32>
    %367 = vector.shape_cast %366 : vector<1x1x32xf32> to vector<1x32xf32>
    %368 = vector.broadcast %367 : vector<1x32xf32> to vector<16x32xf32>
    %369 = arith.addf %365, %368 : vector<16x32xf32>
    %370 = arith.addf %260, %369 : vector<16x32xf32>
    %c1_163 = arith.constant 1 : index
    %c0_164 = arith.constant 0 : index
    %c0_165 = arith.constant 0 : index
    %371 = vector.load %arg17[%c1_163, %c0_164, %c0_165] : memref<2x1x32xf32, #tpu.memory_space<vmem>>, vector<1x1x32xf32>
    %372 = vector.shape_cast %371 : vector<1x1x32xf32> to vector<1x32xf32>
    %c1_166 = arith.constant 1 : index
    %c0_167 = arith.constant 0 : index
    %c0_168 = arith.constant 0 : index
    %373 = vector.load %arg18[%c1_166, %c0_167, %c0_168] : memref<2x1x32xf32, #tpu.memory_space<vmem>>, vector<1x1x32xf32>
    %374 = vector.shape_cast %373 : vector<1x1x32xf32> to vector<1x32xf32>
    %cst_169 = arith.constant dense<0.000000e+00> : vector<16xf32>
    %375 = vector.multi_reduction <add>, %370, %cst_169 [1] : vector<16x32xf32> to vector<16xf32>
    %376 = vector.shape_cast %375 : vector<16xf32> to vector<16x1xf32>
    %cst_170 = arith.constant 3.200000e+01 : f32
    %377 = vector.broadcast %cst_170 : f32 to vector<16x1xf32>
    %378 = arith.divf %376, %377 : vector<16x1xf32>
    %379 = vector.broadcast %378 : vector<16x1xf32> to vector<16x32xf32>
    %380 = arith.subf %370, %379 : vector<16x32xf32>
    %381 = arith.mulf %380, %380 : vector<16x32xf32>
    %cst_171 = arith.constant dense<0.000000e+00> : vector<16xf32>
    %382 = vector.multi_reduction <add>, %381, %cst_171 [1] : vector<16x32xf32> to vector<16xf32>
    %383 = vector.shape_cast %382 : vector<16xf32> to vector<16x1xf32>
    %cst_172 = arith.constant 3.200000e+01 : f32
    %384 = vector.broadcast %cst_172 : f32 to vector<16x1xf32>
    %385 = arith.divf %383, %384 : vector<16x1xf32>
    %cst_173 = arith.constant 9.99999996E-13 : f32
    %386 = vector.broadcast %cst_173 : f32 to vector<16x1xf32>
    %387 = arith.addf %385, %386 : vector<16x1xf32>
    %388 = math.rsqrt %387 : vector<16x1xf32>
    %389 = vector.broadcast %388 : vector<16x1xf32> to vector<16x32xf32>
    %390 = arith.mulf %380, %389 : vector<16x32xf32>
    %391 = vector.broadcast %372 : vector<1x32xf32> to vector<16x32xf32>
    %392 = arith.mulf %390, %391 : vector<16x32xf32>
    %393 = vector.broadcast %374 : vector<1x32xf32> to vector<16x32xf32>
    %394 = arith.addf %392, %393 : vector<16x32xf32>
    %c1_174 = arith.constant 1 : index
    %c0_175 = arith.constant 0 : index
    %c0_176 = arith.constant 0 : index
    %395 = vector.load %arg19[%c1_174, %c0_175, %c0_176] : memref<2x32x64xf32, #tpu.memory_space<vmem>>, vector<1x32x64xf32>
    %396 = vector.shape_cast %395 : vector<1x32x64xf32> to vector<32x64xf32>
    %cst_177 = arith.constant dense<0.000000e+00> : vector<16x64xf32>
    %397 = tpu.matmul %394, %396, %cst_177 {dimension_numbers = #tpu.dot_dimension_numbers<[1], [0], [0], [1], [0, 0, 1, 1], [], []>} : vector<16x32xf32>, vector<32x64xf32>, vector<16x64xf32> -> vector<16x64xf32>
    %c1_178 = arith.constant 1 : index
    %c0_179 = arith.constant 0 : index
    %c0_180 = arith.constant 0 : index
    %398 = vector.load %arg20[%c1_178, %c0_179, %c0_180] : memref<2x1x64xf32, #tpu.memory_space<vmem>>, vector<1x1x64xf32>
    %399 = vector.shape_cast %398 : vector<1x1x64xf32> to vector<1x64xf32>
    %400 = vector.broadcast %399 : vector<1x64xf32> to vector<16x64xf32>
    %401 = arith.addf %397, %400 : vector<16x64xf32>
    %cst_181 = arith.constant 5.000000e-01 : f32
    %402 = vector.broadcast %cst_181 : f32 to vector<16x64xf32>
    %403 = arith.mulf %402, %401 : vector<16x64xf32>
    %cst_182 = arith.constant 4.471500e-02 : f32
    %404 = vector.broadcast %cst_182 : f32 to vector<16x64xf32>
    %405 = arith.mulf %404, %401 : vector<16x64xf32>
    %406 = arith.mulf %405, %401 : vector<16x64xf32>
    %407 = arith.mulf %406, %401 : vector<16x64xf32>
    %408 = arith.addf %401, %407 : vector<16x64xf32>
    %cst_183 = arith.constant 0.797884583 : f32
    %409 = vector.broadcast %cst_183 : f32 to vector<16x64xf32>
    %410 = arith.mulf %409, %408 : vector<16x64xf32>
    %411 = math.tanh %410 : vector<16x64xf32>
    %cst_184 = arith.constant 1.000000e+00 : f32
    %412 = vector.broadcast %cst_184 : f32 to vector<16x64xf32>
    %413 = arith.addf %412, %411 : vector<16x64xf32>
    %414 = arith.mulf %403, %413 : vector<16x64xf32>
    %c1_185 = arith.constant 1 : index
    %c0_186 = arith.constant 0 : index
    %c0_187 = arith.constant 0 : index
    %415 = vector.load %arg21[%c1_185, %c0_186, %c0_187] : memref<2x64x32xf32, #tpu.memory_space<vmem>>, vector<1x64x32xf32>
    %416 = vector.shape_cast %415 : vector<1x64x32xf32> to vector<64x32xf32>
    %cst_188 = arith.constant dense<0.000000e+00> : vector<16x32xf32>
    %417 = tpu.matmul %414, %416, %cst_188 {dimension_numbers = #tpu.dot_dimension_numbers<[1], [0], [0], [1], [0, 0, 1, 1], [], []>} : vector<16x64xf32>, vector<64x32xf32>, vector<16x32xf32> -> vector<16x32xf32>
    %c1_189 = arith.constant 1 : index
    %c0_190 = arith.constant 0 : index
    %c0_191 = arith.constant 0 : index
    %418 = vector.load %arg22[%c1_189, %c0_190, %c0_191] : memref<2x1x32xf32, #tpu.memory_space<vmem>>, vector<1x1x32xf32>
    %419 = vector.shape_cast %418 : vector<1x1x32xf32> to vector<1x32xf32>
    %420 = vector.broadcast %419 : vector<1x32xf32> to vector<16x32xf32>
    %421 = arith.addf %417, %420 : vector<16x32xf32>
    %422 = arith.addf %394, %421 : vector<16x32xf32>
    %c1_192 = arith.constant 1 : index
    %c0_193 = arith.constant 0 : index
    %c0_194 = arith.constant 0 : index
    %423 = vector.load %arg23[%c1_192, %c0_193, %c0_194] : memref<2x1x32xf32, #tpu.memory_space<vmem>>, vector<1x1x32xf32>
    %424 = vector.shape_cast %423 : vector<1x1x32xf32> to vector<1x32xf32>
    %c1_195 = arith.constant 1 : index
    %c0_196 = arith.constant 0 : index
    %c0_197 = arith.constant 0 : index
    %425 = vector.load %arg24[%c1_195, %c0_196, %c0_197] : memref<2x1x32xf32, #tpu.memory_space<vmem>>, vector<1x1x32xf32>
    %426 = vector.shape_cast %425 : vector<1x1x32xf32> to vector<1x32xf32>
    %cst_198 = arith.constant dense<0.000000e+00> : vector<16xf32>
    %427 = vector.multi_reduction <add>, %422, %cst_198 [1] : vector<16x32xf32> to vector<16xf32>
    %428 = vector.shape_cast %427 : vector<16xf32> to vector<16x1xf32>
    %cst_199 = arith.constant 3.200000e+01 : f32
    %429 = vector.broadcast %cst_199 : f32 to vector<16x1xf32>
    %430 = arith.divf %428, %429 : vector<16x1xf32>
    %431 = vector.broadcast %430 : vector<16x1xf32> to vector<16x32xf32>
    %432 = arith.subf %422, %431 : vector<16x32xf32>
    %433 = arith.mulf %432, %432 : vector<16x32xf32>
    %cst_200 = arith.constant dense<0.000000e+00> : vector<16xf32>
    %434 = vector.multi_reduction <add>, %433, %cst_200 [1] : vector<16x32xf32> to vector<16xf32>
    %435 = vector.shape_cast %434 : vector<16xf32> to vector<16x1xf32>
    %cst_201 = arith.constant 3.200000e+01 : f32
    %436 = vector.broadcast %cst_201 : f32 to vector<16x1xf32>
    %437 = arith.divf %435, %436 : vector<16x1xf32>
    %cst_202 = arith.constant 9.99999996E-13 : f32
    %438 = vector.broadcast %cst_202 : f32 to vector<16x1xf32>
    %439 = arith.addf %437, %438 : vector<16x1xf32>
    %440 = math.rsqrt %439 : vector<16x1xf32>
    %441 = vector.broadcast %440 : vector<16x1xf32> to vector<16x32xf32>
    %442 = arith.mulf %432, %441 : vector<16x32xf32>
    %443 = vector.broadcast %424 : vector<1x32xf32> to vector<16x32xf32>
    %444 = arith.mulf %442, %443 : vector<16x32xf32>
    %445 = vector.broadcast %426 : vector<1x32xf32> to vector<16x32xf32>
    %446 = arith.addf %444, %445 : vector<16x32xf32>
    %c0_203 = arith.constant 0 : index
    %c0_204 = arith.constant 0 : index
    %447 = vector.load %arg25[%c0_203, %c0_204] : memref<32x128xf32, #tpu.memory_space<vmem>>, vector<32x128xf32>
    %cst_205 = arith.constant dense<0.000000e+00> : vector<16x128xf32>
    %448 = tpu.matmul %446, %447, %cst_205 {dimension_numbers = #tpu.dot_dimension_numbers<[1], [0], [0], [1], [0, 0, 1, 1], [], []>} : vector<16x32xf32>, vector<32x128xf32>, vector<16x128xf32> -> vector<16x128xf32>
    %c0_206 = arith.constant 0 : index
    %c0_207 = arith.constant 0 : index
    %449 = vector.load %arg26[%c0_206, %c0_207] : memref<1x128xf32, #tpu.memory_space<vmem>>, vector<1x128xf32>
    %450 = vector.broadcast %449 : vector<1x128xf32> to vector<16x128xf32>
    %451 = arith.addf %448, %450 : vector<16x128xf32>
    %c0_208 = arith.constant 0 : index
    %c0_209 = arith.constant 0 : index
    %452 = vector.load %arg27[%c0_208, %c0_209] : memref<16x128xf32, #tpu.memory_space<vmem>>, vector<16x128xf32>
    tpu.vector_store %arg27[%c0_208, %c0_209], %451 {strides = array<i32>} : memref<16x128xf32, #tpu.memory_space<vmem>>, vector<16x128xf32>,
    return
  }
  func.func @transform_0(%arg0: i32) -> (i32, i32) {
    %c0_i32 = arith.constant 0 : i32
    %c0_i32_0 = arith.constant 0 : i32
    %c0_i32_1 = arith.constant 0 : i32
    return %c0_i32, %c0_i32_0 : i32, i32
  }
  func.func @transform_1(%arg0: i32) -> (i32, i32) {
    %c0_i32 = arith.constant 0 : i32
    %c0_i32_0 = arith.constant 0 : i32
    %c0_i32_1 = arith.constant 0 : i32
    return %c0_i32, %c0_i32_0 : i32, i32
  }
  func.func @transform_2(%arg0: i32) -> (i32, i32) {
    %c0_i32 = arith.constant 0 : i32
    %c0_i32_0 = arith.constant 0 : i32
    %c0_i32_1 = arith.constant 0 : i32
    return %c0_i32, %c0_i32_0 : i32, i32
  }
  func.func @transform_3(%arg0: i32) -> (i32, i32) {
    %c0_i32 = arith.constant 0 : i32
    %c0_i32_0 = arith.constant 0 : i32
    %c0_i32_1 = arith.constant 0 : i32
    return %c0_i32, %c0_i32_0 : i32, i32
  }
  func.func @transform_4(%arg0: i32) -> (i32, i32) {
    %c0_i32 = arith.constant 0 : i32
    %c0_i32_0 = arith.constant 0 : i32
    %c0_i32_1 = arith.constant 0 : i32
    return %c0_i32, %c0_i32_0 : i32, i32
  }
  func.func @transform_5(%arg0: i32) -> (i32, i32) {
    %c0_i32 = arith.constant 0 : i32
    %c0_i32_0 = arith.constant 0 : i32
    %c0_i32_1 = arith.constant 0 : i32
    return %c0_i32, %c0_i32_0 : i32, i32
  }
  func.func @transform_6(%arg0: i32) -> (i32, i32) {
    %c0_i32 = arith.constant 0 : i32
    %c0_i32_0 = arith.constant 0 : i32
    %c0_i32_1 = arith.constant 0 : i32
    return %c0_i32, %c0_i32_0 : i32, i32
  }
  func.func @transform_7(%arg0: i32) -> (i32, i32) {
    %c0_i32 = arith.constant 0 : i32
    %c0_i32_0 = arith.constant 0 : i32
    %c0_i32_1 = arith.constant 0 : i32
    return %c0_i32, %c0_i32_0 : i32, i32
  }
  func.func @transform_8(%arg0: i32) -> (i32, i32, i32) {
    %c0_i32 = arith.constant 0 : i32
    %c0_i32_0 = arith.constant 0 : i32
    %c0_i32_1 = arith.constant 0 : i32
    %c0_i32_2 = arith.constant 0 : i32
    return %c0_i32, %c0_i32_0, %c0_i32_1 : i32, i32, i32
  }
  func.func @transform_9(%arg0: i32) -> (i32, i32, i32) {
    %c0_i32 = arith.constant 0 : i32
    %c0_i32_0 = arith.constant 0 : i32
    %c0_i32_1 = arith.constant 0 : i32
    %c0_i32_2 = arith.constant 0 : i32
    return %c0_i32, %c0_i32_0, %c0_i32_1 : i32, i32, i32
  }
  func.func @transform_10(%arg0: i32) -> (i32, i32, i32) {
    %c0_i32 = arith.constant 0 : i32
    %c0_i32_0 = arith.constant 0 : i32
    %c0_i32_1 = arith.constant 0 : i32
    %c0_i32_2 = arith.constant 0 : i32
    return %c0_i32, %c0_i32_0, %c0_i32_1 : i32, i32, i32
  }
  func.func @transform_11(%arg0: i32) -> (i32, i32, i32) {
    %c0_i32 = arith.constant 0 : i32
    %c0_i32_0 = arith.constant 0 : i32
    %c0_i32_1 = arith.constant 0 : i32
    %c0_i32_2 = arith.constant 0 : i32
    return %c0_i32, %c0_i32_0, %c0_i32_1 : i32, i32, i32
  }
  func.func @transform_12(%arg0: i32) -> (i32, i32, i32) {
    %c0_i32 = arith.constant 0 : i32
    %c0_i32_0 = arith.constant 0 : i32
    %c0_i32_1 = arith.constant 0 : i32
    %c0_i32_2 = arith.constant 0 : i32
    return %c0_i32, %c0_i32_0, %c0_i32_1 : i32, i32, i32
  }
  func.func @transform_13(%arg0: i32) -> (i32, i32, i32) {
    %c0_i32 = arith.constant 0 : i32
    %c0_i32_0 = arith.constant 0 : i32
    %c0_i32_1 = arith.constant 0 : i32
    %c0_i32_2 = arith.constant 0 : i32
    return %c0_i32, %c0_i32_0, %c0_i32_1 : i32, i32, i32
  }
  func.func @transform_14(%arg0: i32) -> (i32, i32, i32) {
    %c0_i32 = arith.constant 0 : i32
    %c0_i32_0 = arith.constant 0 : i32
    %c0_i32_1 = arith.constant 0 : i32
    %c0_i32_2 = arith.constant 0 : i32
    return %c0_i32, %c0_i32_0, %c0_i32_1 : i32, i32, i32
  }
  func.func @transform_15(%arg0: i32) -> (i32, i32, i32) {
    %c0_i32 = arith.constant 0 : i32
    %c0_i32_0 = arith.constant 0 : i32
    %c0_i32_1 = arith.constant 0 : i32
    %c0_i32_2 = arith.constant 0 : i32
    return %c0_i32, %c0_i32_0, %c0_i32_1 : i32, i32, i32
  }
  func.func @transform_16(%arg0: i32) -> (i32, i32, i32) {
    %c0_i32 = arith.constant 0 : i32
    %c0_i32_0 = arith.constant 0 : i32
    %c0_i32_1 = arith.constant 0 : i32
    %c0_i32_2 = arith.constant 0 : i32
    return %c0_i32, %c0_i32_0, %c0_i32_1 : i32, i32, i32
  }
  func.func @transform_17(%arg0: i32) -> (i32, i32, i32) {
    %c0_i32 = arith.constant 0 : i32
    %c0_i32_0 = arith.constant 0 : i32
    %c0_i32_1 = arith.constant 0 : i32
    %c0_i32_2 = arith.constant 0 : i32
    return %c0_i32, %c0_i32_0, %c0_i32_1 : i32, i32, i32
  }
  func.func @transform_18(%arg0: i32) -> (i32, i32, i32) {
    %c0_i32 = arith.constant 0 : i32
    %c0_i32_0 = arith.constant 0 : i32
    %c0_i32_1 = arith.constant 0 : i32
    %c0_i32_2 = arith.constant 0 : i32
    return %c0_i32, %c0_i32_0, %c0_i32_1 : i32, i32, i32
  }
  func.func @transform_19(%arg0: i32) -> (i32, i32, i32) {
    %c0_i32 = arith.constant 0 : i32
    %c0_i32_0 = arith.constant 0 : i32
    %c0_i32_1 = arith.constant 0 : i32
    %c0_i32_2 = arith.constant 0 : i32
    return %c0_i32, %c0_i32_0, %c0_i32_1 : i32, i32, i32
  }
  func.func @transform_20(%arg0: i32) -> (i32, i32, i32) {
    %c0_i32 = arith.constant 0 : i32
    %c0_i32_0 = arith.constant 0 : i32
    %c0_i32_1 = arith.constant 0 : i32
    %c0_i32_2 = arith.constant 0 : i32
    return %c0_i32, %c0_i32_0, %c0_i32_1 : i32, i32, i32
  }
  func.func @transform_21(%arg0: i32) -> (i32, i32, i32) {
    %c0_i32 = arith.constant 0 : i32
    %c0_i32_0 = arith.constant 0 : i32
    %c0_i32_1 = arith.constant 0 : i32
    %c0_i32_2 = arith.constant 0 : i32
    return %c0_i32, %c0_i32_0, %c0_i32_1 : i32, i32, i32
  }
  func.func @transform_22(%arg0: i32) -> (i32, i32, i32) {
    %c0_i32 = arith.constant 0 : i32
    %c0_i32_0 = arith.constant 0 : i32
    %c0_i32_1 = arith.constant 0 : i32
    %c0_i32_2 = arith.constant 0 : i32
    return %c0_i32, %c0_i32_0, %c0_i32_1 : i32, i32, i32
  }
  func.func @transform_23(%arg0: i32) -> (i32, i32, i32) {
    %c0_i32 = arith.constant 0 : i32
    %c0_i32_0 = arith.constant 0 : i32
    %c0_i32_1 = arith.constant 0 : i32
    %c0_i32_2 = arith.constant 0 : i32
    return %c0_i32, %c0_i32_0, %c0_i32_1 : i32, i32, i32
  }
  func.func @transform_24(%arg0: i32) -> (i32, i32) {
    %c0_i32 = arith.constant 0 : i32
    %c0_i32_0 = arith.constant 0 : i32
    %c0_i32_1 = arith.constant 0 : i32
    return %c0_i32, %c0_i32_0 : i32, i32
  }
  func.func @transform_25(%arg0: i32) -> (i32, i32) {
    %c0_i32 = arith.constant 0 : i32
    %c0_i32_0 = arith.constant 0 : i32
    %c0_i32_1 = arith.constant 0 : i32
    return %c0_i32, %c0_i32_0 : i32, i32
  }
  func.func @transform_26(%arg0: i32) -> (i32, i32) {
    %c0_i32 = arith.constant 0 : i32
    %c0_i32_0 = arith.constant 0 : i32
    %c0_i32_1 = arith.constant 0 : i32
    return %c0_i32, %c0_i32_0 : i32, i32
  }
}

</mosaic_0001>

<llo_original>
// kernel: extractive_qa_forward.1
$region0: #{extractive_qa_forward.1}
  #allocation0 [shape = 'u32[]', space=smem, size = 0x4, offset = 0x4, fixed_abs, tag = 'smem constant byte address 0x4 - core index']
  #allocation1 [shape = 'u32[144,128]{1,0:T(1,128)}', space=vmem, size = 0x12000, scoped, tag = 'internal scratch']
  %s0 = inlined_call_operand.hbm [shape: s32[16,1], index: 0, kind: input, shape index: {}]
  %s1 = inlined_call_operand.hbm [shape: f32[16,1], index: 1, kind: input, shape index: {}]
  %s2 = inlined_call_operand.hbm [shape: f32[16,16], index: 2, kind: input, shape index: {}]
  %s3 = inlined_call_operand.hbm [shape: f32[128,32], index: 3, kind: input, shape index: {}]
  %s4 = inlined_call_operand.hbm [shape: f32[16,32], index: 4, kind: input, shape index: {}]
  %s5 = inlined_call_operand.hbm [shape: f32[2,32], index: 5, kind: input, shape index: {}]
  %s6 = inlined_call_operand.hbm [shape: f32[1,32], index: 6, kind: input, shape index: {}]
  %s7 = inlined_call_operand.hbm [shape: f32[1,32], index: 7, kind: input, shape index: {}]
  %s8 = inlined_call_operand.hbm [shape: f32[2,32,32], index: 8, kind: input, shape index: {}]
  %s9 = inlined_call_operand.hbm [shape: f32[2,1,32], index: 9, kind: input, shape index: {}]
  %s10 = inlined_call_operand.hbm [shape: f32[2,32,32], index: 10, kind: input, shape index: {}]
  %s11 = inlined_call_operand.hbm [shape: f32[2,1,32], index: 11, kind: input, shape index: {}]
  %s12 = inlined_call_operand.hbm [shape: f32[2,32,32], index: 12, kind: input, shape index: {}]
  %s13 = inlined_call_operand.hbm [shape: f32[2,1,32], index: 13, kind: input, shape index: {}]
  %s14 = inlined_call_operand.hbm [shape: f32[2,32,32], index: 14, kind: input, shape index: {}]
  %s15 = inlined_call_operand.hbm [shape: f32[2,1,32], index: 15, kind: input, shape index: {}]
  %s16 = inlined_call_operand.hbm [shape: f32[2,1,32], index: 16, kind: input, shape index: {}]
  %s17 = inlined_call_operand.hbm [shape: f32[2,1,32], index: 17, kind: input, shape index: {}]
  %s18 = inlined_call_operand.hbm [shape: f32[2,32,64], index: 18, kind: input, shape index: {}]
  %s19 = inlined_call_operand.hbm [shape: f32[2,1,64], index: 19, kind: input, shape index: {}]
  %s20 = inlined_call_operand.hbm [shape: f32[2,64,32], index: 20, kind: input, shape index: {}]
  %s21 = inlined_call_operand.hbm [shape: f32[2,1,32], index: 21, kind: input, shape index: {}]
  %s22 = inlined_call_operand.hbm [shape: f32[2,1,32], index: 22, kind: input, shape index: {}]
  %s23 = inlined_call_operand.hbm [shape: f32[2,1,32], index: 23, kind: input, shape index: {}]
  %s24 = inlined_call_operand.hbm [shape: f32[32,128], index: 24, kind: input, shape index: {}]
  %s25 = inlined_call_operand.hbm [shape: f32[1,128], index: 25, kind: input, shape index: {}]
  %s26 = inlined_call_operand.hbm [shape: f32[16,128], index: 26, kind: output, shape index: {}]
  %s27 = sld [smem:[#allocation0]]
  $region218: #{extractive_qa_forward.1} parent=0
    _
  %s29 = ssub.s32 1, %s27
  %s30 = scalar_select 0, %s29, %s27
  $region1: #{extractive_qa_forward.1} parent=0
    #allocation2 [shape = 'u8[8192]{0}', space=vmem, size = 0x2000, scoped, tag = 'input window, operand 0, single buffered']
    #allocation3 [shape = 's32[1]{0}', space=sflag, size = 0x4, scoped, tag = 'scoped memory for extractive_qa_forward.1']
    #allocation4 [shape = 's32[1]{0}', space=sflag, size = 0x4, scoped, tag = 'scoped memory for extractive_qa_forward.1']
    #allocation5 [shape = 'u8[8192]{0}', space=vmem, size = 0x2000, scoped, tag = 'input window, operand 1, single buffered']
    #allocation6 [shape = 's32[1]{0}', space=sflag, size = 0x4, scoped, tag = 'scoped memory for extractive_qa_forward.1']
    #allocation7 [shape = 'u8[8192]{0}', space=vmem, size = 0x2000, scoped, tag = 'input window, operand 2, single buffered']
    #allocation8 [shape = 'u8[65536]{0}', space=vmem, size = 0x10000, scoped, tag = 'input window, operand 3, single buffered']
    #allocation9 [shape = 's32[1]{0}', space=sflag, size = 0x4, scoped, tag = 'scoped memory for extractive_qa_forward.1']
    #allocation10 [shape = 'u8[8192]{0}', space=vmem, size = 0x2000, scoped, tag = 'input window, operand 4, single buffered']
    #allocation11 [shape = 'u8[1024]{0}', space=vmem, size = 0x400, scoped, tag = 'input window, operand 5, single buffered']
    #allocation12 [shape = 's32[1]{0}', space=sflag, size = 0x4, scoped, tag = 'scoped memory for extractive_qa_forward.1']
    #allocation13 [shape = 'u8[512]{0}', space=vmem, size = 0x400, scoped, tag = 'input window, operand 6, single buffered']
    #allocation14 [shape = 'u8[512]{0}', space=vmem, size = 0x400, scoped, tag = 'input window, operand 7, single buffered']
    #allocation15 [shape = 's32[1]{0}', space=sflag, size = 0x4, scoped, tag = 'scoped memory for extractive_qa_forward.1']
    #allocation16 [shape = 'u8[32768]{0}', space=vmem, size = 0x8000, scoped, tag = 'input window, operand 8, single buffered']
    #allocation17 [shape = 'u8[1024]{0}', space=vmem, size = 0x400, scoped, tag = 'input window, operand 9, single buffered']
    #allocation18 [shape = 's32[1]{0}', space=sflag, size = 0x4, scoped, tag = 'scoped memory for extractive_qa_forward.1']
    #allocation19 [shape = 'u8[32768]{0}', space=vmem, size = 0x8000, scoped, tag = 'input window, operand 10, single buffered']
    #allocation20 [shape = 'u8[1024]{0}', space=vmem, size = 0x400, scoped, tag = 'input window, operand 11, single buffered']
    #allocation21 [shape = 's32[1]{0}', space=sflag, size = 0x4, scoped, tag = 'scoped memory for extractive_qa_forward.1']
    #allocation22 [shape = 'u8[32768]{0}', space=vmem, size = 0x8000, scoped, tag = 'input window, operand 12, single buffered']
    #allocation23 [shape = 'u8[1024]{0}', space=vmem, size = 0x400, scoped, tag = 'input window, operand 13, single buffered']
    #allocation24 [shape = 's32[1]{0}', space=sflag, size = 0x4, scoped, tag = 'scoped memory for extractive_qa_forward.1']
    #allocation25 [shape = 'u8[32768]{0}', space=vmem, size = 0x8000, scoped, tag = 'input window, operand 14, single buffered']
    #allocation26 [shape = 'u8[1024]{0}', space=vmem, size = 0x400, scoped, tag = 'input window, operand 15, single buffered']
    #allocation27 [shape = 's32[1]{0}', space=sflag, size = 0x4, scoped, tag = 'scoped memory for extractive_qa_forward.1']
    #allocation28 [shape = 'u8[1024]{0}', space=vmem, size = 0x400, scoped, tag = 'input window, operand 16, single buffered']
    #allocation29 [shape = 'u8[1024]{0}', space=vmem, size = 0x400, scoped, tag = 'input window, operand 17, single buffered']
    #allocation30 [shape = 's32[1]{0}', space=sflag, size = 0x4, scoped, tag = 'scoped memory for extractive_qa_forward.1']
    #allocation31 [shape = 'u8[32768]{0}', space=vmem, size = 0x8000, scoped, tag = 'input window, operand 18, single buffered']
    #allocation32 [shape = 'u8[1024]{0}', space=vmem, size = 0x400, scoped, tag = 'input window, operand 19, single buffered']
    #allocation33 [shape = 's32[1]{0}', space=sflag, size = 0x4, scoped, tag = 'scoped memory for extractive_qa_forward.1']
    #allocation34 [shape = 'u8[65536]{0}', space=vmem, size = 0x10000, scoped, tag = 'input window, operand 20, single buffered']
    #allocation35 [shape = 'u8[1024]{0}', space=vmem, size = 0x400, scoped, tag = 'input window, operand 21, single buffered']
    #allocation36 [shape = 's32[1]{0}', space=sflag, size = 0x4, scoped, tag = 'scoped memory for extractive_qa_forward.1']
    #allocation37 [shape = 'u8[1024]{0}', space=vmem, size = 0x400, scoped, tag = 'input window, operand 22, single buffered']
    #allocation38 [shape = 'u8[1024]{0}', space=vmem, size = 0x400, scoped, tag = 'input window, operand 23, single buffered']
    #allocation39 [shape = 's32[1]{0}', space=sflag, size = 0x4, scoped, tag = 'scoped memory for extractive_qa_forward.1']
    #allocation40 [shape = 'u8[16384]{0}', space=vmem, size = 0x4000, scoped, tag = 'input window, operand 24, single buffered']
    #allocation41 [shape = 'u8[512]{0}', space=vmem, size = 0x400, scoped, tag = 'input window, operand 25, single buffered']
    #allocation42 [shape = 's32[1]{0}', space=sflag, size = 0x4, scoped, tag = 'scoped memory for extractive_qa_forward.1']
    #allocation43 [shape = 'u8[8192]{0}', space=vmem, size = 0x2000, scoped, tag = 'output window, operand 0, single buffered']
    %31 = vsyncpa [#allocation3], 0
    %32 = vsyncpa [#allocation6], 0
    %33 = vsyncpa [#allocation9], 0
    %34 = vsyncpa [#allocation12], 0
    %35 = vsyncpa [#allocation15], 0
    %36 = vsyncpa [#allocation18], 0
    %37 = vsyncpa [#allocation21], 0
    %38 = vsyncpa [#allocation24], 0
    %39 = vsyncpa [#allocation27], 0
    %40 = vsyncpa [#allocation30], 0
    %41 = vsyncpa [#allocation33], 0
    %42 = vsyncpa [#allocation36], 0
    %43 = vsyncpa [#allocation39], 0
    %44 = vsyncpa [#allocation42], 0
    %45 = vsyncpa [#allocation4], 0
    // Predicated region
    $region2: #{extractive_qa_forward.1} parent=1 // pred_check
      _
    $region3: #{extractive_qa_forward.1} parent=1 // pred_check_branch
      %47 = sbr.rel (0) target = $region5
    $region4: #{extractive_qa_forward.1} parent=1 // pred_region
      %s49 = ssub.s32 256, 256
      %50 = vsyncadd [#allocation3], %s49
      %s51 = sshll.u32 [#allocation2], 4
      %s52 = int_to_ptr.vmem [resolvable:$true] %s51
      %57 = dma.hbm_to_vmem [thread:$0]  %s0, 256, %s52, [#allocation3], 128, 128, 8
    $region5: #{extractive_qa_forward.1} parent=1 // pred_fallthru
      _
    // Predicated region
    $region6: #{extractive_qa_forward.1} parent=1 // pred_check
      _
    $region7: #{extractive_qa_forward.1} parent=1 // pred_check_branch
      %59 = sbr.rel (0) target = $region9
    $region8: #{extractive_qa_forward.1} parent=1 // pred_region
      %s61 = ssub.s32 256, 256
      %62 = vsyncadd [#allocation6], %s61
      %s63 = sshll.u32 [#allocation5], 4
      %s64 = int_to_ptr.vmem [resolvable:$true] %s63
      %69 = dma.hbm_to_vmem [thread:$0]  %s1, 256, %s64, [#allocation6], 128, 128, 8
    $region9: #{extractive_qa_forward.1} parent=1 // pred_fallthru
      _
    // Predicated region
    $region10: #{extractive_qa_forward.1} parent=1 // pred_check
      _
    $region11: #{extractive_qa_forward.1} parent=1 // pred_check_branch
      %71 = sbr.rel (0) target = $region13
    $region12: #{extractive_qa_forward.1} parent=1 // pred_region
      %s73 = ssub.s32 256, 256
      %74 = vsyncadd [#allocation6], %s73
      %s75 = sshll.u32 [#allocation7], 4
      %s76 = int_to_ptr.vmem [resolvable:$true] %s75
      %81 = dma.hbm_to_vmem [thread:$0]  %s2, 256, %s76, [#allocation6], 128, 128, 8
    $region13: #{extractive_qa_forward.1} parent=1 // pred_fallthru
      _
    // Predicated region
    $region14: #{extractive_qa_forward.1} parent=1 // pred_check
      _
    $region15: #{extractive_qa_forward.1} parent=1 // pred_check_branch
      %83 = sbr.rel (0) target = $region17
    $region16: #{extractive_qa_forward.1} parent=1 // pred_region
      %s85 = ssub.s32 2048, 2048
      %86 = vsyncadd [#allocation9], %s85
      %s87 = sshll.u32 [#allocation8], 4
      %s88 = int_to_ptr.vmem [resolvable:$true] %s87
      %93 = dma.hbm_to_vmem [thread:$0]  %s3, 2048, %s88, [#allocation9], 128, 128, 8
    $region17: #{extractive_qa_forward.1} parent=1 // pred_fallthru
      _
    // Predicated region
    $region18: #{extractive_qa_forward.1} parent=1 // pred_check
      _
    $region19: #{extractive_qa_forward.1} parent=1 // pred_check_branch
      %95 = sbr.rel (0) target = $region21
    $region20: #{extractive_qa_forward.1} parent=1 // pred_region
      %s97 = ssub.s32 256, 256
      %98 = vsyncadd [#allocation9], %s97
      %s99 = sshll.u32 [#allocation10], 4
      %s100 = int_to_ptr.vmem [resolvable:$true] %s99
      %105 = dma.hbm_to_vmem [thread:$0]  %s4, 256, %s100, [#allocation9], 128, 128, 8
    $region21: #{extractive_qa_forward.1} parent=1 // pred_fallthru
      _
    // Predicated region
    $region22: #{extractive_qa_forward.1} parent=1 // pred_check
      _
    $region23: #{extractive_qa_forward.1} parent=1 // pred_check_branch
      %107 = sbr.rel (0) target = $region25
    $region24: #{extractive_qa_forward.1} parent=1 // pred_region
      %s109 = ssub.s32 32, 32
      %110 = vsyncadd [#allocation12], %s109
      %s112 = sshll.u32 [#allocation11], 4
      %s113 = int_to_ptr.vmem [resolvable:$true] %s112
      %115 = dma.hbm_to_vmem [thread:$0]  %s5, 32, %s113, [#allocation12]
    $region25: #{extractive_qa_forward.1} parent=1 // pred_fallthru
      _
    // Predicated region
    $region26: #{extractive_qa_forward.1} parent=1 // pred_check
      _
    $region27: #{extractive_qa_forward.1} parent=1 // pred_check_branch
      %117 = sbr.rel (0) target = $region29
    $region28: #{extractive_qa_forward.1} parent=1 // pred_region
      %s119 = ssub.s32 16, 16
      %120 = vsyncadd [#allocation12], %s119
      %s122 = sshll.u32 [#allocation13], 4
      %s123 = int_to_ptr.vmem [resolvable:$true] %s122
      %125 = dma.hbm_to_vmem [thread:$0]  %s6, 16, %s123, [#allocation12]
    $region29: #{extractive_qa_forward.1} parent=1 // pred_fallthru
      _
    // Predicated region
    $region30: #{extractive_qa_forward.1} parent=1 // pred_check
      _
    $region31: #{extractive_qa_forward.1} parent=1 // pred_check_branch
      %127 = sbr.rel (0) target = $region33
    $region32: #{extractive_qa_forward.1} parent=1 // pred_region
      %s129 = ssub.s32 16, 16
      %130 = vsyncadd [#allocation15], %s129
      %s132 = sshll.u32 [#allocation14], 4
      %s133 = int_to_ptr.vmem [resolvable:$true] %s132
      %135 = dma.hbm_to_vmem [thread:$0]  %s7, 16, %s133, [#allocation15]
    $region33: #{extractive_qa_forward.1} parent=1 // pred_fallthru
      _
    // Predicated region
    $region34: #{extractive_qa_forward.1} parent=1 // pred_check
      _
    $region35: #{extractive_qa_forward.1} parent=1 // pred_check_branch
      %137 = sbr.rel (0) target = $region37
    $region36: #{extractive_qa_forward.1} parent=1 // pred_region
      %s139 = ssub.s32 1024, 1024
      %140 = vsyncadd [#allocation15], %s139
      %s141 = sshll.u32 [#allocation16], 4
      %s142 = int_to_ptr.vmem [resolvable:$true] %s141
      %147 = dma.hbm_to_vmem [thread:$0]  %s8, 1024, %s142, [#allocation15], 128, 128, 8
    $region37: #{extractive_qa_forward.1} parent=1 // pred_fallthru
      _
    // Predicated region
    $region38: #{extractive_qa_forward.1} parent=1 // pred_check
      _
    $region39: #{extractive_qa_forward.1} parent=1 // pred_check_branch
      %149 = sbr.rel (0) target = $region41
    $region40: #{extractive_qa_forward.1} parent=1 // pred_region
      %s151 = ssub.s32 32, 32
      %152 = vsyncadd [#allocation18], %s151
      %s153 = sshll.u32 [#allocation17], 4
      %s154 = int_to_ptr.vmem [resolvable:$true] %s153
      %159 = dma.hbm_to_vmem [thread:$0]  %s9, 32, %s154, [#allocation18], 16, 16, 1
    $region41: #{extractive_qa_forward.1} parent=1 // pred_fallthru
      _
    // Predicated region
    $region42: #{extractive_qa_forward.1} parent=1 // pred_check
      _
    $region43: #{extractive_qa_forward.1} parent=1 // pred_check_branch
      %161 = sbr.rel (0) target = $region45
    $region44: #{extractive_qa_forward.1} parent=1 // pred_region
      %s163 = ssub.s32 1024, 1024
      %164 = vsyncadd [#allocation18], %s163
      %s165 = sshll.u32 [#allocation19], 4
      %s166 = int_to_ptr.vmem [resolvable:$true] %s165
      %171 = dma.hbm_to_vmem [thread:$0]  %s10, 1024, %s166, [#allocation18], 128, 128, 8
    $region45: #{extractive_qa_forward.1} parent=1 // pred_fallthru
      _
    // Predicated region
    $region46: #{extractive_qa_forward.1} parent=1 // pred_check
      _
    $region47: #{extractive_qa_forward.1} parent=1 // pred_check_branch
      %173 = sbr.rel (0) target = $region49
    $region48: #{extractive_qa_forward.1} parent=1 // pred_region
      %s175 = ssub.s32 32, 32
      %176 = vsyncadd [#allocation21], %s175
      %s177 = sshll.u32 [#allocation20], 4
      %s178 = int_to_ptr.vmem [resolvable:$true] %s177
      %183 = dma.hbm_to_vmem [thread:$0]  %s11, 32, %s178, [#allocation21], 16, 16, 1
    $region49: #{extractive_qa_forward.1} parent=1 // pred_fallthru
      _
    // Predicated region
    $region50: #{extractive_qa_forward.1} parent=1 // pred_check
      _
    $region51: #{extractive_qa_forward.1} parent=1 // pred_check_branch
      %185 = sbr.rel (0) target = $region53
    $region52: #{extractive_qa_forward.1} parent=1 // pred_region
      %s187 = ssub.s32 1024, 1024
      %188 = vsyncadd [#allocation21], %s187
      %s189 = sshll.u32 [#allocation22], 4
      %s190 = int_to_ptr.vmem [resolvable:$true] %s189
      %195 = dma.hbm_to_vmem [thread:$0]  %s12, 1024, %s190, [#allocation21], 128, 128, 8
    $region53: #{extractive_qa_forward.1} parent=1 // pred_fallthru
      _
    // Predicated region
    $region54: #{extractive_qa_forward.1} parent=1 // pred_check
      _
    $region55: #{extractive_qa_forward.1} parent=1 // pred_check_branch
      %197 = sbr.rel (0) target = $region57
    $region56: #{extractive_qa_forward.1} parent=1 // pred_region
      %s199 = ssub.s32 32, 32
      %200 = vsyncadd [#allocation24], %s199
      %s201 = sshll.u32 [#allocation23], 4
      %s202 = int_to_ptr.vmem [resolvable:$true] %s201
      %207 = dma.hbm_to_vmem [thread:$0]  %s13, 32, %s202, [#allocation24], 16, 16, 1
    $region57: #{extractive_qa_forward.1} parent=1 // pred_fallthru
      _
    // Predicated region
    $region58: #{extractive_qa_forward.1} parent=1 // pred_check
      _
    $region59: #{extractive_qa_forward.1} parent=1 // pred_check_branch
      %209 = sbr.rel (0) target = $region61
    $region60: #{extractive_qa_forward.1} parent=1 // pred_region
      %s211 = ssub.s32 1024, 1024
      %212 = vsyncadd [#allocation24], %s211
      %s213 = sshll.u32 [#allocation25], 4
      %s214 = int_to_ptr.vmem [resolvable:$true] %s213
      %219 = dma.hbm_to_vmem [thread:$0]  %s14, 1024, %s214, [#allocation24], 128, 128, 8
    $region61: #{extractive_qa_forward.1} parent=1 // pred_fallthru
      _
    // Predicated region
    $region62: #{extractive_qa_forward.1} parent=1 // pred_check
      _
    $region63: #{extractive_qa_forward.1} parent=1 // pred_check_branch
      %221 = sbr.rel (0) target = $region65
    $region64: #{extractive_qa_forward.1} parent=1 // pred_region
      %s223 = ssub.s32 32, 32
      %224 = vsyncadd [#allocation27], %s223
      %s225 = sshll.u32 [#allocation26], 4
      %s226 = int_to_ptr.vmem [resolvable:$true] %s225
      %231 = dma.hbm_to_vmem [thread:$0]  %s15, 32, %s226, [#allocation27], 16, 16, 1
    $region65: #{extractive_qa_forward.1} parent=1 // pred_fallthru
      _
    // Predicated region
    $region66: #{extractive_qa_forward.1} parent=1 // pred_check
      _
    $region67: #{extractive_qa_forward.1} parent=1 // pred_check_branch
      %233 = sbr.rel (0) target = $region69
    $region68: #{extractive_qa_forward.1} parent=1 // pred_region
      %s235 = ssub.s32 32, 32
      %236 = vsyncadd [#allocation27], %s235
      %s237 = sshll.u32 [#allocation28], 4
      %s238 = int_to_ptr.vmem [resolvable:$true] %s237
      %243 = dma.hbm_to_vmem [thread:$0]  %s16, 32, %s238, [#allocation27], 16, 16, 1
    $region69: #{extractive_qa_forward.1} parent=1 // pred_fallthru
      _
    // Predicated region
    $region70: #{extractive_qa_forward.1} parent=1 // pred_check
      _
    $region71: #{extractive_qa_forward.1} parent=1 // pred_check_branch
      %245 = sbr.rel (0) target = $region73
    $region72: #{extractive_qa_forward.1} parent=1 // pred_region
      %s247 = ssub.s32 32, 32
      %248 = vsyncadd [#allocation30], %s247
      %s249 = sshll.u32 [#allocation29], 4
      %s250 = int_to_ptr.vmem [resolvable:$true] %s249
      %255 = dma.hbm_to_vmem [thread:$0]  %s17, 32, %s250, [#allocation30], 16, 16, 1
    $region73: #{extractive_qa_forward.1} parent=1 // pred_fallthru
      _
    // Predicated region
    $region74: #{extractive_qa_forward.1} parent=1 // pred_check
      _
    $region75: #{extractive_qa_forward.1} parent=1 // pred_check_branch
      %257 = sbr.rel (0) target = $region77
    $region76: #{extractive_qa_forward.1} parent=1 // pred_region
      %s259 = ssub.s32 1024, 1024
      %260 = vsyncadd [#allocation30], %s259
      %s261 = sshll.u32 [#allocation31], 4
      %s262 = int_to_ptr.vmem [resolvable:$true] %s261
      %267 = dma.hbm_to_vmem [thread:$0]  %s18, 1024, %s262, [#allocation30], 128, 128, 8
    $region77: #{extractive_qa_forward.1} parent=1 // pred_fallthru
      _
    // Predicated region
    $region78: #{extractive_qa_forward.1} parent=1 // pred_check
      _
    $region79: #{extractive_qa_forward.1} parent=1 // pred_check_branch
      %269 = sbr.rel (0) target = $region81
    $region80: #{extractive_qa_forward.1} parent=1 // pred_region
      %s271 = ssub.s32 32, 32
      %272 = vsyncadd [#allocation33], %s271
      %s273 = sshll.u32 [#allocation32], 4
      %s274 = int_to_ptr.vmem [resolvable:$true] %s273
      %279 = dma.hbm_to_vmem [thread:$0]  %s19, 32, %s274, [#allocation33], 16, 16, 1
    $region81: #{extractive_qa_forward.1} parent=1 // pred_fallthru
      _
    // Predicated region
    $region82: #{extractive_qa_forward.1} parent=1 // pred_check
      _
    $region83: #{extractive_qa_forward.1} parent=1 // pred_check_branch
      %281 = sbr.rel (0) target = $region85
    $region84: #{extractive_qa_forward.1} parent=1 // pred_region
      %s283 = ssub.s32 2048, 2048
      %284 = vsyncadd [#allocation33], %s283
      %s285 = sshll.u32 [#allocation34], 4
      %s286 = int_to_ptr.vmem [resolvable:$true] %s285
      %291 = dma.hbm_to_vmem [thread:$0]  %s20, 2048, %s286, [#allocation33], 128, 128, 8
    $region85: #{extractive_qa_forward.1} parent=1 // pred_fallthru
      _
    // Predicated region
    $region86: #{extractive_qa_forward.1} parent=1 // pred_check
      _
    $region87: #{extractive_qa_forward.1} parent=1 // pred_check_branch
      %293 = sbr.rel (0) target = $region89
    $region88: #{extractive_qa_forward.1} parent=1 // pred_region
      %s295 = ssub.s32 32, 32
      %296 = vsyncadd [#allocation36], %s295
      %s297 = sshll.u32 [#allocation35], 4
      %s298 = int_to_ptr.vmem [resolvable:$true] %s297
      %303 = dma.hbm_to_vmem [thread:$0]  %s21, 32, %s298, [#allocation36], 16, 16, 1
    $region89: #{extractive_qa_forward.1} parent=1 // pred_fallthru
      _
    // Predicated region
    $region90: #{extractive_qa_forward.1} parent=1 // pred_check
      _
    $region91: #{extractive_qa_forward.1} parent=1 // pred_check_branch
      %305 = sbr.rel (0) target = $region93
    $region92: #{extractive_qa_forward.1} parent=1 // pred_region
      %s307 = ssub.s32 32, 32
      %308 = vsyncadd [#allocation36], %s307
      %s309 = sshll.u32 [#allocation37], 4
      %s310 = int_to_ptr.vmem [resolvable:$true] %s309
      %315 = dma.hbm_to_vmem [thread:$0]  %s22, 32, %s310, [#allocation36], 16, 16, 1
    $region93: #{extractive_qa_forward.1} parent=1 // pred_fallthru
      _
    // Predicated region
    $region94: #{extractive_qa_forward.1} parent=1 // pred_check
      _
    $region95: #{extractive_qa_forward.1} parent=1 // pred_check_branch
      %317 = sbr.rel (0) target = $region97
    $region96: #{extractive_qa_forward.1} parent=1 // pred_region
      %s319 = ssub.s32 32, 32
      %320 = vsyncadd [#allocation39], %s319
      %s321 = sshll.u32 [#allocation38], 4
      %s322 = int_to_ptr.vmem [resolvable:$true] %s321
      %327 = dma.hbm_to_vmem [thread:$0]  %s23, 32, %s322, [#allocation39], 16, 16, 1
    $region97: #{extractive_qa_forward.1} parent=1 // pred_fallthru
      _
    // Predicated region
    $region98: #{extractive_qa_forward.1} parent=1 // pred_check
      _
    $region99: #{extractive_qa_forward.1} parent=1 // pred_check_branch
      %329 = sbr.rel (0) target = $region101
    $region100: #{extractive_qa_forward.1} parent=1 // pred_region
      %s331 = ssub.s32 512, 512
      %332 = vsyncadd [#allocation39], %s331
      %s333 = sshll.u32 [#allocation40], 4
      %s334 = int_to_ptr.vmem [resolvable:$true] %s333
      %339 = dma.hbm_to_vmem [thread:$0]  %s24, 512, %s334, [#allocation39], 128, 128, 8
    $region101: #{extractive_qa_forward.1} parent=1 // pred_fallthru
      _
    // Predicated region
    $region102: #{extractive_qa_forward.1} parent=1 // pred_check
      _
    $region103: #{extractive_qa_forward.1} parent=1 // pred_check_branch
      %341 = sbr.rel (0) target = $region105
    $region104: #{extractive_qa_forward.1} parent=1 // pred_region
      %s343 = ssub.s32 16, 16
      %344 = vsyncadd [#allocation42], %s343
      %s346 = sshll.u32 [#allocation41], 4
      %s347 = int_to_ptr.vmem [resolvable:$true] %s346
      %349 = dma.hbm_to_vmem [thread:$0]  %s25, 16, %s347, [#allocation42]
    $region105: #{extractive_qa_forward.1} parent=1 // pred_fallthru
      _
    // Predicated region
    $region106: #{extractive_qa_forward.1} parent=1 // pred_check
      _
    $region107: #{extractive_qa_forward.1} parent=1 // pred_check_branch
      %351 = sbr.rel (0) target = $region109
    $region108: #{extractive_qa_forward.1} parent=1 // pred_region
      %352 = dma.done [#allocation3], 256
    $region109: #{extractive_qa_forward.1} parent=1 // pred_fallthru
      _
    // Predicated region
    $region110: #{extractive_qa_forward.1} parent=1 // pred_check
      _
    $region111: #{extractive_qa_forward.1} parent=1 // pred_check_branch
      %354 = sbr.rel (0) target = $region113
    $region112: #{extractive_qa_forward.1} parent=1 // pred_region
      %355 = dma.done [#allocation6], 256
    $region113: #{extractive_qa_forward.1} parent=1 // pred_fallthru
      _
    // Predicated region
    $region114: #{extractive_qa_forward.1} parent=1 // pred_check
      _
    $region115: #{extractive_qa_forward.1} parent=1 // pred_check_branch
      %357 = sbr.rel (0) target = $region117
    $region116: #{extractive_qa_forward.1} parent=1 // pred_region
      %358 = dma.done [#allocation6], 256
    $region117: #{extractive_qa_forward.1} parent=1 // pred_fallthru
      _
    // Predicated region
    $region118: #{extractive_qa_forward.1} parent=1 // pred_check
      _
    $region119: #{extractive_qa_forward.1} parent=1 // pred_check_branch
      %360 = sbr.rel (0) target = $region121
    $region120: #{extractive_qa_forward.1} parent=1 // pred_region
      %361 = dma.done [#allocation9], 2048
    $region121: #{extractive_qa_forward.1} parent=1 // pred_fallthru
      _
    // Predicated region
    $region122: #{extractive_qa_forward.1} parent=1 // pred_check
      _
    $region123: #{extractive_qa_forward.1} parent=1 // pred_check_branch
      %363 = sbr.rel (0) target = $region125
    $region124: #{extractive_qa_forward.1} parent=1 // pred_region
      %364 = dma.done [#allocation9], 256
    $region125: #{extractive_qa_forward.1} parent=1 // pred_fallthru
      _
    // Predicated region
    $region126: #{extractive_qa_forward.1} parent=1 // pred_check
      _
    $region127: #{extractive_qa_forward.1} parent=1 // pred_check_branch
      %366 = sbr.rel (0) target = $region129
    $region128: #{extractive_qa_forward.1} parent=1 // pred_region
      %367 = dma.done [#allocation12], 32
    $region129: #{extractive_qa_forward.1} parent=1 // pred_fallthru
      _
    // Predicated region
    $region130: #{extractive_qa_forward.1} parent=1 // pred_check
      _
    $region131: #{extractive_qa_forward.1} parent=1 // pred_check_branch
      %369 = sbr.rel (0) target = $region133
    $region132: #{extractive_qa_forward.1} parent=1 // pred_region
      %370 = dma.done [#allocation12], 16
    $region133: #{extractive_qa_forward.1} parent=1 // pred_fallthru
      _
    // Predicated region
    $region134: #{extractive_qa_forward.1} parent=1 // pred_check
      _
    $region135: #{extractive_qa_forward.1} parent=1 // pred_check_branch
      %372 = sbr.rel (0) target = $region137
    $region136: #{extractive_qa_forward.1} parent=1 // pred_region
      %373 = dma.done [#allocation15], 16
    $region137: #{extractive_qa_forward.1} parent=1 // pred_fallthru
      _
    // Predicated region
    $region138: #{extractive_qa_forward.1} parent=1 // pred_check
      _
    $region139: #{extractive_qa_forward.1} parent=1 // pred_check_branch
      %375 = sbr.rel (0) target = $region141
    $region140: #{extractive_qa_forward.1} parent=1 // pred_region
      %376 = dma.done [#allocation15], 1024
    $region141: #{extractive_qa_forward.1} parent=1 // pred_fallthru
      _
    // Predicated region
    $region142: #{extractive_qa_forward.1} parent=1 // pred_check
      _
    $region143: #{extractive_qa_forward.1} parent=1 // pred_check_branch
      %378 = sbr.rel (0) target = $region145
    $region144: #{extractive_qa_forward.1} parent=1 // pred_region
      %379 = dma.done [#allocation18], 32
    $region145: #{extractive_qa_forward.1} parent=1 // pred_fallthru
      _
    // Predicated region
    $region146: #{extractive_qa_forward.1} parent=1 // pred_check
      _
    $region147: #{extractive_qa_forward.1} parent=1 // pred_check_branch
      %381 = sbr.rel (0) target = $region149
    $region148: #{extractive_qa_forward.1} parent=1 // pred_region
      %382 = dma.done [#allocation18], 1024
    $region149: #{extractive_qa_forward.1} parent=1 // pred_fallthru
      _
    // Predicated region
    $region150: #{extractive_qa_forward.1} parent=1 // pred_check
      _
    $region151: #{extractive_qa_forward.1} parent=1 // pred_check_branch
      %384 = sbr.rel (0) target = $region153
    $region152: #{extractive_qa_forward.1} parent=1 // pred_region
      %385 = dma.done [#allocation21], 32
    $region153: #{extractive_qa_forward.1} parent=1 // pred_fallthru
      _
    // Predicated region
    $region154: #{extractive_qa_forward.1} parent=1 // pred_check
      _
    $region155: #{extractive_qa_forward.1} parent=1 // pred_check_branch
      %387 = sbr.rel (0) target = $region157
    $region156: #{extractive_qa_forward.1} parent=1 // pred_region
      %388 = dma.done [#allocation21], 1024
    $region157: #{extractive_qa_forward.1} parent=1 // pred_fallthru
      _
    // Predicated region
    $region158: #{extractive_qa_forward.1} parent=1 // pred_check
      _
    $region159: #{extractive_qa_forward.1} parent=1 // pred_check_branch
      %390 = sbr.rel (0) target = $region161
    $region160: #{extractive_qa_forward.1} parent=1 // pred_region
      %391 = dma.done [#allocation24], 32
    $region161: #{extractive_qa_forward.1} parent=1 // pred_fallthru
      _
    // Predicated region
    $region162: #{extractive_qa_forward.1} parent=1 // pred_check
      _
    $region163: #{extractive_qa_forward.1} parent=1 // pred_check_branch
      %393 = sbr.rel (0) target = $region165
    $region164: #{extractive_qa_forward.1} parent=1 // pred_region
      %394 = dma.done [#allocation24], 1024
    $region165: #{extractive_qa_forward.1} parent=1 // pred_fallthru
      _
    // Predicated region
    $region166: #{extractive_qa_forward.1} parent=1 // pred_check
      _
    $region167: #{extractive_qa_forward.1} parent=1 // pred_check_branch
      %396 = sbr.rel (0) target = $region169
    $region168: #{extractive_qa_forward.1} parent=1 // pred_region
      %397 = dma.done [#allocation27], 32
    $region169: #{extractive_qa_forward.1} parent=1 // pred_fallthru
      _
    // Predicated region
    $region170: #{extractive_qa_forward.1} parent=1 // pred_check
      _
    $region171: #{extractive_qa_forward.1} parent=1 // pred_check_branch
      %399 = sbr.rel (0) target = $region173
    $region172: #{extractive_qa_forward.1} parent=1 // pred_region
      %400 = dma.done [#allocation27], 32
    $region173: #{extractive_qa_forward.1} parent=1 // pred_fallthru
      _
    // Predicated region
    $region174: #{extractive_qa_forward.1} parent=1 // pred_check
      _
    $region175: #{extractive_qa_forward.1} parent=1 // pred_check_branch
      %402 = sbr.rel (0) target = $region177
    $region176: #{extractive_qa_forward.1} parent=1 // pred_region
      %403 = dma.done [#allocation30], 32
    $region177: #{extractive_qa_forward.1} parent=1 // pred_fallthru
      _
    // Predicated region
    $region178: #{extractive_qa_forward.1} parent=1 // pred_check
      _
    $region179: #{extractive_qa_forward.1} parent=1 // pred_check_branch
      %405 = sbr.rel (0) target = $region181
    $region180: #{extractive_qa_forward.1} parent=1 // pred_region
      %406 = dma.done [#allocation30], 1024
    $region181: #{extractive_qa_forward.1} parent=1 // pred_fallthru
      _
    // Predicated region
    $region182: #{extractive_qa_forward.1} parent=1 // pred_check
      _
    $region183: #{extractive_qa_forward.1} parent=1 // pred_check_branch
      %408 = sbr.rel (0) target = $region185
    $region184: #{extractive_qa_forward.1} parent=1 // pred_region
      %409 = dma.done [#allocation33], 32
    $region185: #{extractive_qa_forward.1} parent=1 // pred_fallthru
      _
    // Predicated region
    $region186: #{extractive_qa_forward.1} parent=1 // pred_check
      _
    $region187: #{extractive_qa_forward.1} parent=1 // pred_check_branch
      %411 = sbr.rel (0) target = $region189
    $region188: #{extractive_qa_forward.1} parent=1 // pred_region
      %412 = dma.done [#allocation33], 2048
    $region189: #{extractive_qa_forward.1} parent=1 // pred_fallthru
      _
    // Predicated region
    $region190: #{extractive_qa_forward.1} parent=1 // pred_check
      _
    $region191: #{extractive_qa_forward.1} parent=1 // pred_check_branch
      %414 = sbr.rel (0) target = $region193
    $region192: #{extractive_qa_forward.1} parent=1 // pred_region
      %415 = dma.done [#allocation36], 32
    $region193: #{extractive_qa_forward.1} parent=1 // pred_fallthru
      _
    // Predicated region
    $region194: #{extractive_qa_forward.1} parent=1 // pred_check
      _
    $region195: #{extractive_qa_forward.1} parent=1 // pred_check_branch
      %417 = sbr.rel (0) target = $region197
    $region196: #{extractive_qa_forward.1} parent=1 // pred_region
      %418 = dma.done [#allocation36], 32
    $region197: #{extractive_qa_forward.1} parent=1 // pred_fallthru
      _
    // Predicated region
    $region198: #{extractive_qa_forward.1} parent=1 // pred_check
      _
    $region199: #{extractive_qa_forward.1} parent=1 // pred_check_branch
      %420 = sbr.rel (0) target = $region201
    $region200: #{extractive_qa_forward.1} parent=1 // pred_region
      %421 = dma.done [#allocation39], 32
    $region201: #{extractive_qa_forward.1} parent=1 // pred_fallthru
      _
    // Predicated region
    $region202: #{extractive_qa_forward.1} parent=1 // pred_check
      _
    $region203: #{extractive_qa_forward.1} parent=1 // pred_check_branch
      %423 = sbr.rel (0) target = $region205
    $region204: #{extractive_qa_forward.1} parent=1 // pred_region
      %424 = dma.done [#allocation39], 512
    $region205: #{extractive_qa_forward.1} parent=1 // pred_fallthru
      _
    // Predicated region
    $region206: #{extractive_qa_forward.1} parent=1 // pred_check
      _
    $region207: #{extractive_qa_forward.1} parent=1 // pred_check_branch
      %426 = sbr.rel (0) target = $region209
    $region208: #{extractive_qa_forward.1} parent=1 // pred_region
      %427 = dma.done [#allocation42], 16
    $region209: #{extractive_qa_forward.1} parent=1 // pred_fallthru
      _
    %v428 = vld [vmem:[#allocation2] sm:$0xff]
    %v429 = vld [vmem:[#allocation2 + $0x8] sm:$0xff]
    %v430 = vlaneseq
    %v431 = vand.u32 %v430, 127
    %432 = vset.pattern.permute.xlu0 0
    %433 = vperm.xlu0 %432, %v428
    %v434 = vpop.permute.xlu0 %433
    %435 = vset.pattern.permute.xlu0 0
    %436 = vperm.xlu0 %435, %v429
    %v437 = vpop.permute.xlu0 %436
    %vm438 = vcmp.eq.s32.totalorder %v431, %v434
    %vm439 = vcmp.eq.s32.totalorder %v431, %v437
    %v440 = vsel %vm438, 1, 0
    %v441 = vsel %vm439, 1, 0
    %v442 = vcvt.s32.f32 %v440
    %v443 = vcvt.s32.f32 %v441
    %v444 = vld [vmem:[#allocation8] sm:$0xff]
    %v445 = vld [vmem:[#allocation8 + $0x8] sm:$0xff]
    %v446 = vld [vmem:[#allocation8 + $0x10] sm:$0xff]
    %v447 = vld [vmem:[#allocation8 + $0x18] sm:$0xff]
    %v448 = vld [vmem:[#allocation8 + $0x20] sm:$0xff]
    %v449 = vld [vmem:[#allocation8 + $0x28] sm:$0xff]
    %v450 = vld [vmem:[#allocation8 + $0x30] sm:$0xff]
    %v451 = vld [vmem:[#allocation8 + $0x38] sm:$0xff]
    %v452 = vld [vmem:[#allocation8 + $0x40] sm:$0xff]
    %v453 = vld [vmem:[#allocation8 + $0x48] sm:$0xff]
    %v454 = vld [vmem:[#allocation8 + $0x50] sm:$0xff]
    %v455 = vld [vmem:[#allocation8 + $0x58] sm:$0xff]
    %v456 = vld [vmem:[#allocation8 + $0x60] sm:$0xff]
    %v457 = vld [vmem:[#allocation8 + $0x68] sm:$0xff]
    %v458 = vld [vmem:[#allocation8 + $0x70] sm:$0xff]
    %v459 = vld [vmem:[#allocation8 + $0x78] sm:$0xff]
    %v460 = vld [vmem:[#allocation5] sm:$0xff]
    %v461 = vld [vmem:[#allocation5 + $0x8] sm:$0xff]
    %v462 = vld [vmem:[#allocation11] sm:$0x1]
    %v463 = vsub.f32 1.0, %v460
    %v464 = vsub.f32 1.0, %v461
    %v465 = vlaneseq
    %v466 = vshrl.u32 %v465, 7
    %v467 = vsub.s32 0, %v466
    %v468 = vrot.slane %v462, %v467
    %470 = vset.pattern.permute.xlu0 0
    %471 = vperm.xlu0 %470, %v463
    %v472 = vpop.permute.xlu0 %471
    %475 = vset.pattern.permute.xlu0 0
    %476 = vperm.xlu0 %475, %v464
    %v477 = vpop.permute.xlu0 %476
    %v479 = vmul.f32 %v468, %v472
    %v480 = vmul.f32 %v468, %v477
    %v481 = vld [vmem:[#allocation11 + $0x1] sm:$0x1]
    %v482 = vlaneseq
    %v483 = vshrl.u32 %v482, 7
    %v484 = vsub.s32 0, %v483
    %v485 = vrot.slane %v481, %v484
    %487 = vset.pattern.permute.xlu0 0
    %488 = vperm.xlu0 %487, %v460
    %v489 = vpop.permute.xlu0 %488
    %492 = vset.pattern.permute.xlu0 0
    %493 = vperm.xlu0 %492, %v461
    %v494 = vpop.permute.xlu0 %493
    %v496 = vmul.f32 %v485, %v489
    %v497 = vmul.f32 %v485, %v494
    %v498 = vadd.f32 %v479, %v496
    %v499 = vadd.f32 %v480, %v497
    %v500 = vld [vmem:[#allocation10] sm:$0xff]
    %v501 = vld [vmem:[#allocation10 + $0x8] sm:$0xff]
    %502 = vmatprep.subr.mxu0 0.0
    %503 = vmatpush1.msra.mxu0 %v444
    %504 = vmatprep.subr.mxu0 0.0
    %505 = vmatpush1.msra.mxu0 %v445
    %506 = vmatprep.subr.mxu0 0.0
    %507 = vmatpush1.msra.mxu0 %v446
    %508 = vmatprep.subr.mxu0 0.0
    %509 = vmatpush1.msra.mxu0 %v447
    %510 = vmatprep.subr.mxu0 0.0
    %511 = vmatpush1.msra.mxu0 %v448
    %512 = vmatprep.subr.mxu0 0.0
    %513 = vmatpush1.msra.mxu0 %v449
    %514 = vmatprep.subr.mxu0 0.0
    %515 = vmatpush1.msra.mxu0 %v450
    %516 = vmatprep.subr.mxu0 0.0
    %517 = vmatpush1.msra.mxu0 %v451
    %518 = vmatprep.subr.mxu0 0.0
    %519 = vmatpush1.msra.mxu0 %v452
    %520 = vmatprep.subr.mxu0 0.0
    %521 = vmatpush1.msra.mxu0 %v453
    %522 = vmatprep.subr.mxu0 0.0
    %523 = vmatpush1.msra.mxu0 %v454
    %524 = vmatprep.subr.mxu0 0.0
    %525 = vmatpush1.msra.mxu0 %v455
    %526 = vmatprep.subr.mxu0 0.0
    %527 = vmatpush1.msra.mxu0 %v456
    %528 = vmatprep.subr.mxu0 0.0
    %529 = vmatpush1.msra.mxu0 %v457
    %530 = vmatprep.subr.mxu0 0.0
    %531 = vmatpush1.msra.mxu0 %v458
    %532 = vmatprep.subr.mxu0 0.0
    %533 = vmatpush1.msra.mxu0 %v459
    %534 = vmatprep.subr.mxu0 0.0
    %535 = vmatpush1.msra.mxu0 0.0
    %536 = vmatprep.subr.mxu0 0.0
    %537 = vmatpush1.msra.mxu0 0.0
    %538 = vmatprep.subr.mxu0 0.0
    %539 = vmatpush1.msra.mxu0 0.0
    %540 = vmatprep.subr.mxu0 0.0
    %541 = vmatpush1.msra.mxu0 0.0
    %542 = vmatprep.subr.mxu0 0.0
    %543 = vmatpush1.msra.mxu0 0.0
    %544 = vmatprep.subr.mxu0 0.0
    %545 = vmatpush1.msra.mxu0 0.0
    %546 = vmatprep.subr.mxu0 0.0
    %547 = vmatpush1.msra.mxu0 0.0
    %548 = vmatprep.subr.mxu0 0.0
    %549 = vmatpush1.msra.mxu0 0.0
    %550 = vmatprep.subr.mxu0 0.0
    %551 = vmatpush1.msra.mxu0 0.0
    %552 = vmatprep.subr.mxu0 0.0
    %553 = vmatpush1.msra.mxu0 0.0
    %554 = vmatprep.subr.mxu0 0.0
    %555 = vmatpush1.msra.mxu0 0.0
    %556 = vmatprep.subr.mxu0 0.0
    %557 = vmatpush1.msra.mxu0 0.0
    %558 = vmatprep.subr.mxu0 0.0
    %559 = vmatpush1.msra.mxu0 0.0
    %560 = vmatprep.subr.mxu0 0.0
    %561 = vmatpush1.msra.mxu0 0.0
    %562 = vmatprep.subr.mxu0 0.0
    %563 = vmatpush1.msra.mxu0 0.0
    %564 = vmatprep.subr.mxu0 0.0
    %565 = vmatpush1.msra.mxu0 0.0
    %566 = vmatprep.mubr.f32.mxu0 0.0
    %567 = vmatmul.mubr.f32.gmra.mrb[0].mxu0 %v442
    %v568 = vpop.f32.mrb[0].mxu0
    %v569 = vadd.f32 %v500, %v568
    %v570 = vpop.f32.mrb[0].mxu0
    %571 = vmatprep.mubr.f32.mxu0 0.0
    %572 = vmatmul.mubr.f32.gmra.mrb[0].mxu0 %v443
    %v573 = vpop.f32.mrb[0].mxu0
    %v574 = vadd.f32 %v501, %v573
    %v575 = vpop.f32.mrb[0].mxu0
    %576 = vdwg.mxu0
    %v577 = vadd.f32 %v569, %v498
    %v578 = vadd.f32 %v574, %v499
    %v579 = vld [vmem:[#allocation13] sm:$0x1]
    %v580 = vld [vmem:[#allocation14] sm:$0x1]
    %vm581 = vcmask 261120
    %v582 = vsel %vm581, %v577, 0.0
    %583 = vadd.xlane.f32.xlu0 %v582
    %v584 = vpop.xlane.xlu0 %583
    %v585 = vsel %vm581, %v578, 0.0
    %586 = vadd.xlane.f32.xlu0 %v585
    %v587 = vpop.xlane.xlu0 %586
    %v588 = vrcp.pop 32.0
    %v589 = vmul.f32 %v584, %v588
    %v590 = vmul.f32 %v587, %v588
    %v591 = vsub.f32 %v577, %v589
    %v592 = vsub.f32 %v578, %v590
    %v593 = vmul.f32 %v591, %v591
    %v594 = vmul.f32 %v592, %v592
    %v595 = vsel %vm581, %v593, 0.0
    %596 = vadd.xlane.f32.xlu0 %v595
    %v597 = vpop.xlane.xlu0 %596
    %v598 = vsel %vm581, %v594, 0.0
    %599 = vadd.xlane.f32.xlu0 %v598
    %v600 = vpop.xlane.xlu0 %599
    %v601 = vmul.f32 %v597, %v588
    %v602 = vmul.f32 %v600, %v588
    %v603 = vadd.f32 %v601, 1e-12
    %v604 = vadd.f32 %v602, 1e-12
    %v605 = vrsqrt.pop %v603
    %v606 = vrsqrt.pop %v604
    %v607 = vmul.f32 %v591, %v605
    %v608 = vmul.f32 %v592, %v606
    %v610 = vlaneseq
    %v611 = vshrl.u32 %v610, 7
    %v612 = vsub.s32 0, %v611
    %v613 = vrot.slane %v579, %v612
    %v615 = vmul.f32 %v607, %v613
    %v616 = vmul.f32 %v608, %v613
    %v618 = vlaneseq
    %v619 = vshrl.u32 %v618, 7
    %v620 = vsub.s32 0, %v619
    %v621 = vrot.slane %v580, %v620
    %v623 = vadd.f32 %v615, %v621
    %v624 = vadd.f32 %v616, %v621
    %v625 = vld [vmem:[#allocation7] sm:$0xff]
    %v626 = vld [vmem:[#allocation7 + $0x8] sm:$0xff]
    %vm627 = vcmp.ge.s32.totalorder %v431, 0
    %vm628 = vcmp.lt.s32.totalorder %v431, 8
    %vm629 = vmand %vm627, %vm628
    %v630 = vsel %vm629, 1, 0
    %v631 = vcvt.s32.f32 %v630
    %vm632 = vcmp.ge.s32.totalorder %v431, 8
    %vm633 = vcmp.lt.s32.totalorder %v431, 16
    %vm634 = vmand %vm632, %vm633
    %v635 = vsel %vm634, 1, 0
    %v636 = vcvt.s32.f32 %v635
    %vm637 = vcmp.ge.s32.totalorder %v431, 16
    %vm638 = vcmp.lt.s32.totalorder %v431, 24
    %vm639 = vmand %vm637, %vm638
    %v640 = vsel %vm639, 1, 0
    %v641 = vcvt.s32.f32 %v640
    %vm642 = vcmp.ge.s32.totalorder %v431, 24
    %vm643 = vcmp.lt.s32.totalorder %v431, 32
    %vm644 = vmand %vm642, %vm643
    %v645 = vsel %vm644, 1, 0
    %v646 = vcvt.s32.f32 %v645
    %v647 = vld [vmem:[#allocation16] sm:$0xff]
    %v648 = vld [vmem:[#allocation16 + $0x8] sm:$0xff]
    %v649 = vld [vmem:[#allocation16 + $0x10] sm:$0xff]
    %v650 = vld [vmem:[#allocation16 + $0x18] sm:$0xff]
    %v651 = vld [vmem:[#allocation17] sm:$0x1]
    %v653 = vlaneseq
    %v654 = vshrl.u32 %v653, 7
    %v655 = vsub.s32 0, %v654
    %v656 = vrot.slane %v651, %v655
    %v659 = vsel %vm581, %v623, 0
    %v662 = vsel %vm581, %v624, 0
    %664 = vmatprep.subr.mxu0 0.0
    %665 = vmatpush1.msra.mxu0 %v647
    %666 = vmatprep.subr.mxu0 0.0
    %667 = vmatpush1.msra.mxu0 %v648
    %668 = vmatprep.subr.mxu0 0.0
    %669 = vmatpush1.msra.mxu0 %v649
    %670 = vmatprep.subr.mxu0 0.0
    %671 = vmatpush1.msra.mxu0 %v650
    %672 = vmatprep.subr.mxu0 0.0
    %673 = vmatpush1.msra.mxu0 0.0
    %674 = vmatprep.subr.mxu0 0.0
    %675 = vmatpush1.msra.mxu0 0.0
    %676 = vmatprep.subr.mxu0 0.0
    %677 = vmatpush1.msra.mxu0 0.0
    %678 = vmatprep.subr.mxu0 0.0
    %679 = vmatpush1.msra.mxu0 0.0
    %680 = vmatprep.subr.mxu0 0.0
    %681 = vmatpush1.msra.mxu0 0.0
    %682 = vmatprep.subr.mxu0 0.0
    %683 = vmatpush1.msra.mxu0 0.0
    %684 = vmatprep.subr.mxu0 0.0
    %685 = vmatpush1.msra.mxu0 0.0
    %686 = vmatprep.subr.mxu0 0.0
    %687 = vmatpush1.msra.mxu0 0.0
    %688 = vmatprep.subr.mxu0 0.0
    %689 = vmatpush1.msra.mxu0 0.0
    %690 = vmatprep.subr.mxu0 0.0
    %691 = vmatpush1.msra.mxu0 0.0
    %692 = vmatprep.subr.mxu0 0.0
    %693 = vmatpush1.msra.mxu0 0.0
    %694 = vmatprep.subr.mxu0 0.0
    %695 = vmatpush1.msra.mxu0 0.0
    %696 = vmatprep.subr.mxu0 0.0
    %697 = vmatpush1.msra.mxu0 0.0
    %698 = vmatprep.subr.mxu0 0.0
    %699 = vmatpush1.msra.mxu0 0.0
    %700 = vmatprep.subr.mxu0 0.0
    %701 = vmatpush1.msra.mxu0 0.0
    %702 = vmatprep.subr.mxu0 0.0
    %703 = vmatpush1.msra.mxu0 0.0
    %704 = vmatprep.subr.mxu0 0.0
    %705 = vmatpush1.msra.mxu0 0.0
    %706 = vmatprep.subr.mxu0 0.0
    %707 = vmatpush1.msra.mxu0 0.0
    %708 = vmatprep.subr.mxu0 0.0
    %709 = vmatpush1.msra.mxu0 0.0
    %710 = vmatprep.subr.mxu0 0.0
    %711 = vmatpush1.msra.mxu0 0.0
    %712 = vmatprep.subr.mxu0 0.0
    %713 = vmatpush1.msra.mxu0 0.0
    %714 = vmatprep.subr.mxu0 0.0
    %715 = vmatpush1.msra.mxu0 0.0
    %716 = vmatprep.subr.mxu0 0.0
    %717 = vmatpush1.msra.mxu0 0.0
    %718 = vmatprep.subr.mxu0 0.0
    %719 = vmatpush1.msra.mxu0 0.0
    %720 = vmatprep.subr.mxu0 0.0
    %721 = vmatpush1.msra.mxu0 0.0
    %722 = vmatprep.subr.mxu0 0.0
    %723 = vmatpush1.msra.mxu0 0.0
    %724 = vmatprep.subr.mxu0 0.0
    %725 = vmatpush1.msra.mxu0 0.0
    %726 = vmatprep.subr.mxu0 0.0
    %727 = vmatpush1.msra.mxu0 0.0
    %728 = vmatprep.mubr.f32.mxu0 0.0
    %729 = vmatmul.mubr.f32.gmra.mrb[0].mxu0 %v659
    %v730 = vpop.f32.mrb[0].mxu0
    %v731 = vadd.f32 %v656, %v730
    %v732 = vpop.f32.mrb[0].mxu0
    %733 = vmatprep.mubr.f32.mxu0 0.0
    %734 = vmatmul.mubr.f32.gmra.mrb[0].mxu0 %v662
    %v735 = vpop.f32.mrb[0].mxu0
    %v736 = vadd.f32 %v656, %v735
    %v737 = vpop.f32.mrb[0].mxu0
    %738 = vdwg.mxu0
    %v739 = vld [vmem:[#allocation19] sm:$0xff]
    %v740 = vld [vmem:[#allocation19 + $0x8] sm:$0xff]
    %v741 = vld [vmem:[#allocation19 + $0x10] sm:$0xff]
    %v742 = vld [vmem:[#allocation19 + $0x18] sm:$0xff]
    %v743 = vld [vmem:[#allocation20] sm:$0x1]
    %v745 = vlaneseq
    %v746 = vshrl.u32 %v745, 7
    %v747 = vsub.s32 0, %v746
    %v748 = vrot.slane %v743, %v747
    %750 = vmatprep.subr.mxu0 0.0
    %751 = vmatpush1.msra.mxu0 %v739
    %752 = vmatprep.subr.mxu0 0.0
    %753 = vmatpush1.msra.mxu0 %v740
    %754 = vmatprep.subr.mxu0 0.0
    %755 = vmatpush1.msra.mxu0 %v741
    %756 = vmatprep.subr.mxu0 0.0
    %757 = vmatpush1.msra.mxu0 %v742
    %758 = vmatprep.subr.mxu0 0.0
    %759 = vmatpush1.msra.mxu0 0.0
    %760 = vmatprep.subr.mxu0 0.0
    %761 = vmatpush1.msra.mxu0 0.0
    %762 = vmatprep.subr.mxu0 0.0
    %763 = vmatpush1.msra.mxu0 0.0
    %764 = vmatprep.subr.mxu0 0.0
    %765 = vmatpush1.msra.mxu0 0.0
    %766 = vmatprep.subr.mxu0 0.0
    %767 = vmatpush1.msra.mxu0 0.0
    %768 = vmatprep.subr.mxu0 0.0
    %769 = vmatpush1.msra.mxu0 0.0
    %770 = vmatprep.subr.mxu0 0.0
    %771 = vmatpush1.msra.mxu0 0.0
    %772 = vmatprep.subr.mxu0 0.0
    %773 = vmatpush1.msra.mxu0 0.0
    %774 = vmatprep.subr.mxu0 0.0
    %775 = vmatpush1.msra.mxu0 0.0
    %776 = vmatprep.subr.mxu0 0.0
    %777 = vmatpush1.msra.mxu0 0.0
    %778 = vmatprep.subr.mxu0 0.0
    %779 = vmatpush1.msra.mxu0 0.0
    %780 = vmatprep.subr.mxu0 0.0
    %781 = vmatpush1.msra.mxu0 0.0
    %782 = vmatprep.subr.mxu0 0.0
    %783 = vmatpush1.msra.mxu0 0.0
    %784 = vmatprep.subr.mxu0 0.0
    %785 = vmatpush1.msra.mxu0 0.0
    %786 = vmatprep.subr.mxu0 0.0
    %787 = vmatpush1.msra.mxu0 0.0
    %788 = vmatprep.subr.mxu0 0.0
    %789 = vmatpush1.msra.mxu0 0.0
    %790 = vmatprep.subr.mxu0 0.0
    %791 = vmatpush1.msra.mxu0 0.0
    %792 = vmatprep.subr.mxu0 0.0
    %793 = vmatpush1.msra.mxu0 0.0
    %794 = vmatprep.subr.mxu0 0.0
    %795 = vmatpush1.msra.mxu0 0.0
    %796 = vmatprep.subr.mxu0 0.0
    %797 = vmatpush1.msra.mxu0 0.0
    %798 = vmatprep.subr.mxu0 0.0
    %799 = vmatpush1.msra.mxu0 0.0
    %800 = vmatprep.subr.mxu0 0.0
    %801 = vmatpush1.msra.mxu0 0.0
    %802 = vmatprep.subr.mxu0 0.0
    %803 = vmatpush1.msra.mxu0 0.0
    %804 = vmatprep.subr.mxu0 0.0
    %805 = vmatpush1.msra.mxu0 0.0
    %806 = vmatprep.subr.mxu0 0.0
    %807 = vmatpush1.msra.mxu0 0.0
    %808 = vmatprep.subr.mxu0 0.0
    %809 = vmatpush1.msra.mxu0 0.0
    %810 = vmatprep.subr.mxu0 0.0
    %811 = vmatpush1.msra.mxu0 0.0
    %812 = vmatprep.subr.mxu0 0.0
    %813 = vmatpush1.msra.mxu0 0.0
    %814 = vmatprep.mubr.f32.mxu0 0.0
    %815 = vmatmul.mubr.f32.gmra.mrb[0].mxu0 %v659
    %v816 = vpop.f32.mrb[0].mxu0
    %v817 = vadd.f32 %v748, %v816
    %v818 = vpop.f32.mrb[0].mxu0
    %819 = vmatprep.mubr.f32.mxu0 0.0
    %820 = vmatmul.mubr.f32.gmra.mrb[0].mxu0 %v662
    %v821 = vpop.f32.mrb[0].mxu0
    %v822 = vadd.f32 %v748, %v821
    %v823 = vpop.f32.mrb[0].mxu0
    %824 = vdwg.mxu0
    %v825 = vld [vmem:[#allocation22] sm:$0xff]
    %v826 = vld [vmem:[#allocation22 + $0x8] sm:$0xff]
    %v827 = vld [vmem:[#allocation22 + $0x10] sm:$0xff]
    %v828 = vld [vmem:[#allocation22 + $0x18] sm:$0xff]
    %v829 = vld [vmem:[#allocation23] sm:$0x1]
    %v831 = vlaneseq
    %v832 = vshrl.u32 %v831, 7
    %v833 = vsub.s32 0, %v832
    %v834 = vrot.slane %v829, %v833
    %836 = vmatprep.subr.mxu0 0.0
    %837 = vmatpush1.msra.mxu0 %v825
    %838 = vmatprep.subr.mxu0 0.0
    %839 = vmatpush1.msra.mxu0 %v826
    %840 = vmatprep.subr.mxu0 0.0
    %841 = vmatpush1.msra.mxu0 %v827
    %842 = vmatprep.subr.mxu0 0.0
    %843 = vmatpush1.msra.mxu0 %v828
    %844 = vmatprep.subr.mxu0 0.0
    %845 = vmatpush1.msra.mxu0 0.0
    %846 = vmatprep.subr.mxu0 0.0
    %847 = vmatpush1.msra.mxu0 0.0
    %848 = vmatprep.subr.mxu0 0.0
    %849 = vmatpush1.msra.mxu0 0.0
    %850 = vmatprep.subr.mxu0 0.0
    %851 = vmatpush1.msra.mxu0 0.0
    %852 = vmatprep.subr.mxu0 0.0
    %853 = vmatpush1.msra.mxu0 0.0
    %854 = vmatprep.subr.mxu0 0.0
    %855 = vmatpush1.msra.mxu0 0.0
    %856 = vmatprep.subr.mxu0 0.0
    %857 = vmatpush1.msra.mxu0 0.0
    %858 = vmatprep.subr.mxu0 0.0
    %859 = vmatpush1.msra.mxu0 0.0
    %860 = vmatprep.subr.mxu0 0.0
    %861 = vmatpush1.msra.mxu0 0.0
    %862 = vmatprep.subr.mxu0 0.0
    %863 = vmatpush1.msra.mxu0 0.0
    %864 = vmatprep.subr.mxu0 0.0
    %865 = vmatpush1.msra.mxu0 0.0
    %866 = vmatprep.subr.mxu0 0.0
    %867 = vmatpush1.msra.mxu0 0.0
    %868 = vmatprep.subr.mxu0 0.0
    %869 = vmatpush1.msra.mxu0 0.0
    %870 = vmatprep.subr.mxu0 0.0
    %871 = vmatpush1.msra.mxu0 0.0
    %872 = vmatprep.subr.mxu0 0.0
    %873 = vmatpush1.msra.mxu0 0.0
    %874 = vmatprep.subr.mxu0 0.0
    %875 = vmatpush1.msra.mxu0 0.0
    %876 = vmatprep.subr.mxu0 0.0
    %877 = vmatpush1.msra.mxu0 0.0
    %878 = vmatprep.subr.mxu0 0.0
    %879 = vmatpush1.msra.mxu0 0.0
    %880 = vmatprep.subr.mxu0 0.0
    %881 = vmatpush1.msra.mxu0 0.0
    %882 = vmatprep.subr.mxu0 0.0
    %883 = vmatpush1.msra.mxu0 0.0
    %884 = vmatprep.subr.mxu0 0.0
    %885 = vmatpush1.msra.mxu0 0.0
    %886 = vmatprep.subr.mxu0 0.0
    %887 = vmatpush1.msra.mxu0 0.0
    %888 = vmatprep.subr.mxu0 0.0
    %889 = vmatpush1.msra.mxu0 0.0
    %890 = vmatprep.subr.mxu0 0.0
    %891 = vmatpush1.msra.mxu0 0.0
    %892 = vmatprep.subr.mxu0 0.0
    %893 = vmatpush1.msra.mxu0 0.0
    %894 = vmatprep.subr.mxu0 0.0
    %895 = vmatpush1.msra.mxu0 0.0
    %896 = vmatprep.subr.mxu0 0.0
    %897 = vmatpush1.msra.mxu0 0.0
    %898 = vmatprep.subr.mxu0 0.0
    %899 = vmatpush1.msra.mxu0 0.0
    %900 = vmatprep.mubr.f32.mxu0 0.0
    %901 = vmatmul.mubr.f32.gmra.mrb[0].mxu0 %v659
    %v902 = vpop.f32.mrb[0].mxu0
    %v903 = vadd.f32 %v834, %v902
    %v904 = vpop.f32.mrb[0].mxu0
    %905 = vmatprep.mubr.f32.mxu0 0.0
    %906 = vmatmul.mubr.f32.gmra.mrb[0].mxu0 %v662
    %v907 = vpop.f32.mrb[0].mxu0
    %v908 = vadd.f32 %v834, %v907
    %v909 = vpop.f32.mrb[0].mxu0
    %910 = vdwg.mxu0
    %v911 = vmul.f32 %v731, %v631
    %v912 = vmul.f32 %v736, %v631
    %v914 = vsel %vm581, %v911, 0
    %v917 = vsel %vm581, %v912, 0
    %v920 = vsel %vm581, %v817, 0
    %v923 = vsel %vm581, %v822, 0
    %925 = vmatprep.subr.mxu0 0.0
    %926 = vmatpush1.xpose.msra.mxu0 %v920
    %927 = vmatprep.subr.mxu0 0.0
    %928 = vmatpush1.xpose.msra.mxu0 %v923
    %929 = vmatprep.subr.mxu0 0.0
    %930 = vmatpush1.xpose.msra.mxu0 0.0
    %931 = vmatprep.subr.mxu0 0.0
    %932 = vmatpush1.xpose.msra.mxu0 0.0
    %933 = vmatprep.subr.mxu0 0.0
    %934 = vmatpush1.xpose.msra.mxu0 0.0
    %935 = vmatprep.subr.mxu0 0.0
    %936 = vmatpush1.xpose.msra.mxu0 0.0
    %937 = vmatprep.subr.mxu0 0.0
    %938 = vmatpush1.xpose.msra.mxu0 0.0
    %939 = vmatprep.subr.mxu0 0.0
    %940 = vmatpush1.xpose.msra.mxu0 0.0
    %941 = vmatprep.subr.mxu0 0.0
    %942 = vmatpush1.xpose.msra.mxu0 0.0
    %943 = vmatprep.subr.mxu0 0.0
    %944 = vmatpush1.xpose.msra.mxu0 0.0
    %945 = vmatprep.subr.mxu0 0.0
    %946 = vmatpush1.xpose.msra.mxu0 0.0
    %947 = vmatprep.subr.mxu0 0.0
    %948 = vmatpush1.xpose.msra.mxu0 0.0
    %949 = vmatprep.subr.mxu0 0.0
    %950 = vmatpush1.xpose.msra.mxu0 0.0
    %951 = vmatprep.subr.mxu0 0.0
    %952 = vmatpush1.xpose.msra.mxu0 0.0
    %953 = vmatprep.subr.mxu0 0.0
    %954 = vmatpush1.xpose.msra.mxu0 0.0
    %955 = vmatprep.subr.mxu0 0.0
    %956 = vmatpush1.xpose.msra.mxu0 0.0
    %957 = vmatprep.subr.mxu0 0.0
    %958 = vmatpush1.xpose.msra.mxu0 0.0
    %959 = vmatprep.subr.mxu0 0.0
    %960 = vmatpush1.xpose.msra.mxu0 0.0
    %961 = vmatprep.subr.mxu0 0.0
    %962 = vmatpush1.xpose.msra.mxu0 0.0
    %963 = vmatprep.subr.mxu0 0.0
    %964 = vmatpush1.xpose.msra.mxu0 0.0
    %965 = vmatprep.subr.mxu0 0.0
    %966 = vmatpush1.xpose.msra.mxu0 0.0
    %967 = vmatprep.subr.mxu0 0.0
    %968 = vmatpush1.xpose.msra.mxu0 0.0
    %969 = vmatprep.subr.mxu0 0.0
    %970 = vmatpush1.xpose.msra.mxu0 0.0
    %971 = vmatprep.subr.mxu0 0.0
    %972 = vmatpush1.xpose.msra.mxu0 0.0
    %973 = vmatprep.subr.mxu0 0.0
    %974 = vmatpush1.xpose.msra.mxu0 0.0
    %975 = vmatprep.subr.mxu0 0.0
    %976 = vmatpush1.xpose.msra.mxu0 0.0
    %977 = vmatprep.subr.mxu0 0.0
    %978 = vmatpush1.xpose.msra.mxu0 0.0
    %979 = vmatprep.subr.mxu0 0.0
    %980 = vmatpush1.xpose.msra.mxu0 0.0
    %981 = vmatprep.subr.mxu0 0.0
    %982 = vmatpush1.xpose.msra.mxu0 0.0
    %983 = vmatprep.subr.mxu0 0.0
    %984 = vmatpush1.xpose.msra.mxu0 0.0
    %985 = vmatprep.subr.mxu0 0.0
    %986 = vmatpush1.xpose.msra.mxu0 0.0
    %987 = vmatprep.subr.mxu0 0.0
    %988 = vmatpush1.xpose.msra.mxu0 0.0
    %989 = vmatprep.mubr.f32.mxu0 0.0
    %990 = vmatmul.mubr.f32.gmra.mrb[0].mxu0 %v914
    %v991 = vpop.f32.mrb[0].mxu0
    %v992 = vadd.f32 0.0, %v991
    %v993 = vpop.f32.mrb[0].mxu0
    %994 = vmatprep.mubr.f32.mxu0 0.0
    %995 = vmatmul.mubr.f32.gmra.mrb[0].mxu0 %v917
    %v996 = vpop.f32.mrb[0].mxu0
    %v997 = vadd.f32 0.0, %v996
    %v998 = vpop.f32.mrb[0].mxu0
    %999 = vdwg.mxu0
    %v1000 = vmul.f32 %v992, 0.35355338
    %v1001 = vmul.f32 %v997, 0.35355338
    %v1002 = vadd.f32 %v1000, %v625
    %v1003 = vadd.f32 %v1001, %v626
    %vm1004 = vcmask 130048
    %v1005 = vsel %vm1004, %v1002, -inf
    %1006 = vmax.xlane.f32.xlu0 %v1005
    %v1007 = vpop.xlane.xlu0 %1006
    %v1008 = vsel %vm1004, %v1003, -inf
    %1009 = vmax.xlane.f32.xlu0 %v1008
    %v1010 = vpop.xlane.xlu0 %1009
    %v1011 = vsub.f32 %v1002, %v1007
    %v1012 = vsub.f32 %v1003, %v1010
    %v1013 = vmul.f32 %v1011, 1.442695
    %v1014 = vpow.pop %v1013
    %v1015 = vmul.f32 %v1012, 1.442695
    %v1016 = vpow.pop %v1015
    %v1017 = vsel %vm1004, %v1014, 0.0
    %1018 = vadd.xlane.f32.xlu0 %v1017
    %v1019 = vpop.xlane.xlu0 %1018
    %v1020 = vsel %vm1004, %v1016, 0.0
    %1021 = vadd.xlane.f32.xlu0 %v1020
    %v1022 = vpop.xlane.xlu0 %1021
    %v1023 = vmul.f32 %v903, %v631
    %v1024 = vmul.f32 %v908, %v631
    %v1026 = vsel %vm1004, %v1014, 0
    %v1029 = vsel %vm1004, %v1016, 0
    %1031 = vmatprep.subr.mxu0 0.0
    %1032 = vmatpush1.msra.mxu0 %v1023
    %1033 = vmatprep.subr.mxu0 0.0
    %1034 = vmatpush1.msra.mxu0 %v1024
    %1035 = vmatprep.subr.mxu0 0.0
    %1036 = vmatpush1.msra.mxu0 0.0
    %1037 = vmatprep.subr.mxu0 0.0
    %1038 = vmatpush1.msra.mxu0 0.0
    %1039 = vmatprep.subr.mxu0 0.0
    %1040 = vmatpush1.msra.mxu0 0.0
    %1041 = vmatprep.subr.mxu0 0.0
    %1042 = vmatpush1.msra.mxu0 0.0
    %1043 = vmatprep.subr.mxu0 0.0
    %1044 = vmatpush1.msra.mxu0 0.0
    %1045 = vmatprep.subr.mxu0 0.0
    %1046 = vmatpush1.msra.mxu0 0.0
    %1047 = vmatprep.subr.mxu0 0.0
    %1048 = vmatpush1.msra.mxu0 0.0
    %1049 = vmatprep.subr.mxu0 0.0
    %1050 = vmatpush1.msra.mxu0 0.0
    %1051 = vmatprep.subr.mxu0 0.0
    %1052 = vmatpush1.msra.mxu0 0.0
    %1053 = vmatprep.subr.mxu0 0.0
    %1054 = vmatpush1.msra.mxu0 0.0
    %1055 = vmatprep.subr.mxu0 0.0
    %1056 = vmatpush1.msra.mxu0 0.0
    %1057 = vmatprep.subr.mxu0 0.0
    %1058 = vmatpush1.msra.mxu0 0.0
    %1059 = vmatprep.subr.mxu0 0.0
    %1060 = vmatpush1.msra.mxu0 0.0
    %1061 = vmatprep.subr.mxu0 0.0
    %1062 = vmatpush1.msra.mxu0 0.0
    %1063 = vmatprep.subr.mxu0 0.0
    %1064 = vmatpush1.msra.mxu0 0.0
    %1065 = vmatprep.subr.mxu0 0.0
    %1066 = vmatpush1.msra.mxu0 0.0
    %1067 = vmatprep.subr.mxu0 0.0
    %1068 = vmatpush1.msra.mxu0 0.0
    %1069 = vmatprep.subr.mxu0 0.0
    %1070 = vmatpush1.msra.mxu0 0.0
    %1071 = vmatprep.subr.mxu0 0.0
    %1072 = vmatpush1.msra.mxu0 0.0
    %1073 = vmatprep.subr.mxu0 0.0
    %1074 = vmatpush1.msra.mxu0 0.0
    %1075 = vmatprep.subr.mxu0 0.0
    %1076 = vmatpush1.msra.mxu0 0.0
    %1077 = vmatprep.subr.mxu0 0.0
    %1078 = vmatpush1.msra.mxu0 0.0
    %1079 = vmatprep.subr.mxu0 0.0
    %1080 = vmatpush1.msra.mxu0 0.0
    %1081 = vmatprep.subr.mxu0 0.0
    %1082 = vmatpush1.msra.mxu0 0.0
    %1083 = vmatprep.subr.mxu0 0.0
    %1084 = vmatpush1.msra.mxu0 0.0
    %1085 = vmatprep.subr.mxu0 0.0
    %1086 = vmatpush1.msra.mxu0 0.0
    %1087 = vmatprep.subr.mxu0 0.0
    %1088 = vmatpush1.msra.mxu0 0.0
    %1089 = vmatprep.subr.mxu0 0.0
    %1090 = vmatpush1.msra.mxu0 0.0
    %1091 = vmatprep.subr.mxu0 0.0
    %1092 = vmatpush1.msra.mxu0 0.0
    %1093 = vmatprep.subr.mxu0 0.0
    %1094 = vmatpush1.msra.mxu0 0.0
    %1095 = vmatprep.mubr.f32.mxu0 0.0
    %1096 = vmatmul.mubr.f32.gmra.mrb[0].mxu0 %v1026
    %v1097 = vpop.f32.mrb[0].mxu0
    %v1098 = vadd.f32 0.0, %v1097
    %v1099 = vpop.f32.mrb[0].mxu0
    %1100 = vmatprep.mubr.f32.mxu0 0.0
    %1101 = vmatmul.mubr.f32.gmra.mrb[0].mxu0 %v1029
    %v1102 = vpop.f32.mrb[0].mxu0
    %v1103 = vadd.f32 0.0, %v1102
    %v1104 = vpop.f32.mrb[0].mxu0
    %1105 = vdwg.mxu0
    %v1106 = vrcp.pop %v1019
    %v1107 = vrcp.pop %v1022
    %v1108 = vmul.f32 %v1098, %v1106
    %v1109 = vmul.f32 %v1103, %v1107
    %v1110 = vadd.f32 %v1108, 0.0
    %v1111 = vadd.f32 %v1109, 0.0
    %v1112 = vmul.f32 %v731, %v636
    %v1113 = vmul.f32 %v736, %v636
    %v1115 = vsel %vm581, %v1112, 0
    %v1118 = vsel %vm581, %v1113, 0
    %1120 = vmatprep.subr.mxu0 0.0
    %1121 = vmatpush1.xpose.msra.mxu0 %v920
    %1122 = vmatprep.subr.mxu0 0.0
    %1123 = vmatpush1.xpose.msra.mxu0 %v923
    %1124 = vmatprep.subr.mxu0 0.0
    %1125 = vmatpush1.xpose.msra.mxu0 0.0
    %1126 = vmatprep.subr.mxu0 0.0
    %1127 = vmatpush1.xpose.msra.mxu0 0.0
    %1128 = vmatprep.subr.mxu0 0.0
    %1129 = vmatpush1.xpose.msra.mxu0 0.0
    %1130 = vmatprep.subr.mxu0 0.0
    %1131 = vmatpush1.xpose.msra.mxu0 0.0
    %1132 = vmatprep.subr.mxu0 0.0
    %1133 = vmatpush1.xpose.msra.mxu0 0.0
    %1134 = vmatprep.subr.mxu0 0.0
    %1135 = vmatpush1.xpose.msra.mxu0 0.0
    %1136 = vmatprep.subr.mxu0 0.0
    %1137 = vmatpush1.xpose.msra.mxu0 0.0
    %1138 = vmatprep.subr.mxu0 0.0
    %1139 = vmatpush1.xpose.msra.mxu0 0.0
    %1140 = vmatprep.subr.mxu0 0.0
    %1141 = vmatpush1.xpose.msra.mxu0 0.0
    %1142 = vmatprep.subr.mxu0 0.0
    %1143 = vmatpush1.xpose.msra.mxu0 0.0
    %1144 = vmatprep.subr.mxu0 0.0
    %1145 = vmatpush1.xpose.msra.mxu0 0.0
    %1146 = vmatprep.subr.mxu0 0.0
    %1147 = vmatpush1.xpose.msra.mxu0 0.0
    %1148 = vmatprep.subr.mxu0 0.0
    %1149 = vmatpush1.xpose.msra.mxu0 0.0
    %1150 = vmatprep.subr.mxu0 0.0
    %1151 = vmatpush1.xpose.msra.mxu0 0.0
    %1152 = vmatprep.subr.mxu0 0.0
    %1153 = vmatpush1.xpose.msra.mxu0 0.0
    %1154 = vmatprep.subr.mxu0 0.0
    %1155 = vmatpush1.xpose.msra.mxu0 0.0
    %1156 = vmatprep.subr.mxu0 0.0
    %1157 = vmatpush1.xpose.msra.mxu0 0.0
    %1158 = vmatprep.subr.mxu0 0.0
    %1159 = vmatpush1.xpose.msra.mxu0 0.0
    %1160 = vmatprep.subr.mxu0 0.0
    %1161 = vmatpush1.xpose.msra.mxu0 0.0
    %1162 = vmatprep.subr.mxu0 0.0
    %1163 = vmatpush1.xpose.msra.mxu0 0.0
    %1164 = vmatprep.subr.mxu0 0.0
    %1165 = vmatpush1.xpose.msra.mxu0 0.0
    %1166 = vmatprep.subr.mxu0 0.0
    %1167 = vmatpush1.xpose.msra.mxu0 0.0
    %1168 = vmatprep.subr.mxu0 0.0
    %1169 = vmatpush1.xpose.msra.mxu0 0.0
    %1170 = vmatprep.subr.mxu0 0.0
    %1171 = vmatpush1.xpose.msra.mxu0 0.0
    %1172 = vmatprep.subr.mxu0 0.0
    %1173 = vmatpush1.xpose.msra.mxu0 0.0
    %1174 = vmatprep.subr.mxu0 0.0
    %1175 = vmatpush1.xpose.msra.mxu0 0.0
    %1176 = vmatprep.subr.mxu0 0.0
    %1177 = vmatpush1.xpose.msra.mxu0 0.0
    %1178 = vmatprep.subr.mxu0 0.0
    %1179 = vmatpush1.xpose.msra.mxu0 0.0
    %1180 = vmatprep.subr.mxu0 0.0
    %1181 = vmatpush1.xpose.msra.mxu0 0.0
    %1182 = vmatprep.subr.mxu0 0.0
    %1183 = vmatpush1.xpose.msra.mxu0 0.0
    %1184 = vmatprep.mubr.f32.mxu0 0.0
    %1185 = vmatmul.mubr.f32.gmra.mrb[0].mxu0 %v1115
    %v1186 = vpop.f32.mrb[0].mxu0
    %v1187 = vadd.f32 0.0, %v1186
    %v1188 = vpop.f32.mrb[0].mxu0
    %1189 = vmatprep.mubr.f32.mxu0 0.0
    %1190 = vmatmul.mubr.f32.gmra.mrb[0].mxu0 %v1118
    %v1191 = vpop.f32.mrb[0].mxu0
    %v1192 = vadd.f32 0.0, %v1191
    %v1193 = vpop.f32.mrb[0].mxu0
    %1194 = vdwg.mxu0
    %v1195 = vmul.f32 %v1187, 0.35355338
    %v1196 = vmul.f32 %v1192, 0.35355338
    %v1197 = vadd.f32 %v1195, %v625
    %v1198 = vadd.f32 %v1196, %v626
    %v1199 = vsel %vm1004, %v1197, -inf
    %1200 = vmax.xlane.f32.xlu0 %v1199
    %v1201 = vpop.xlane.xlu0 %1200
    %v1202 = vsel %vm1004, %v1198, -inf
    %1203 = vmax.xlane.f32.xlu0 %v1202
    %v1204 = vpop.xlane.xlu0 %1203
    %v1205 = vsub.f32 %v1197, %v1201
    %v1206 = vsub.f32 %v1198, %v1204
    %v1207 = vmul.f32 %v1205, 1.442695
    %v1208 = vpow.pop %v1207
    %v1209 = vmul.f32 %v1206, 1.442695
    %v1210 = vpow.pop %v1209
    %v1211 = vsel %vm1004, %v1208, 0.0
    %1212 = vadd.xlane.f32.xlu0 %v1211
    %v1213 = vpop.xlane.xlu0 %1212
    %v1214 = vsel %vm1004, %v1210, 0.0
    %1215 = vadd.xlane.f32.xlu0 %v1214
    %v1216 = vpop.xlane.xlu0 %1215
    %v1217 = vmul.f32 %v903, %v636
    %v1218 = vmul.f32 %v908, %v636
    %v1220 = vsel %vm1004, %v1208, 0
    %v1223 = vsel %vm1004, %v1210, 0
    %1225 = vmatprep.subr.mxu0 0.0
    %1226 = vmatpush1.msra.mxu0 %v1217
    %1227 = vmatprep.subr.mxu0 0.0
    %1228 = vmatpush1.msra.mxu0 %v1218
    %1229 = vmatprep.subr.mxu0 0.0
    %1230 = vmatpush1.msra.mxu0 0.0
    %1231 = vmatprep.subr.mxu0 0.0
    %1232 = vmatpush1.msra.mxu0 0.0
    %1233 = vmatprep.subr.mxu0 0.0
    %1234 = vmatpush1.msra.mxu0 0.0
    %1235 = vmatprep.subr.mxu0 0.0
    %1236 = vmatpush1.msra.mxu0 0.0
    %1237 = vmatprep.subr.mxu0 0.0
    %1238 = vmatpush1.msra.mxu0 0.0
    %1239 = vmatprep.subr.mxu0 0.0
    %1240 = vmatpush1.msra.mxu0 0.0
    %1241 = vmatprep.subr.mxu0 0.0
    %1242 = vmatpush1.msra.mxu0 0.0
    %1243 = vmatprep.subr.mxu0 0.0
    %1244 = vmatpush1.msra.mxu0 0.0
    %1245 = vmatprep.subr.mxu0 0.0
    %1246 = vmatpush1.msra.mxu0 0.0
    %1247 = vmatprep.subr.mxu0 0.0
    %1248 = vmatpush1.msra.mxu0 0.0
    %1249 = vmatprep.subr.mxu0 0.0
    %1250 = vmatpush1.msra.mxu0 0.0
    %1251 = vmatprep.subr.mxu0 0.0
    %1252 = vmatpush1.msra.mxu0 0.0
    %1253 = vmatprep.subr.mxu0 0.0
    %1254 = vmatpush1.msra.mxu0 0.0
    %1255 = vmatprep.subr.mxu0 0.0
    %1256 = vmatpush1.msra.mxu0 0.0
    %1257 = vmatprep.subr.mxu0 0.0
    %1258 = vmatpush1.msra.mxu0 0.0
    %1259 = vmatprep.subr.mxu0 0.0
    %1260 = vmatpush1.msra.mxu0 0.0
    %1261 = vmatprep.subr.mxu0 0.0
    %1262 = vmatpush1.msra.mxu0 0.0
    %1263 = vmatprep.subr.mxu0 0.0
    %1264 = vmatpush1.msra.mxu0 0.0
    %1265 = vmatprep.subr.mxu0 0.0
    %1266 = vmatpush1.msra.mxu0 0.0
    %1267 = vmatprep.subr.mxu0 0.0
    %1268 = vmatpush1.msra.mxu0 0.0
    %1269 = vmatprep.subr.mxu0 0.0
    %1270 = vmatpush1.msra.mxu0 0.0
    %1271 = vmatprep.subr.mxu0 0.0
    %1272 = vmatpush1.msra.mxu0 0.0
    %1273 = vmatprep.subr.mxu0 0.0
    %1274 = vmatpush1.msra.mxu0 0.0
    %1275 = vmatprep.subr.mxu0 0.0
    %1276 = vmatpush1.msra.mxu0 0.0
    %1277 = vmatprep.subr.mxu0 0.0
    %1278 = vmatpush1.msra.mxu0 0.0
    %1279 = vmatprep.subr.mxu0 0.0
    %1280 = vmatpush1.msra.mxu0 0.0
    %1281 = vmatprep.subr.mxu0 0.0
    %1282 = vmatpush1.msra.mxu0 0.0
    %1283 = vmatprep.subr.mxu0 0.0
    %1284 = vmatpush1.msra.mxu0 0.0
    %1285 = vmatprep.subr.mxu0 0.0
    %1286 = vmatpush1.msra.mxu0 0.0
    %1287 = vmatprep.subr.mxu0 0.0
    %1288 = vmatpush1.msra.mxu0 0.0
    %1289 = vmatprep.mubr.f32.mxu0 0.0
    %1290 = vmatmul.mubr.f32.gmra.mrb[0].mxu0 %v1220
    %v1291 = vpop.f32.mrb[0].mxu0
    %v1292 = vadd.f32 0.0, %v1291
    %v1293 = vpop.f32.mrb[0].mxu0
    %1294 = vmatprep.mubr.f32.mxu0 0.0
    %1295 = vmatmul.mubr.f32.gmra.mrb[0].mxu0 %v1223
    %v1296 = vpop.f32.mrb[0].mxu0
    %v1297 = vadd.f32 0.0, %v1296
    %v1298 = vpop.f32.mrb[0].mxu0
    %1299 = vdwg.mxu0
    %v1300 = vrcp.pop %v1213
    %v1301 = vrcp.pop %v1216
    %v1302 = vmul.f32 %v1292, %v1300
    %v1303 = vmul.f32 %v1297, %v1301
    %v1304 = vadd.f32 %v1110, %v1302
    %v1305 = vadd.f32 %v1111, %v1303
    %v1306 = vmul.f32 %v731, %v641
    %v1307 = vmul.f32 %v736, %v641
    %v1309 = vsel %vm581, %v1306, 0
    %v1312 = vsel %vm581, %v1307, 0
    %1314 = vmatprep.subr.mxu0 0.0
    %1315 = vmatpush1.xpose.msra.mxu0 %v920
    %1316 = vmatprep.subr.mxu0 0.0
    %1317 = vmatpush1.xpose.msra.mxu0 %v923
    %1318 = vmatprep.subr.mxu0 0.0
    %1319 = vmatpush1.xpose.msra.mxu0 0.0
    %1320 = vmatprep.subr.mxu0 0.0
    %1321 = vmatpush1.xpose.msra.mxu0 0.0
    %1322 = vmatprep.subr.mxu0 0.0
    %1323 = vmatpush1.xpose.msra.mxu0 0.0
    %1324 = vmatprep.subr.mxu0 0.0
    %1325 = vmatpush1.xpose.msra.mxu0 0.0
    %1326 = vmatprep.subr.mxu0 0.0
    %1327 = vmatpush1.xpose.msra.mxu0 0.0
    %1328 = vmatprep.subr.mxu0 0.0
    %1329 = vmatpush1.xpose.msra.mxu0 0.0
    %1330 = vmatprep.subr.mxu0 0.0
    %1331 = vmatpush1.xpose.msra.mxu0 0.0
    %1332 = vmatprep.subr.mxu0 0.0
    %1333 = vmatpush1.xpose.msra.mxu0 0.0
    %1334 = vmatprep.subr.mxu0 0.0
    %1335 = vmatpush1.xpose.msra.mxu0 0.0
    %1336 = vmatprep.subr.mxu0 0.0
    %1337 = vmatpush1.xpose.msra.mxu0 0.0
    %1338 = vmatprep.subr.mxu0 0.0
    %1339 = vmatpush1.xpose.msra.mxu0 0.0
    %1340 = vmatprep.subr.mxu0 0.0
    %1341 = vmatpush1.xpose.msra.mxu0 0.0
    %1342 = vmatprep.subr.mxu0 0.0
    %1343 = vmatpush1.xpose.msra.mxu0 0.0
    %1344 = vmatprep.subr.mxu0 0.0
    %1345 = vmatpush1.xpose.msra.mxu0 0.0
    %1346 = vmatprep.subr.mxu0 0.0
    %1347 = vmatpush1.xpose.msra.mxu0 0.0
    %1348 = vmatprep.subr.mxu0 0.0
    %1349 = vmatpush1.xpose.msra.mxu0 0.0
    %1350 = vmatprep.subr.mxu0 0.0
    %1351 = vmatpush1.xpose.msra.mxu0 0.0
    %1352 = vmatprep.subr.mxu0 0.0
    %1353 = vmatpush1.xpose.msra.mxu0 0.0
    %1354 = vmatprep.subr.mxu0 0.0
    %1355 = vmatpush1.xpose.msra.mxu0 0.0
    %1356 = vmatprep.subr.mxu0 0.0
    %1357 = vmatpush1.xpose.msra.mxu0 0.0
    %1358 = vmatprep.subr.mxu0 0.0
    %1359 = vmatpush1.xpose.msra.mxu0 0.0
    %1360 = vmatprep.subr.mxu0 0.0
    %1361 = vmatpush1.xpose.msra.mxu0 0.0
    %1362 = vmatprep.subr.mxu0 0.0
    %1363 = vmatpush1.xpose.msra.mxu0 0.0
    %1364 = vmatprep.subr.mxu0 0.0
    %1365 = vmatpush1.xpose.msra.mxu0 0.0
    %1366 = vmatprep.subr.mxu0 0.0
    %1367 = vmatpush1.xpose.msra.mxu0 0.0
    %1368 = vmatprep.subr.mxu0 0.0
    %1369 = vmatpush1.xpose.msra.mxu0 0.0
    %1370 = vmatprep.subr.mxu0 0.0
    %1371 = vmatpush1.xpose.msra.mxu0 0.0
    %1372 = vmatprep.subr.mxu0 0.0
    %1373 = vmatpush1.xpose.msra.mxu0 0.0
    %1374 = vmatprep.subr.mxu0 0.0
    %1375 = vmatpush1.xpose.msra.mxu0 0.0
    %1376 = vmatprep.subr.mxu0 0.0
    %1377 = vmatpush1.xpose.msra.mxu0 0.0
    %1378 = vmatprep.mubr.f32.mxu0 0.0
    %1379 = vmatmul.mubr.f32.gmra.mrb[0].mxu0 %v1309
    %v1380 = vpop.f32.mrb[0].mxu0
    %v1381 = vadd.f32 0.0, %v1380
    %v1382 = vpop.f32.mrb[0].mxu0
    %1383 = vmatprep.mubr.f32.mxu0 0.0
    %1384 = vmatmul.mubr.f32.gmra.mrb[0].mxu0 %v1312
    %v1385 = vpop.f32.mrb[0].mxu0
    %v1386 = vadd.f32 0.0, %v1385
    %v1387 = vpop.f32.mrb[0].mxu0
    %1388 = vdwg.mxu0
    %v1389 = vmul.f32 %v1381, 0.35355338
    %v1390 = vmul.f32 %v1386, 0.35355338
    %v1391 = vadd.f32 %v1389, %v625
    %v1392 = vadd.f32 %v1390, %v626
    %v1393 = vsel %vm1004, %v1391, -inf
    %1394 = vmax.xlane.f32.xlu0 %v1393
    %v1395 = vpop.xlane.xlu0 %1394
    %v1396 = vsel %vm1004, %v1392, -inf
    %1397 = vmax.xlane.f32.xlu0 %v1396
    %v1398 = vpop.xlane.xlu0 %1397
    %v1399 = vsub.f32 %v1391, %v1395
    %v1400 = vsub.f32 %v1392, %v1398
    %v1401 = vmul.f32 %v1399, 1.442695
    %v1402 = vpow.pop %v1401
    %v1403 = vmul.f32 %v1400, 1.442695
    %v1404 = vpow.pop %v1403
    %v1405 = vsel %vm1004, %v1402, 0.0
    %1406 = vadd.xlane.f32.xlu0 %v1405
    %v1407 = vpop.xlane.xlu0 %1406
    %v1408 = vsel %vm1004, %v1404, 0.0
    %1409 = vadd.xlane.f32.xlu0 %v1408
    %v1410 = vpop.xlane.xlu0 %1409
    %v1411 = vmul.f32 %v903, %v641
    %v1412 = vmul.f32 %v908, %v641
    %v1414 = vsel %vm1004, %v1402, 0
    %v1417 = vsel %vm1004, %v1404, 0
    %1419 = vmatprep.subr.mxu0 0.0
    %1420 = vmatpush1.msra.mxu0 %v1411
    %1421 = vmatprep.subr.mxu0 0.0
    %1422 = vmatpush1.msra.mxu0 %v1412
    %1423 = vmatprep.subr.mxu0 0.0
    %1424 = vmatpush1.msra.mxu0 0.0
    %1425 = vmatprep.subr.mxu0 0.0
    %1426 = vmatpush1.msra.mxu0 0.0
    %1427 = vmatprep.subr.mxu0 0.0
    %1428 = vmatpush1.msra.mxu0 0.0
    %1429 = vmatprep.subr.mxu0 0.0
    %1430 = vmatpush1.msra.mxu0 0.0
    %1431 = vmatprep.subr.mxu0 0.0
    %1432 = vmatpush1.msra.mxu0 0.0
    %1433 = vmatprep.subr.mxu0 0.0
    %1434 = vmatpush1.msra.mxu0 0.0
    %1435 = vmatprep.subr.mxu0 0.0
    %1436 = vmatpush1.msra.mxu0 0.0
    %1437 = vmatprep.subr.mxu0 0.0
    %1438 = vmatpush1.msra.mxu0 0.0
    %1439 = vmatprep.subr.mxu0 0.0
    %1440 = vmatpush1.msra.mxu0 0.0
    %1441 = vmatprep.subr.mxu0 0.0
    %1442 = vmatpush1.msra.mxu0 0.0
    %1443 = vmatprep.subr.mxu0 0.0
    %1444 = vmatpush1.msra.mxu0 0.0
    %1445 = vmatprep.subr.mxu0 0.0
    %1446 = vmatpush1.msra.mxu0 0.0
    %1447 = vmatprep.subr.mxu0 0.0
    %1448 = vmatpush1.msra.mxu0 0.0
    %1449 = vmatprep.subr.mxu0 0.0
    %1450 = vmatpush1.msra.mxu0 0.0
    %1451 = vmatprep.subr.mxu0 0.0
    %1452 = vmatpush1.msra.mxu0 0.0
    %1453 = vmatprep.subr.mxu0 0.0
    %1454 = vmatpush1.msra.mxu0 0.0
    %1455 = vmatprep.subr.mxu0 0.0
    %1456 = vmatpush1.msra.mxu0 0.0
    %1457 = vmatprep.subr.mxu0 0.0
    %1458 = vmatpush1.msra.mxu0 0.0
    %1459 = vmatprep.subr.mxu0 0.0
    %1460 = vmatpush1.msra.mxu0 0.0
    %1461 = vmatprep.subr.mxu0 0.0
    %1462 = vmatpush1.msra.mxu0 0.0
    %1463 = vmatprep.subr.mxu0 0.0
    %1464 = vmatpush1.msra.mxu0 0.0
    %1465 = vmatprep.subr.mxu0 0.0
    %1466 = vmatpush1.msra.mxu0 0.0
    %1467 = vmatprep.subr.mxu0 0.0
    %1468 = vmatpush1.msra.mxu0 0.0
    %1469 = vmatprep.subr.mxu0 0.0
    %1470 = vmatpush1.msra.mxu0 0.0
    %1471 = vmatprep.subr.mxu0 0.0
    %1472 = vmatpush1.msra.mxu0 0.0
    %1473 = vmatprep.subr.mxu0 0.0
    %1474 = vmatpush1.msra.mxu0 0.0
    %1475 = vmatprep.subr.mxu0 0.0
    %1476 = vmatpush1.msra.mxu0 0.0
    %1477 = vmatprep.subr.mxu0 0.0
    %1478 = vmatpush1.msra.mxu0 0.0
    %1479 = vmatprep.subr.mxu0 0.0
    %1480 = vmatpush1.msra.mxu0 0.0
    %1481 = vmatprep.subr.mxu0 0.0
    %1482 = vmatpush1.msra.mxu0 0.0
    %1483 = vmatprep.mubr.f32.mxu0 0.0
    %1484 = vmatmul.mubr.f32.gmra.mrb[0].mxu0 %v1414
    %v1485 = vpop.f32.mrb[0].mxu0
    %v1486 = vadd.f32 0.0, %v1485
    %v1487 = vpop.f32.mrb[0].mxu0
    %1488 = vmatprep.mubr.f32.mxu0 0.0
    %1489 = vmatmul.mubr.f32.gmra.mrb[0].mxu0 %v1417
    %v1490 = vpop.f32.mrb[0].mxu0
    %v1491 = vadd.f32 0.0, %v1490
    %v1492 = vpop.f32.mrb[0].mxu0
    %1493 = vdwg.mxu0
    %v1494 = vrcp.pop %v1407
    %v1495 = vrcp.pop %v1410
    %v1496 = vmul.f32 %v1486, %v1494
    %v1497 = vmul.f32 %v1491, %v1495
    %v1498 = vadd.f32 %v1304, %v1496
    %v1499 = vadd.f32 %v1305, %v1497
    %v1500 = vmul.f32 %v731, %v646
    %v1501 = vmul.f32 %v736, %v646
    %v1503 = vsel %vm581, %v1500, 0
    %v1506 = vsel %vm581, %v1501, 0
    %1508 = vmatprep.subr.mxu0 0.0
    %1509 = vmatpush1.xpose.msra.mxu0 %v920
    %1510 = vmatprep.subr.mxu0 0.0
    %1511 = vmatpush1.xpose.msra.mxu0 %v923
    %1512 = vmatprep.subr.mxu0 0.0
    %1513 = vmatpush1.xpose.msra.mxu0 0.0
    %1514 = vmatprep.subr.mxu0 0.0
    %1515 = vmatpush1.xpose.msra.mxu0 0.0
    %1516 = vmatprep.subr.mxu0 0.0
    %1517 = vmatpush1.xpose.msra.mxu0 0.0
    %1518 = vmatprep.subr.mxu0 0.0
    %1519 = vmatpush1.xpose.msra.mxu0 0.0
    %1520 = vmatprep.subr.mxu0 0.0
    %1521 = vmatpush1.xpose.msra.mxu0 0.0
    %1522 = vmatprep.subr.mxu0 0.0
    %1523 = vmatpush1.xpose.msra.mxu0 0.0
    %1524 = vmatprep.subr.mxu0 0.0
    %1525 = vmatpush1.xpose.msra.mxu0 0.0
    %1526 = vmatprep.subr.mxu0 0.0
    %1527 = vmatpush1.xpose.msra.mxu0 0.0
    %1528 = vmatprep.subr.mxu0 0.0
    %1529 = vmatpush1.xpose.msra.mxu0 0.0
    %1530 = vmatprep.subr.mxu0 0.0
    %1531 = vmatpush1.xpose.msra.mxu0 0.0
    %1532 = vmatprep.subr.mxu0 0.0
    %1533 = vmatpush1.xpose.msra.mxu0 0.0
    %1534 = vmatprep.subr.mxu0 0.0
    %1535 = vmatpush1.xpose.msra.mxu0 0.0
    %1536 = vmatprep.subr.mxu0 0.0
    %1537 = vmatpush1.xpose.msra.mxu0 0.0
    %1538 = vmatprep.subr.mxu0 0.0
    %1539 = vmatpush1.xpose.msra.mxu0 0.0
    %1540 = vmatprep.subr.mxu0 0.0
    %1541 = vmatpush1.xpose.msra.mxu0 0.0
    %1542 = vmatprep.subr.mxu0 0.0
    %1543 = vmatpush1.xpose.msra.mxu0 0.0
    %1544 = vmatprep.subr.mxu0 0.0
    %1545 = vmatpush1.xpose.msra.mxu0 0.0
    %1546 = vmatprep.subr.mxu0 0.0
    %1547 = vmatpush1.xpose.msra.mxu0 0.0
    %1548 = vmatprep.subr.mxu0 0.0
    %1549 = vmatpush1.xpose.msra.mxu0 0.0
    %1550 = vmatprep.subr.mxu0 0.0
    %1551 = vmatpush1.xpose.msra.mxu0 0.0
    %1552 = vmatprep.subr.mxu0 0.0
    %1553 = vmatpush1.xpose.msra.mxu0 0.0
    %1554 = vmatprep.subr.mxu0 0.0
    %1555 = vmatpush1.xpose.msra.mxu0 0.0
    %1556 = vmatprep.subr.mxu0 0.0
    %1557 = vmatpush1.xpose.msra.mxu0 0.0
    %1558 = vmatprep.subr.mxu0 0.0
    %1559 = vmatpush1.xpose.msra.mxu0 0.0
    %1560 = vmatprep.subr.mxu0 0.0
    %1561 = vmatpush1.xpose.msra.mxu0 0.0
    %1562 = vmatprep.subr.mxu0 0.0
    %1563 = vmatpush1.xpose.msra.mxu0 0.0
    %1564 = vmatprep.subr.mxu0 0.0
    %1565 = vmatpush1.xpose.msra.mxu0 0.0
    %1566 = vmatprep.subr.mxu0 0.0
    %1567 = vmatpush1.xpose.msra.mxu0 0.0
    %1568 = vmatprep.subr.mxu0 0.0
    %1569 = vmatpush1.xpose.msra.mxu0 0.0
    %1570 = vmatprep.subr.mxu0 0.0
    %1571 = vmatpush1.xpose.msra.mxu0 0.0
    %1572 = vmatprep.mubr.f32.mxu0 0.0
    %1573 = vmatmul.mubr.f32.gmra.mrb[0].mxu0 %v1503
    %v1574 = vpop.f32.mrb[0].mxu0
    %v1575 = vadd.f32 0.0, %v1574
    %v1576 = vpop.f32.mrb[0].mxu0
    %1577 = vmatprep.mubr.f32.mxu0 0.0
    %1578 = vmatmul.mubr.f32.gmra.mrb[0].mxu0 %v1506
    %v1579 = vpop.f32.mrb[0].mxu0
    %v1580 = vadd.f32 0.0, %v1579
    %v1581 = vpop.f32.mrb[0].mxu0
    %1582 = vdwg.mxu0
    %v1583 = vmul.f32 %v1575, 0.35355338
    %v1584 = vmul.f32 %v1580, 0.35355338
    %v1585 = vadd.f32 %v1583, %v625
    %v1586 = vadd.f32 %v1584, %v626
    %v1587 = vsel %vm1004, %v1585, -inf
    %1588 = vmax.xlane.f32.xlu0 %v1587
    %v1589 = vpop.xlane.xlu0 %1588
    %v1590 = vsel %vm1004, %v1586, -inf
    %1591 = vmax.xlane.f32.xlu0 %v1590
    %v1592 = vpop.xlane.xlu0 %1591
    %v1593 = vsub.f32 %v1585, %v1589
    %v1594 = vsub.f32 %v1586, %v1592
    %v1595 = vmul.f32 %v1593, 1.442695
    %v1596 = vpow.pop %v1595
    %v1597 = vmul.f32 %v1594, 1.442695
    %v1598 = vpow.pop %v1597
    %v1599 = vsel %vm1004, %v1596, 0.0
    %1600 = vadd.xlane.f32.xlu0 %v1599
    %v1601 = vpop.xlane.xlu0 %1600
    %v1602 = vsel %vm1004, %v1598, 0.0
    %1603 = vadd.xlane.f32.xlu0 %v1602
    %v1604 = vpop.xlane.xlu0 %1603
    %v1605 = vmul.f32 %v903, %v646
    %v1606 = vmul.f32 %v908, %v646
    %v1608 = vsel %vm1004, %v1596, 0
    %v1611 = vsel %vm1004, %v1598, 0
    %1613 = vmatprep.subr.mxu0 0.0
    %1614 = vmatpush1.msra.mxu0 %v1605
    %1615 = vmatprep.subr.mxu0 0.0
    %1616 = vmatpush1.msra.mxu0 %v1606
    %1617 = vmatprep.subr.mxu0 0.0
    %1618 = vmatpush1.msra.mxu0 0.0
    %1619 = vmatprep.subr.mxu0 0.0
    %1620 = vmatpush1.msra.mxu0 0.0
    %1621 = vmatprep.subr.mxu0 0.0
    %1622 = vmatpush1.msra.mxu0 0.0
    %1623 = vmatprep.subr.mxu0 0.0
    %1624 = vmatpush1.msra.mxu0 0.0
    %1625 = vmatprep.subr.mxu0 0.0
    %1626 = vmatpush1.msra.mxu0 0.0
    %1627 = vmatprep.subr.mxu0 0.0
    %1628 = vmatpush1.msra.mxu0 0.0
    %1629 = vmatprep.subr.mxu0 0.0
    %1630 = vmatpush1.msra.mxu0 0.0
    %1631 = vmatprep.subr.mxu0 0.0
    %1632 = vmatpush1.msra.mxu0 0.0
    %1633 = vmatprep.subr.mxu0 0.0
    %1634 = vmatpush1.msra.mxu0 0.0
    %1635 = vmatprep.subr.mxu0 0.0
    %1636 = vmatpush1.msra.mxu0 0.0
    %1637 = vmatprep.subr.mxu0 0.0
    %1638 = vmatpush1.msra.mxu0 0.0
    %1639 = vmatprep.subr.mxu0 0.0
    %1640 = vmatpush1.msra.mxu0 0.0
    %1641 = vmatprep.subr.mxu0 0.0
    %1642 = vmatpush1.msra.mxu0 0.0
    %1643 = vmatprep.subr.mxu0 0.0
    %1644 = vmatpush1.msra.mxu0 0.0
    %1645 = vmatprep.subr.mxu0 0.0
    %1646 = vmatpush1.msra.mxu0 0.0
    %1647 = vmatprep.subr.mxu0 0.0
    %1648 = vmatpush1.msra.mxu0 0.0
    %1649 = vmatprep.subr.mxu0 0.0
    %1650 = vmatpush1.msra.mxu0 0.0
    %1651 = vmatprep.subr.mxu0 0.0
    %1652 = vmatpush1.msra.mxu0 0.0
    %1653 = vmatprep.subr.mxu0 0.0
    %1654 = vmatpush1.msra.mxu0 0.0
    %1655 = vmatprep.subr.mxu0 0.0
    %1656 = vmatpush1.msra.mxu0 0.0
    %1657 = vmatprep.subr.mxu0 0.0
    %1658 = vmatpush1.msra.mxu0 0.0
    %1659 = vmatprep.subr.mxu0 0.0
    %1660 = vmatpush1.msra.mxu0 0.0
    %1661 = vmatprep.subr.mxu0 0.0
    %1662 = vmatpush1.msra.mxu0 0.0
    %1663 = vmatprep.subr.mxu0 0.0
    %1664 = vmatpush1.msra.mxu0 0.0
    %1665 = vmatprep.subr.mxu0 0.0
    %1666 = vmatpush1.msra.mxu0 0.0
    %1667 = vmatprep.subr.mxu0 0.0
    %1668 = vmatpush1.msra.mxu0 0.0
    %1669 = vmatprep.subr.mxu0 0.0
    %1670 = vmatpush1.msra.mxu0 0.0
    %1671 = vmatprep.subr.mxu0 0.0
    %1672 = vmatpush1.msra.mxu0 0.0
    %1673 = vmatprep.subr.mxu0 0.0
    %1674 = vmatpush1.msra.mxu0 0.0
    %1675 = vmatprep.subr.mxu0 0.0
    %1676 = vmatpush1.msra.mxu0 0.0
    %1677 = vmatprep.mubr.f32.mxu0 0.0
    %1678 = vmatmul.mubr.f32.gmra.mrb[0].mxu0 %v1608
    %v1679 = vpop.f32.mrb[0].mxu0
    %v1680 = vadd.f32 0.0, %v1679
    %v1681 = vpop.f32.mrb[0].mxu0
    %1682 = vmatprep.mubr.f32.mxu0 0.0
    %1683 = vmatmul.mubr.f32.gmra.mrb[0].mxu0 %v1611
    %v1684 = vpop.f32.mrb[0].mxu0
    %v1685 = vadd.f32 0.0, %v1684
    %v1686 = vpop.f32.mrb[0].mxu0
    %1687 = vdwg.mxu0
    %v1688 = vrcp.pop %v1601
    %v1689 = vrcp.pop %v1604
    %v1690 = vmul.f32 %v1680, %v1688
    %v1691 = vmul.f32 %v1685, %v1689
    %v1692 = vadd.f32 %v1498, %v1690
    %v1693 = vadd.f32 %v1499, %v1691
    %v1694 = vld [vmem:[#allocation25] sm:$0xff]
    %v1695 = vld [vmem:[#allocation25 + $0x8] sm:$0xff]
    %v1696 = vld [vmem:[#allocation25 + $0x10] sm:$0xff]
    %v1697 = vld [vmem:[#allocation25 + $0x18] sm:$0xff]
    %v1698 = vld [vmem:[#allocation26] sm:$0x1]
    %v1700 = vlaneseq
    %v1701 = vshrl.u32 %v1700, 7
    %v1702 = vsub.s32 0, %v1701
    %v1703 = vrot.slane %v1698, %v1702
    %v1706 = vsel %vm581, %v1692, 0
    %v1709 = vsel %vm581, %v1693, 0
    %1711 = vmatprep.subr.mxu0 0.0
    %1712 = vmatpush1.msra.mxu0 %v1694
    %1713 = vmatprep.subr.mxu0 0.0
    %1714 = vmatpush1.msra.mxu0 %v1695
    %1715 = vmatprep.subr.mxu0 0.0
    %1716 = vmatpush1.msra.mxu0 %v1696
    %1717 = vmatprep.subr.mxu0 0.0
    %1718 = vmatpush1.msra.mxu0 %v1697
    %1719 = vmatprep.subr.mxu0 0.0
    %1720 = vmatpush1.msra.mxu0 0.0
    %1721 = vmatprep.subr.mxu0 0.0
    %1722 = vmatpush1.msra.mxu0 0.0
    %1723 = vmatprep.subr.mxu0 0.0
    %1724 = vmatpush1.msra.mxu0 0.0
    %1725 = vmatprep.subr.mxu0 0.0
    %1726 = vmatpush1.msra.mxu0 0.0
    %1727 = vmatprep.subr.mxu0 0.0
    %1728 = vmatpush1.msra.mxu0 0.0
    %1729 = vmatprep.subr.mxu0 0.0
    %1730 = vmatpush1.msra.mxu0 0.0
    %1731 = vmatprep.subr.mxu0 0.0
    %1732 = vmatpush1.msra.mxu0 0.0
    %1733 = vmatprep.subr.mxu0 0.0
    %1734 = vmatpush1.msra.mxu0 0.0
    %1735 = vmatprep.subr.mxu0 0.0
    %1736 = vmatpush1.msra.mxu0 0.0
    %1737 = vmatprep.subr.mxu0 0.0
    %1738 = vmatpush1.msra.mxu0 0.0
    %1739 = vmatprep.subr.mxu0 0.0
    %1740 = vmatpush1.msra.mxu0 0.0
    %1741 = vmatprep.subr.mxu0 0.0
    %1742 = vmatpush1.msra.mxu0 0.0
    %1743 = vmatprep.subr.mxu0 0.0
    %1744 = vmatpush1.msra.mxu0 0.0
    %1745 = vmatprep.subr.mxu0 0.0
    %1746 = vmatpush1.msra.mxu0 0.0
    %1747 = vmatprep.subr.mxu0 0.0
    %1748 = vmatpush1.msra.mxu0 0.0
    %1749 = vmatprep.subr.mxu0 0.0
    %1750 = vmatpush1.msra.mxu0 0.0
    %1751 = vmatprep.subr.mxu0 0.0
    %1752 = vmatpush1.msra.mxu0 0.0
    %1753 = vmatprep.subr.mxu0 0.0
    %1754 = vmatpush1.msra.mxu0 0.0
    %1755 = vmatprep.subr.mxu0 0.0
    %1756 = vmatpush1.msra.mxu0 0.0
    %1757 = vmatprep.subr.mxu0 0.0
    %1758 = vmatpush1.msra.mxu0 0.0
    %1759 = vmatprep.subr.mxu0 0.0
    %1760 = vmatpush1.msra.mxu0 0.0
    %1761 = vmatprep.subr.mxu0 0.0
    %1762 = vmatpush1.msra.mxu0 0.0
    %1763 = vmatprep.subr.mxu0 0.0
    %1764 = vmatpush1.msra.mxu0 0.0
    %1765 = vmatprep.subr.mxu0 0.0
    %1766 = vmatpush1.msra.mxu0 0.0
    %1767 = vmatprep.subr.mxu0 0.0
    %1768 = vmatpush1.msra.mxu0 0.0
    %1769 = vmatprep.subr.mxu0 0.0
    %1770 = vmatpush1.msra.mxu0 0.0
    %1771 = vmatprep.subr.mxu0 0.0
    %1772 = vmatpush1.msra.mxu0 0.0
    %1773 = vmatprep.subr.mxu0 0.0
    %1774 = vmatpush1.msra.mxu0 0.0
    %1775 = vmatprep.mubr.f32.mxu0 0.0
    %1776 = vmatmul.mubr.f32.gmra.mrb[0].mxu0 %v1706
    %v1777 = vpop.f32.mrb[0].mxu0
    %v1778 = vadd.f32 %v1703, %v1777
    %v1779 = vpop.f32.mrb[0].mxu0
    %1780 = vmatprep.mubr.f32.mxu0 0.0
    %1781 = vmatmul.mubr.f32.gmra.mrb[0].mxu0 %v1709
    %v1782 = vpop.f32.mrb[0].mxu0
    %v1783 = vadd.f32 %v1703, %v1782
    %v1784 = vpop.f32.mrb[0].mxu0
    %1785 = vdwg.mxu0
    %v1786 = vadd.f32 %v623, %v1778
    %v1787 = vadd.f32 %v624, %v1783
    %v1788 = vld [vmem:[#allocation28] sm:$0x1]
    %v1789 = vld [vmem:[#allocation29] sm:$0x1]
    %v1790 = vsel %vm581, %v1786, 0.0
    %1791 = vadd.xlane.f32.xlu0 %v1790
    %v1792 = vpop.xlane.xlu0 %1791
    %v1793 = vsel %vm581, %v1787, 0.0
    %1794 = vadd.xlane.f32.xlu0 %v1793
    %v1795 = vpop.xlane.xlu0 %1794
    %v1796 = vmul.f32 %v1792, %v588
    %v1797 = vmul.f32 %v1795, %v588
    %v1798 = vsub.f32 %v1786, %v1796
    %v1799 = vsub.f32 %v1787, %v1797
    %v1800 = vmul.f32 %v1798, %v1798
    %v1801 = vmul.f32 %v1799, %v1799
    %v1802 = vsel %vm581, %v1800, 0.0
    %1803 = vadd.xlane.f32.xlu0 %v1802
    %v1804 = vpop.xlane.xlu0 %1803
    %v1805 = vsel %vm581, %v1801, 0.0
    %1806 = vadd.xlane.f32.xlu0 %v1805
    %v1807 = vpop.xlane.xlu0 %1806
    %v1808 = vmul.f32 %v1804, %v588
    %v1809 = vmul.f32 %v1807, %v588
    %v1810 = vadd.f32 %v1808, 1e-12
    %v1811 = vadd.f32 %v1809, 1e-12
    %v1812 = vrsqrt.pop %v1810
    %v1813 = vrsqrt.pop %v1811
    %v1814 = vmul.f32 %v1798, %v1812
    %v1815 = vmul.f32 %v1799, %v1813
    %v1817 = vlaneseq
    %v1818 = vshrl.u32 %v1817, 7
    %v1819 = vsub.s32 0, %v1818
    %v1820 = vrot.slane %v1788, %v1819
    %v1822 = vmul.f32 %v1814, %v1820
    %v1823 = vmul.f32 %v1815, %v1820
    %v1825 = vlaneseq
    %v1826 = vshrl.u32 %v1825, 7
    %v1827 = vsub.s32 0, %v1826
    %v1828 = vrot.slane %v1789, %v1827
    %v1830 = vadd.f32 %v1822, %v1828
    %v1831 = vadd.f32 %v1823, %v1828
    %v1832 = vld [vmem:[#allocation31] sm:$0xff]
    %v1833 = vld [vmem:[#allocation31 + $0x8] sm:$0xff]
    %v1834 = vld [vmem:[#allocation31 + $0x10] sm:$0xff]
    %v1835 = vld [vmem:[#allocation31 + $0x18] sm:$0xff]
    %v1836 = vld [vmem:[#allocation32] sm:$0x1]
    %v1838 = vlaneseq
    %v1839 = vshrl.u32 %v1838, 7
    %v1840 = vsub.s32 0, %v1839
    %v1841 = vrot.slane %v1836, %v1840
    %v1844 = vsel %vm581, %v1830, 0
    %v1847 = vsel %vm581, %v1831, 0
    %1849 = vmatprep.subr.mxu0 0.0
    %1850 = vmatpush1.msra.mxu0 %v1832
    %1851 = vmatprep.subr.mxu0 0.0
    %1852 = vmatpush1.msra.mxu0 %v1833
    %1853 = vmatprep.subr.mxu0 0.0
    %1854 = vmatpush1.msra.mxu0 %v1834
    %1855 = vmatprep.subr.mxu0 0.0
    %1856 = vmatpush1.msra.mxu0 %v1835
    %1857 = vmatprep.subr.mxu0 0.0
    %1858 = vmatpush1.msra.mxu0 0.0
    %1859 = vmatprep.subr.mxu0 0.0
    %1860 = vmatpush1.msra.mxu0 0.0
    %1861 = vmatprep.subr.mxu0 0.0
    %1862 = vmatpush1.msra.mxu0 0.0
    %1863 = vmatprep.subr.mxu0 0.0
    %1864 = vmatpush1.msra.mxu0 0.0
    %1865 = vmatprep.subr.mxu0 0.0
    %1866 = vmatpush1.msra.mxu0 0.0
    %1867 = vmatprep.subr.mxu0 0.0
    %1868 = vmatpush1.msra.mxu0 0.0
    %1869 = vmatprep.subr.mxu0 0.0
    %1870 = vmatpush1.msra.mxu0 0.0
    %1871 = vmatprep.subr.mxu0 0.0
    %1872 = vmatpush1.msra.mxu0 0.0
    %1873 = vmatprep.subr.mxu0 0.0
    %1874 = vmatpush1.msra.mxu0 0.0
    %1875 = vmatprep.subr.mxu0 0.0
    %1876 = vmatpush1.msra.mxu0 0.0
    %1877 = vmatprep.subr.mxu0 0.0
    %1878 = vmatpush1.msra.mxu0 0.0
    %1879 = vmatprep.subr.mxu0 0.0
    %1880 = vmatpush1.msra.mxu0 0.0
    %1881 = vmatprep.subr.mxu0 0.0
    %1882 = vmatpush1.msra.mxu0 0.0
    %1883 = vmatprep.subr.mxu0 0.0
    %1884 = vmatpush1.msra.mxu0 0.0
    %1885 = vmatprep.subr.mxu0 0.0
    %1886 = vmatpush1.msra.mxu0 0.0
    %1887 = vmatprep.subr.mxu0 0.0
    %1888 = vmatpush1.msra.mxu0 0.0
    %1889 = vmatprep.subr.mxu0 0.0
    %1890 = vmatpush1.msra.mxu0 0.0
    %1891 = vmatprep.subr.mxu0 0.0
    %1892 = vmatpush1.msra.mxu0 0.0
    %1893 = vmatprep.subr.mxu0 0.0
    %1894 = vmatpush1.msra.mxu0 0.0
    %1895 = vmatprep.subr.mxu0 0.0
    %1896 = vmatpush1.msra.mxu0 0.0
    %1897 = vmatprep.subr.mxu0 0.0
    %1898 = vmatpush1.msra.mxu0 0.0
    %1899 = vmatprep.subr.mxu0 0.0
    %1900 = vmatpush1.msra.mxu0 0.0
    %1901 = vmatprep.subr.mxu0 0.0
    %1902 = vmatpush1.msra.mxu0 0.0
    %1903 = vmatprep.subr.mxu0 0.0
    %1904 = vmatpush1.msra.mxu0 0.0
    %1905 = vmatprep.subr.mxu0 0.0
    %1906 = vmatpush1.msra.mxu0 0.0
    %1907 = vmatprep.subr.mxu0 0.0
    %1908 = vmatpush1.msra.mxu0 0.0
    %1909 = vmatprep.subr.mxu0 0.0
    %1910 = vmatpush1.msra.mxu0 0.0
    %1911 = vmatprep.subr.mxu0 0.0
    %1912 = vmatpush1.msra.mxu0 0.0
    %1913 = vmatprep.mubr.f32.mxu0 0.0
    %1914 = vmatmul.mubr.f32.gmra.mrb[0].mxu0 %v1844
    %v1915 = vpop.f32.mrb[0].mxu0
    %v1916 = vadd.f32 %v1841, %v1915
    %v1917 = vpop.f32.mrb[0].mxu0
    %1918 = vmatprep.mubr.f32.mxu0 0.0
    %1919 = vmatmul.mubr.f32.gmra.mrb[0].mxu0 %v1847
    %v1920 = vpop.f32.mrb[0].mxu0
    %v1921 = vadd.f32 %v1841, %v1920
    %v1922 = vpop.f32.mrb[0].mxu0
    %1923 = vdwg.mxu0
    %v1924 = vmul.f32 %v1916, 0.5
    %v1925 = vmul.f32 %v1921, 0.5
    %v1926 = vmul.f32 %v1916, 0.044715
    %v1927 = vmul.f32 %v1921, 0.044715
    %v1928 = vmul.f32 %v1926, %v1916
    %v1929 = vmul.f32 %v1927, %v1921
    %v1930 = vmul.f32 %v1928, %v1916
    %v1931 = vmul.f32 %v1929, %v1921
    %v1932 = vadd.f32 %v1916, %v1930
    %v1933 = vadd.f32 %v1921, %v1931
    %v1934 = vmul.f32 %v1932, 0.7978846
    %v1935 = vmul.f32 %v1933, 0.7978846
    %v1936 = vtanh.pop %v1934
    %v1937 = vtanh.pop %v1935
    %v1938 = vadd.f32 %v1936, 1.0
    %v1939 = vadd.f32 %v1937, 1.0
    %v1940 = vmul.f32 %v1924, %v1938
    %v1941 = vmul.f32 %v1925, %v1939
    %v1942 = vld [vmem:[#allocation34] sm:$0xff]
    %v1943 = vld [vmem:[#allocation34 + $0x8] sm:$0xff]
    %v1944 = vld [vmem:[#allocation34 + $0x10] sm:$0xff]
    %v1945 = vld [vmem:[#allocation34 + $0x18] sm:$0xff]
    %v1946 = vld [vmem:[#allocation34 + $0x20] sm:$0xff]
    %v1947 = vld [vmem:[#allocation34 + $0x28] sm:$0xff]
    %v1948 = vld [vmem:[#allocation34 + $0x30] sm:$0xff]
    %v1949 = vld [vmem:[#allocation34 + $0x38] sm:$0xff]
    %v1950 = vld [vmem:[#allocation35] sm:$0x1]
    %v1952 = vlaneseq
    %v1953 = vshrl.u32 %v1952, 7
    %v1954 = vsub.s32 0, %v1953
    %v1955 = vrot.slane %v1950, %v1954
    %vm1957 = vcmask 523264
    %v1959 = vsel %vm1957, %v1940, 0
    %v1962 = vsel %vm1957, %v1941, 0
    %1964 = vmatprep.subr.mxu0 0.0
    %1965 = vmatpush1.msra.mxu0 %v1942
    %1966 = vmatprep.subr.mxu0 0.0
    %1967 = vmatpush1.msra.mxu0 %v1943
    %1968 = vmatprep.subr.mxu0 0.0
    %1969 = vmatpush1.msra.mxu0 %v1944
    %1970 = vmatprep.subr.mxu0 0.0
    %1971 = vmatpush1.msra.mxu0 %v1945
    %1972 = vmatprep.subr.mxu0 0.0
    %1973 = vmatpush1.msra.mxu0 %v1946
    %1974 = vmatprep.subr.mxu0 0.0
    %1975 = vmatpush1.msra.mxu0 %v1947
    %1976 = vmatprep.subr.mxu0 0.0
    %1977 = vmatpush1.msra.mxu0 %v1948
    %1978 = vmatprep.subr.mxu0 0.0
    %1979 = vmatpush1.msra.mxu0 %v1949
    %1980 = vmatprep.subr.mxu0 0.0
    %1981 = vmatpush1.msra.mxu0 0.0
    %1982 = vmatprep.subr.mxu0 0.0
    %1983 = vmatpush1.msra.mxu0 0.0
    %1984 = vmatprep.subr.mxu0 0.0
    %1985 = vmatpush1.msra.mxu0 0.0
    %1986 = vmatprep.subr.mxu0 0.0
    %1987 = vmatpush1.msra.mxu0 0.0
    %1988 = vmatprep.subr.mxu0 0.0
    %1989 = vmatpush1.msra.mxu0 0.0
    %1990 = vmatprep.subr.mxu0 0.0
    %1991 = vmatpush1.msra.mxu0 0.0
    %1992 = vmatprep.subr.mxu0 0.0
    %1993 = vmatpush1.msra.mxu0 0.0
    %1994 = vmatprep.subr.mxu0 0.0
    %1995 = vmatpush1.msra.mxu0 0.0
    %1996 = vmatprep.subr.mxu0 0.0
    %1997 = vmatpush1.msra.mxu0 0.0
    %1998 = vmatprep.subr.mxu0 0.0
    %1999 = vmatpush1.msra.mxu0 0.0
    %2000 = vmatprep.subr.mxu0 0.0
    %2001 = vmatpush1.msra.mxu0 0.0
    %2002 = vmatprep.subr.mxu0 0.0
    %2003 = vmatpush1.msra.mxu0 0.0
    %2004 = vmatprep.subr.mxu0 0.0
    %2005 = vmatpush1.msra.mxu0 0.0
    %2006 = vmatprep.subr.mxu0 0.0
    %2007 = vmatpush1.msra.mxu0 0.0
    %2008 = vmatprep.subr.mxu0 0.0
    %2009 = vmatpush1.msra.mxu0 0.0
    %2010 = vmatprep.subr.mxu0 0.0
    %2011 = vmatpush1.msra.mxu0 0.0
    %2012 = vmatprep.subr.mxu0 0.0
    %2013 = vmatpush1.msra.mxu0 0.0
    %2014 = vmatprep.subr.mxu0 0.0
    %2015 = vmatpush1.msra.mxu0 0.0
    %2016 = vmatprep.subr.mxu0 0.0
    %2017 = vmatpush1.msra.mxu0 0.0
    %2018 = vmatprep.subr.mxu0 0.0
    %2019 = vmatpush1.msra.mxu0 0.0
    %2020 = vmatprep.subr.mxu0 0.0
    %2021 = vmatpush1.msra.mxu0 0.0
    %2022 = vmatprep.subr.mxu0 0.0
    %2023 = vmatpush1.msra.mxu0 0.0
    %2024 = vmatprep.subr.mxu0 0.0
    %2025 = vmatpush1.msra.mxu0 0.0
    %2026 = vmatprep.subr.mxu0 0.0
    %2027 = vmatpush1.msra.mxu0 0.0
    %2028 = vmatprep.mubr.f32.mxu0 0.0
    %2029 = vmatmul.mubr.f32.gmra.mrb[0].mxu0 %v1959
    %v2030 = vpop.f32.mrb[0].mxu0
    %v2031 = vadd.f32 %v1955, %v2030
    %v2032 = vpop.f32.mrb[0].mxu0
    %2033 = vmatprep.mubr.f32.mxu0 0.0
    %2034 = vmatmul.mubr.f32.gmra.mrb[0].mxu0 %v1962
    %v2035 = vpop.f32.mrb[0].mxu0
    %v2036 = vadd.f32 %v1955, %v2035
    %v2037 = vpop.f32.mrb[0].mxu0
    %2038 = vdwg.mxu0
    %v2039 = vadd.f32 %v1830, %v2031
    %v2040 = vadd.f32 %v1831, %v2036
    %v2041 = vld [vmem:[#allocation37] sm:$0x1]
    %v2042 = vld [vmem:[#allocation38] sm:$0x1]
    %v2043 = vsel %vm581, %v2039, 0.0
    %2044 = vadd.xlane.f32.xlu0 %v2043
    %v2045 = vpop.xlane.xlu0 %2044
    %v2046 = vsel %vm581, %v2040, 0.0
    %2047 = vadd.xlane.f32.xlu0 %v2046
    %v2048 = vpop.xlane.xlu0 %2047
    %v2049 = vmul.f32 %v2045, %v588
    %v2050 = vmul.f32 %v2048, %v588
    %v2051 = vsub.f32 %v2039, %v2049
    %v2052 = vsub.f32 %v2040, %v2050
    %v2053 = vmul.f32 %v2051, %v2051
    %v2054 = vmul.f32 %v2052, %v2052
    %v2055 = vsel %vm581, %v2053, 0.0
    %2056 = vadd.xlane.f32.xlu0 %v2055
    %v2057 = vpop.xlane.xlu0 %2056
    %v2058 = vsel %vm581, %v2054, 0.0
    %2059 = vadd.xlane.f32.xlu0 %v2058
    %v2060 = vpop.xlane.xlu0 %2059
    %v2061 = vmul.f32 %v2057, %v588
    %v2062 = vmul.f32 %v2060, %v588
    %v2063 = vadd.f32 %v2061, 1e-12
    %v2064 = vadd.f32 %v2062, 1e-12
    %v2065 = vrsqrt.pop %v2063
    %v2066 = vrsqrt.pop %v2064
    %v2067 = vmul.f32 %v2051, %v2065
    %v2068 = vmul.f32 %v2052, %v2066
    %v2070 = vlaneseq
    %v2071 = vshrl.u32 %v2070, 7
    %v2072 = vsub.s32 0, %v2071
    %v2073 = vrot.slane %v2041, %v2072
    %v2075 = vmul.f32 %v2067, %v2073
    %v2076 = vmul.f32 %v2068, %v2073
    %v2078 = vlaneseq
    %v2079 = vshrl.u32 %v2078, 7
    %v2080 = vsub.s32 0, %v2079
    %v2081 = vrot.slane %v2042, %v2080
    %v2083 = vadd.f32 %v2075, %v2081
    %v2084 = vadd.f32 %v2076, %v2081
    %s2085 = scalar_lea.vmem [#allocation16], 32
    %v2086 = vld [vmem:[%s2085] sm:$0xff]
    %v2087 = vld [vmem:[%s2085 + $0x8] sm:$0xff]
    %v2088 = vld [vmem:[%s2085 + $0x10] sm:$0xff]
    %v2089 = vld [vmem:[%s2085 + $0x18] sm:$0xff]
    %s2090 = scalar_lea.vmem [#allocation17], 1
    %v2091 = vld [vmem:[%s2090] sm:$0x1]
    %v2093 = vlaneseq
    %v2094 = vshrl.u32 %v2093, 7
    %v2095 = vsub.s32 0, %v2094
    %v2096 = vrot.slane %v2091, %v2095
    %v2099 = vsel %vm581, %v2083, 0
    %v2102 = vsel %vm581, %v2084, 0
    %2104 = vmatprep.subr.mxu0 0.0
    %2105 = vmatpush1.msra.mxu0 %v2086
    %2106 = vmatprep.subr.mxu0 0.0
    %2107 = vmatpush1.msra.mxu0 %v2087
    %2108 = vmatprep.subr.mxu0 0.0
    %2109 = vmatpush1.msra.mxu0 %v2088
    %2110 = vmatprep.subr.mxu0 0.0
    %2111 = vmatpush1.msra.mxu0 %v2089
    %2112 = vmatprep.subr.mxu0 0.0
    %2113 = vmatpush1.msra.mxu0 0.0
    %2114 = vmatprep.subr.mxu0 0.0
    %2115 = vmatpush1.msra.mxu0 0.0
    %2116 = vmatprep.subr.mxu0 0.0
    %2117 = vmatpush1.msra.mxu0 0.0
    %2118 = vmatprep.subr.mxu0 0.0
    %2119 = vmatpush1.msra.mxu0 0.0
    %2120 = vmatprep.subr.mxu0 0.0
    %2121 = vmatpush1.msra.mxu0 0.0
    %2122 = vmatprep.subr.mxu0 0.0
    %2123 = vmatpush1.msra.mxu0 0.0
    %2124 = vmatprep.subr.mxu0 0.0
    %2125 = vmatpush1.msra.mxu0 0.0
    %2126 = vmatprep.subr.mxu0 0.0
    %2127 = vmatpush1.msra.mxu0 0.0
    %2128 = vmatprep.subr.mxu0 0.0
    %2129 = vmatpush1.msra.mxu0 0.0
    %2130 = vmatprep.subr.mxu0 0.0
    %2131 = vmatpush1.msra.mxu0 0.0
    %2132 = vmatprep.subr.mxu0 0.0
    %2133 = vmatpush1.msra.mxu0 0.0
    %2134 = vmatprep.subr.mxu0 0.0
    %2135 = vmatpush1.msra.mxu0 0.0
    %2136 = vmatprep.subr.mxu0 0.0
    %2137 = vmatpush1.msra.mxu0 0.0
    %2138 = vmatprep.subr.mxu0 0.0
    %2139 = vmatpush1.msra.mxu0 0.0
    %2140 = vmatprep.subr.mxu0 0.0
    %2141 = vmatpush1.msra.mxu0 0.0
    %2142 = vmatprep.subr.mxu0 0.0
    %2143 = vmatpush1.msra.mxu0 0.0
    %2144 = vmatprep.subr.mxu0 0.0
    %2145 = vmatpush1.msra.mxu0 0.0
    %2146 = vmatprep.subr.mxu0 0.0
    %2147 = vmatpush1.msra.mxu0 0.0
    %2148 = vmatprep.subr.mxu0 0.0
    %2149 = vmatpush1.msra.mxu0 0.0
    %2150 = vmatprep.subr.mxu0 0.0
    %2151 = vmatpush1.msra.mxu0 0.0
    %2152 = vmatprep.subr.mxu0 0.0
    %2153 = vmatpush1.msra.mxu0 0.0
    %2154 = vmatprep.subr.mxu0 0.0
    %2155 = vmatpush1.msra.mxu0 0.0
    %2156 = vmatprep.subr.mxu0 0.0
    %2157 = vmatpush1.msra.mxu0 0.0
    %2158 = vmatprep.subr.mxu0 0.0
    %2159 = vmatpush1.msra.mxu0 0.0
    %2160 = vmatprep.subr.mxu0 0.0
    %2161 = vmatpush1.msra.mxu0 0.0
    %2162 = vmatprep.subr.mxu0 0.0
    %2163 = vmatpush1.msra.mxu0 0.0
    %2164 = vmatprep.subr.mxu0 0.0
    %2165 = vmatpush1.msra.mxu0 0.0
    %2166 = vmatprep.subr.mxu0 0.0
    %2167 = vmatpush1.msra.mxu0 0.0
    %2168 = vmatprep.mubr.f32.mxu0 0.0
    %2169 = vmatmul.mubr.f32.gmra.mrb[0].mxu0 %v2099
    %v2170 = vpop.f32.mrb[0].mxu0
    %v2171 = vadd.f32 %v2096, %v2170
    %v2172 = vpop.f32.mrb[0].mxu0
    %2173 = vmatprep.mubr.f32.mxu0 0.0
    %2174 = vmatmul.mubr.f32.gmra.mrb[0].mxu0 %v2102
    %v2175 = vpop.f32.mrb[0].mxu0
    %v2176 = vadd.f32 %v2096, %v2175
    %v2177 = vpop.f32.mrb[0].mxu0
    %2178 = vdwg.mxu0
    %s2179 = scalar_lea.vmem [#allocation19], 32
    %v2180 = vld [vmem:[%s2179] sm:$0xff]
    %v2181 = vld [vmem:[%s2179 + $0x8] sm:$0xff]
    %v2182 = vld [vmem:[%s2179 + $0x10] sm:$0xff]
    %v2183 = vld [vmem:[%s2179 + $0x18] sm:$0xff]
    %s2184 = scalar_lea.vmem [#allocation20], 1
    %v2185 = vld [vmem:[%s2184] sm:$0x1]
    %v2187 = vlaneseq
    %v2188 = vshrl.u32 %v2187, 7
    %v2189 = vsub.s32 0, %v2188
    %v2190 = vrot.slane %v2185, %v2189
    %2192 = vmatprep.subr.mxu0 0.0
    %2193 = vmatpush1.msra.mxu0 %v2180
    %2194 = vmatprep.subr.mxu0 0.0
    %2195 = vmatpush1.msra.mxu0 %v2181
    %2196 = vmatprep.subr.mxu0 0.0
    %2197 = vmatpush1.msra.mxu0 %v2182
    %2198 = vmatprep.subr.mxu0 0.0
    %2199 = vmatpush1.msra.mxu0 %v2183
    %2200 = vmatprep.subr.mxu0 0.0
    %2201 = vmatpush1.msra.mxu0 0.0
    %2202 = vmatprep.subr.mxu0 0.0
    %2203 = vmatpush1.msra.mxu0 0.0
    %2204 = vmatprep.subr.mxu0 0.0
    %2205 = vmatpush1.msra.mxu0 0.0
    %2206 = vmatprep.subr.mxu0 0.0
    %2207 = vmatpush1.msra.mxu0 0.0
    %2208 = vmatprep.subr.mxu0 0.0
    %2209 = vmatpush1.msra.mxu0 0.0
    %2210 = vmatprep.subr.mxu0 0.0
    %2211 = vmatpush1.msra.mxu0 0.0
    %2212 = vmatprep.subr.mxu0 0.0
    %2213 = vmatpush1.msra.mxu0 0.0
    %2214 = vmatprep.subr.mxu0 0.0
    %2215 = vmatpush1.msra.mxu0 0.0
    %2216 = vmatprep.subr.mxu0 0.0
    %2217 = vmatpush1.msra.mxu0 0.0
    %2218 = vmatprep.subr.mxu0 0.0
    %2219 = vmatpush1.msra.mxu0 0.0
    %2220 = vmatprep.subr.mxu0 0.0
    %2221 = vmatpush1.msra.mxu0 0.0
    %2222 = vmatprep.subr.mxu0 0.0
    %2223 = vmatpush1.msra.mxu0 0.0
    %2224 = vmatprep.subr.mxu0 0.0
    %2225 = vmatpush1.msra.mxu0 0.0
    %2226 = vmatprep.subr.mxu0 0.0
    %2227 = vmatpush1.msra.mxu0 0.0
    %2228 = vmatprep.subr.mxu0 0.0
    %2229 = vmatpush1.msra.mxu0 0.0
    %2230 = vmatprep.subr.mxu0 0.0
    %2231 = vmatpush1.msra.mxu0 0.0
    %2232 = vmatprep.subr.mxu0 0.0
    %2233 = vmatpush1.msra.mxu0 0.0
    %2234 = vmatprep.subr.mxu0 0.0
    %2235 = vmatpush1.msra.mxu0 0.0
    %2236 = vmatprep.subr.mxu0 0.0
    %2237 = vmatpush1.msra.mxu0 0.0
    %2238 = vmatprep.subr.mxu0 0.0
    %2239 = vmatpush1.msra.mxu0 0.0
    %2240 = vmatprep.subr.mxu0 0.0
    %2241 = vmatpush1.msra.mxu0 0.0
    %2242 = vmatprep.subr.mxu0 0.0
    %2243 = vmatpush1.msra.mxu0 0.0
    %2244 = vmatprep.subr.mxu0 0.0
    %2245 = vmatpush1.msra.mxu0 0.0
    %2246 = vmatprep.subr.mxu0 0.0
    %2247 = vmatpush1.msra.mxu0 0.0
    %2248 = vmatprep.subr.mxu0 0.0
    %2249 = vmatpush1.msra.mxu0 0.0
    %2250 = vmatprep.subr.mxu0 0.0
    %2251 = vmatpush1.msra.mxu0 0.0
    %2252 = vmatprep.subr.mxu0 0.0
    %2253 = vmatpush1.msra.mxu0 0.0
    %2254 = vmatprep.subr.mxu0 0.0
    %2255 = vmatpush1.msra.mxu0 0.0
    %2256 = vmatprep.mubr.f32.mxu0 0.0
    %2257 = vmatmul.mubr.f32.gmra.mrb[0].mxu0 %v2099
    %v2258 = vpop.f32.mrb[0].mxu0
    %v2259 = vadd.f32 %v2190, %v2258
    %v2260 = vpop.f32.mrb[0].mxu0
    %2261 = vmatprep.mubr.f32.mxu0 0.0
    %2262 = vmatmul.mubr.f32.gmra.mrb[0].mxu0 %v2102
    %v2263 = vpop.f32.mrb[0].mxu0
    %v2264 = vadd.f32 %v2190, %v2263
    %v2265 = vpop.f32.mrb[0].mxu0
    %2266 = vdwg.mxu0
    %s2267 = scalar_lea.vmem [#allocation22], 32
    %v2268 = vld [vmem:[%s2267] sm:$0xff]
    %v2269 = vld [vmem:[%s2267 + $0x8] sm:$0xff]
    %v2270 = vld [vmem:[%s2267 + $0x10] sm:$0xff]
    %v2271 = vld [vmem:[%s2267 + $0x18] sm:$0xff]
    %s2272 = scalar_lea.vmem [#allocation23], 1
    %v2273 = vld [vmem:[%s2272] sm:$0x1]
    %v2275 = vlaneseq
    %v2276 = vshrl.u32 %v2275, 7
    %v2277 = vsub.s32 0, %v2276
    %v2278 = vrot.slane %v2273, %v2277
    %2280 = vmatprep.subr.mxu0 0.0
    %2281 = vmatpush1.msra.mxu0 %v2268
    %2282 = vmatprep.subr.mxu0 0.0
    %2283 = vmatpush1.msra.mxu0 %v2269
    %2284 = vmatprep.subr.mxu0 0.0
    %2285 = vmatpush1.msra.mxu0 %v2270
    %2286 = vmatprep.subr.mxu0 0.0
    %2287 = vmatpush1.msra.mxu0 %v2271
    %2288 = vmatprep.subr.mxu0 0.0
    %2289 = vmatpush1.msra.mxu0 0.0
    %2290 = vmatprep.subr.mxu0 0.0
    %2291 = vmatpush1.msra.mxu0 0.0
    %2292 = vmatprep.subr.mxu0 0.0
    %2293 = vmatpush1.msra.mxu0 0.0
    %2294 = vmatprep.subr.mxu0 0.0
    %2295 = vmatpush1.msra.mxu0 0.0
    %2296 = vmatprep.subr.mxu0 0.0
    %2297 = vmatpush1.msra.mxu0 0.0
    %2298 = vmatprep.subr.mxu0 0.0
    %2299 = vmatpush1.msra.mxu0 0.0
    %2300 = vmatprep.subr.mxu0 0.0
    %2301 = vmatpush1.msra.mxu0 0.0
    %2302 = vmatprep.subr.mxu0 0.0
    %2303 = vmatpush1.msra.mxu0 0.0
    %2304 = vmatprep.subr.mxu0 0.0
    %2305 = vmatpush1.msra.mxu0 0.0
    %2306 = vmatprep.subr.mxu0 0.0
    %2307 = vmatpush1.msra.mxu0 0.0
    %2308 = vmatprep.subr.mxu0 0.0
    %2309 = vmatpush1.msra.mxu0 0.0
    %2310 = vmatprep.subr.mxu0 0.0
    %2311 = vmatpush1.msra.mxu0 0.0
    %2312 = vmatprep.subr.mxu0 0.0
    %2313 = vmatpush1.msra.mxu0 0.0
    %2314 = vmatprep.subr.mxu0 0.0
    %2315 = vmatpush1.msra.mxu0 0.0
    %2316 = vmatprep.subr.mxu0 0.0
    %2317 = vmatpush1.msra.mxu0 0.0
    %2318 = vmatprep.subr.mxu0 0.0
    %2319 = vmatpush1.msra.mxu0 0.0
    %2320 = vmatprep.subr.mxu0 0.0
    %2321 = vmatpush1.msra.mxu0 0.0
    %2322 = vmatprep.subr.mxu0 0.0
    %2323 = vmatpush1.msra.mxu0 0.0
    %2324 = vmatprep.subr.mxu0 0.0
    %2325 = vmatpush1.msra.mxu0 0.0
    %2326 = vmatprep.subr.mxu0 0.0
    %2327 = vmatpush1.msra.mxu0 0.0
    %2328 = vmatprep.subr.mxu0 0.0
    %2329 = vmatpush1.msra.mxu0 0.0
    %2330 = vmatprep.subr.mxu0 0.0
    %2331 = vmatpush1.msra.mxu0 0.0
    %2332 = vmatprep.subr.mxu0 0.0
    %2333 = vmatpush1.msra.mxu0 0.0
    %2334 = vmatprep.subr.mxu0 0.0
    %2335 = vmatpush1.msra.mxu0 0.0
    %2336 = vmatprep.subr.mxu0 0.0
    %2337 = vmatpush1.msra.mxu0 0.0
    %2338 = vmatprep.subr.mxu0 0.0
    %2339 = vmatpush1.msra.mxu0 0.0
    %2340 = vmatprep.subr.mxu0 0.0
    %2341 = vmatpush1.msra.mxu0 0.0
    %2342 = vmatprep.subr.mxu0 0.0
    %2343 = vmatpush1.msra.mxu0 0.0
    %2344 = vmatprep.mubr.f32.mxu0 0.0
    %2345 = vmatmul.mubr.f32.gmra.mrb[0].mxu0 %v2099
    %v2346 = vpop.f32.mrb[0].mxu0
    %v2347 = vadd.f32 %v2278, %v2346
    %v2348 = vpop.f32.mrb[0].mxu0
    %2349 = vmatprep.mubr.f32.mxu0 0.0
    %2350 = vmatmul.mubr.f32.gmra.mrb[0].mxu0 %v2102
    %v2351 = vpop.f32.mrb[0].mxu0
    %v2352 = vadd.f32 %v2278, %v2351
    %v2353 = vpop.f32.mrb[0].mxu0
    %2354 = vdwg.mxu0
    %v2355 = vmul.f32 %v2171, %v631
    %v2356 = vmul.f32 %v2176, %v631
    %v2358 = vsel %vm581, %v2355, 0
    %v2361 = vsel %vm581, %v2356, 0
    %v2364 = vsel %vm581, %v2259, 0
    %v2367 = vsel %vm581, %v2264, 0
    %2369 = vmatprep.subr.mxu0 0.0
    %2370 = vmatpush1.xpose.msra.mxu0 %v2364
    %2371 = vmatprep.subr.mxu0 0.0
    %2372 = vmatpush1.xpose.msra.mxu0 %v2367
    %2373 = vmatprep.subr.mxu0 0.0
    %2374 = vmatpush1.xpose.msra.mxu0 0.0
    %2375 = vmatprep.subr.mxu0 0.0
    %2376 = vmatpush1.xpose.msra.mxu0 0.0
    %2377 = vmatprep.subr.mxu0 0.0
    %2378 = vmatpush1.xpose.msra.mxu0 0.0
    %2379 = vmatprep.subr.mxu0 0.0
    %2380 = vmatpush1.xpose.msra.mxu0 0.0
    %2381 = vmatprep.subr.mxu0 0.0
    %2382 = vmatpush1.xpose.msra.mxu0 0.0
    %2383 = vmatprep.subr.mxu0 0.0
    %2384 = vmatpush1.xpose.msra.mxu0 0.0
    %2385 = vmatprep.subr.mxu0 0.0
    %2386 = vmatpush1.xpose.msra.mxu0 0.0
    %2387 = vmatprep.subr.mxu0 0.0
    %2388 = vmatpush1.xpose.msra.mxu0 0.0
    %2389 = vmatprep.subr.mxu0 0.0
    %2390 = vmatpush1.xpose.msra.mxu0 0.0
    %2391 = vmatprep.subr.mxu0 0.0
    %2392 = vmatpush1.xpose.msra.mxu0 0.0
    %2393 = vmatprep.subr.mxu0 0.0
    %2394 = vmatpush1.xpose.msra.mxu0 0.0
    %2395 = vmatprep.subr.mxu0 0.0
    %2396 = vmatpush1.xpose.msra.mxu0 0.0
    %2397 = vmatprep.subr.mxu0 0.0
    %2398 = vmatpush1.xpose.msra.mxu0 0.0
    %2399 = vmatprep.subr.mxu0 0.0
    %2400 = vmatpush1.xpose.msra.mxu0 0.0
    %2401 = vmatprep.subr.mxu0 0.0
    %2402 = vmatpush1.xpose.msra.mxu0 0.0
    %2403 = vmatprep.subr.mxu0 0.0
    %2404 = vmatpush1.xpose.msra.mxu0 0.0
    %2405 = vmatprep.subr.mxu0 0.0
    %2406 = vmatpush1.xpose.msra.mxu0 0.0
    %2407 = vmatprep.subr.mxu0 0.0
    %2408 = vmatpush1.xpose.msra.mxu0 0.0
    %2409 = vmatprep.subr.mxu0 0.0
    %2410 = vmatpush1.xpose.msra.mxu0 0.0
    %2411 = vmatprep.subr.mxu0 0.0
    %2412 = vmatpush1.xpose.msra.mxu0 0.0
    %2413 = vmatprep.subr.mxu0 0.0
    %2414 = vmatpush1.xpose.msra.mxu0 0.0
    %2415 = vmatprep.subr.mxu0 0.0
    %2416 = vmatpush1.xpose.msra.mxu0 0.0
    %2417 = vmatprep.subr.mxu0 0.0
    %2418 = vmatpush1.xpose.msra.mxu0 0.0
    %2419 = vmatprep.subr.mxu0 0.0
    %2420 = vmatpush1.xpose.msra.mxu0 0.0
    %2421 = vmatprep.subr.mxu0 0.0
    %2422 = vmatpush1.xpose.msra.mxu0 0.0
    %2423 = vmatprep.subr.mxu0 0.0
    %2424 = vmatpush1.xpose.msra.mxu0 0.0
    %2425 = vmatprep.subr.mxu0 0.0
    %2426 = vmatpush1.xpose.msra.mxu0 0.0
    %2427 = vmatprep.subr.mxu0 0.0
    %2428 = vmatpush1.xpose.msra.mxu0 0.0
    %2429 = vmatprep.subr.mxu0 0.0
    %2430 = vmatpush1.xpose.msra.mxu0 0.0
    %2431 = vmatprep.subr.mxu0 0.0
    %2432 = vmatpush1.xpose.msra.mxu0 0.0
    %2433 = vmatprep.mubr.f32.mxu0 0.0
    %2434 = vmatmul.mubr.f32.gmra.mrb[0].mxu0 %v2358
    %v2435 = vpop.f32.mrb[0].mxu0
    %v2436 = vadd.f32 0.0, %v2435
    %v2437 = vpop.f32.mrb[0].mxu0
    %2438 = vmatprep.mubr.f32.mxu0 0.0
    %2439 = vmatmul.mubr.f32.gmra.mrb[0].mxu0 %v2361
    %v2440 = vpop.f32.mrb[0].mxu0
    %v2441 = vadd.f32 0.0, %v2440
    %v2442 = vpop.f32.mrb[0].mxu0
    %2443 = vdwg.mxu0
    %v2444 = vmul.f32 %v2436, 0.35355338
    %v2445 = vmul.f32 %v2441, 0.35355338
    %v2446 = vadd.f32 %v2444, %v625
    %v2447 = vadd.f32 %v2445, %v626
    %v2448 = vsel %vm1004, %v2446, -inf
    %2449 = vmax.xlane.f32.xlu0 %v2448
    %v2450 = vpop.xlane.xlu0 %2449
    %v2451 = vsel %vm1004, %v2447, -inf
    %2452 = vmax.xlane.f32.xlu0 %v2451
    %v2453 = vpop.xlane.xlu0 %2452
    %v2454 = vsub.f32 %v2446, %v2450
    %v2455 = vsub.f32 %v2447, %v2453
    %v2456 = vmul.f32 %v2454, 1.442695
    %v2457 = vpow.pop %v2456
    %v2458 = vmul.f32 %v2455, 1.442695
    %v2459 = vpow.pop %v2458
    %v2460 = vsel %vm1004, %v2457, 0.0
    %2461 = vadd.xlane.f32.xlu0 %v2460
    %v2462 = vpop.xlane.xlu0 %2461
    %v2463 = vsel %vm1004, %v2459, 0.0
    %2464 = vadd.xlane.f32.xlu0 %v2463
    %v2465 = vpop.xlane.xlu0 %2464
    %v2466 = vmul.f32 %v2347, %v631
    %v2467 = vmul.f32 %v2352, %v631
    %v2469 = vsel %vm1004, %v2457, 0
    %v2472 = vsel %vm1004, %v2459, 0
    %2474 = vmatprep.subr.mxu0 0.0
    %2475 = vmatpush1.msra.mxu0 %v2466
    %2476 = vmatprep.subr.mxu0 0.0
    %2477 = vmatpush1.msra.mxu0 %v2467
    %2478 = vmatprep.subr.mxu0 0.0
    %2479 = vmatpush1.msra.mxu0 0.0
    %2480 = vmatprep.subr.mxu0 0.0
    %2481 = vmatpush1.msra.mxu0 0.0
    %2482 = vmatprep.subr.mxu0 0.0
    %2483 = vmatpush1.msra.mxu0 0.0
    %2484 = vmatprep.subr.mxu0 0.0
    %2485 = vmatpush1.msra.mxu0 0.0
    %2486 = vmatprep.subr.mxu0 0.0
    %2487 = vmatpush1.msra.mxu0 0.0
    %2488 = vmatprep.subr.mxu0 0.0
    %2489 = vmatpush1.msra.mxu0 0.0
    %2490 = vmatprep.subr.mxu0 0.0
    %2491 = vmatpush1.msra.mxu0 0.0
    %2492 = vmatprep.subr.mxu0 0.0
    %2493 = vmatpush1.msra.mxu0 0.0
    %2494 = vmatprep.subr.mxu0 0.0
    %2495 = vmatpush1.msra.mxu0 0.0
    %2496 = vmatprep.subr.mxu0 0.0
    %2497 = vmatpush1.msra.mxu0 0.0
    %2498 = vmatprep.subr.mxu0 0.0
    %2499 = vmatpush1.msra.mxu0 0.0
    %2500 = vmatprep.subr.mxu0 0.0
    %2501 = vmatpush1.msra.mxu0 0.0
    %2502 = vmatprep.subr.mxu0 0.0
    %2503 = vmatpush1.msra.mxu0 0.0
    %2504 = vmatprep.subr.mxu0 0.0
    %2505 = vmatpush1.msra.mxu0 0.0
    %2506 = vmatprep.subr.mxu0 0.0
    %2507 = vmatpush1.msra.mxu0 0.0
    %2508 = vmatprep.subr.mxu0 0.0
    %2509 = vmatpush1.msra.mxu0 0.0
    %2510 = vmatprep.subr.mxu0 0.0
    %2511 = vmatpush1.msra.mxu0 0.0
    %2512 = vmatprep.subr.mxu0 0.0
    %2513 = vmatpush1.msra.mxu0 0.0
    %2514 = vmatprep.subr.mxu0 0.0
    %2515 = vmatpush1.msra.mxu0 0.0
    %2516 = vmatprep.subr.mxu0 0.0
    %2517 = vmatpush1.msra.mxu0 0.0
    %2518 = vmatprep.subr.mxu0 0.0
    %2519 = vmatpush1.msra.mxu0 0.0
    %2520 = vmatprep.subr.mxu0 0.0
    %2521 = vmatpush1.msra.mxu0 0.0
    %2522 = vmatprep.subr.mxu0 0.0
    %2523 = vmatpush1.msra.mxu0 0.0
    %2524 = vmatprep.subr.mxu0 0.0
    %2525 = vmatpush1.msra.mxu0 0.0
    %2526 = vmatprep.subr.mxu0 0.0
    %2527 = vmatpush1.msra.mxu0 0.0
    %2528 = vmatprep.subr.mxu0 0.0
    %2529 = vmatpush1.msra.mxu0 0.0
    %2530 = vmatprep.subr.mxu0 0.0
    %2531 = vmatpush1.msra.mxu0 0.0
    %2532 = vmatprep.subr.mxu0 0.0
    %2533 = vmatpush1.msra.mxu0 0.0
    %2534 = vmatprep.subr.mxu0 0.0
    %2535 = vmatpush1.msra.mxu0 0.0
    %2536 = vmatprep.subr.mxu0 0.0
    %2537 = vmatpush1.msra.mxu0 0.0
    %2538 = vmatprep.mubr.f32.mxu0 0.0
    %2539 = vmatmul.mubr.f32.gmra.mrb[0].mxu0 %v2469
    %v2540 = vpop.f32.mrb[0].mxu0
    %v2541 = vadd.f32 0.0, %v2540
    %v2542 = vpop.f32.mrb[0].mxu0
    %2543 = vmatprep.mubr.f32.mxu0 0.0
    %2544 = vmatmul.mubr.f32.gmra.mrb[0].mxu0 %v2472
    %v2545 = vpop.f32.mrb[0].mxu0
    %v2546 = vadd.f32 0.0, %v2545
    %v2547 = vpop.f32.mrb[0].mxu0
    %2548 = vdwg.mxu0
    %v2549 = vrcp.pop %v2462
    %v2550 = vrcp.pop %v2465
    %v2551 = vmul.f32 %v2541, %v2549
    %v2552 = vmul.f32 %v2546, %v2550
    %v2553 = vadd.f32 %v2551, 0.0
    %v2554 = vadd.f32 %v2552, 0.0
    %v2555 = vmul.f32 %v2171, %v636
    %v2556 = vmul.f32 %v2176, %v636
    %v2558 = vsel %vm581, %v2555, 0
    %v2561 = vsel %vm581, %v2556, 0
    %2563 = vmatprep.subr.mxu0 0.0
    %2564 = vmatpush1.xpose.msra.mxu0 %v2364
    %2565 = vmatprep.subr.mxu0 0.0
    %2566 = vmatpush1.xpose.msra.mxu0 %v2367
    %2567 = vmatprep.subr.mxu0 0.0
    %2568 = vmatpush1.xpose.msra.mxu0 0.0
    %2569 = vmatprep.subr.mxu0 0.0
    %2570 = vmatpush1.xpose.msra.mxu0 0.0
    %2571 = vmatprep.subr.mxu0 0.0
    %2572 = vmatpush1.xpose.msra.mxu0 0.0
    %2573 = vmatprep.subr.mxu0 0.0
    %2574 = vmatpush1.xpose.msra.mxu0 0.0
    %2575 = vmatprep.subr.mxu0 0.0
    %2576 = vmatpush1.xpose.msra.mxu0 0.0
    %2577 = vmatprep.subr.mxu0 0.0
    %2578 = vmatpush1.xpose.msra.mxu0 0.0
    %2579 = vmatprep.subr.mxu0 0.0
    %2580 = vmatpush1.xpose.msra.mxu0 0.0
    %2581 = vmatprep.subr.mxu0 0.0
    %2582 = vmatpush1.xpose.msra.mxu0 0.0
    %2583 = vmatprep.subr.mxu0 0.0
    %2584 = vmatpush1.xpose.msra.mxu0 0.0
    %2585 = vmatprep.subr.mxu0 0.0
    %2586 = vmatpush1.xpose.msra.mxu0 0.0
    %2587 = vmatprep.subr.mxu0 0.0
    %2588 = vmatpush1.xpose.msra.mxu0 0.0
    %2589 = vmatprep.subr.mxu0 0.0
    %2590 = vmatpush1.xpose.msra.mxu0 0.0
    %2591 = vmatprep.subr.mxu0 0.0
    %2592 = vmatpush1.xpose.msra.mxu0 0.0
    %2593 = vmatprep.subr.mxu0 0.0
    %2594 = vmatpush1.xpose.msra.mxu0 0.0
    %2595 = vmatprep.subr.mxu0 0.0
    %2596 = vmatpush1.xpose.msra.mxu0 0.0
    %2597 = vmatprep.subr.mxu0 0.0
    %2598 = vmatpush1.xpose.msra.mxu0 0.0
    %2599 = vmatprep.subr.mxu0 0.0
    %2600 = vmatpush1.xpose.msra.mxu0 0.0
    %2601 = vmatprep.subr.mxu0 0.0
    %2602 = vmatpush1.xpose.msra.mxu0 0.0
    %2603 = vmatprep.subr.mxu0 0.0
    %2604 = vmatpush1.xpose.msra.mxu0 0.0
    %2605 = vmatprep.subr.mxu0 0.0
    %2606 = vmatpush1.xpose.msra.mxu0 0.0
    %2607 = vmatprep.subr.mxu0 0.0
    %2608 = vmatpush1.xpose.msra.mxu0 0.0
    %2609 = vmatprep.subr.mxu0 0.0
    %2610 = vmatpush1.xpose.msra.mxu0 0.0
    %2611 = vmatprep.subr.mxu0 0.0
    %2612 = vmatpush1.xpose.msra.mxu0 0.0
    %2613 = vmatprep.subr.mxu0 0.0
    %2614 = vmatpush1.xpose.msra.mxu0 0.0
    %2615 = vmatprep.subr.mxu0 0.0
    %2616 = vmatpush1.xpose.msra.mxu0 0.0
    %2617 = vmatprep.subr.mxu0 0.0
    %2618 = vmatpush1.xpose.msra.mxu0 0.0
    %2619 = vmatprep.subr.mxu0 0.0
    %2620 = vmatpush1.xpose.msra.mxu0 0.0
    %2621 = vmatprep.subr.mxu0 0.0
    %2622 = vmatpush1.xpose.msra.mxu0 0.0
    %2623 = vmatprep.subr.mxu0 0.0
    %2624 = vmatpush1.xpose.msra.mxu0 0.0
    %2625 = vmatprep.subr.mxu0 0.0
    %2626 = vmatpush1.xpose.msra.mxu0 0.0
    %2627 = vmatprep.mubr.f32.mxu0 0.0
    %2628 = vmatmul.mubr.f32.gmra.mrb[0].mxu0 %v2558
    %v2629 = vpop.f32.mrb[0].mxu0
    %v2630 = vadd.f32 0.0, %v2629
    %v2631 = vpop.f32.mrb[0].mxu0
    %2632 = vmatprep.mubr.f32.mxu0 0.0
    %2633 = vmatmul.mubr.f32.gmra.mrb[0].mxu0 %v2561
    %v2634 = vpop.f32.mrb[0].mxu0
    %v2635 = vadd.f32 0.0, %v2634
    %v2636 = vpop.f32.mrb[0].mxu0
    %2637 = vdwg.mxu0
    %v2638 = vmul.f32 %v2630, 0.35355338
    %v2639 = vmul.f32 %v2635, 0.35355338
    %v2640 = vadd.f32 %v2638, %v625
    %v2641 = vadd.f32 %v2639, %v626
    %v2642 = vsel %vm1004, %v2640, -inf
    %2643 = vmax.xlane.f32.xlu0 %v2642
    %v2644 = vpop.xlane.xlu0 %2643
    %v2645 = vsel %vm1004, %v2641, -inf
    %2646 = vmax.xlane.f32.xlu0 %v2645
    %v2647 = vpop.xlane.xlu0 %2646
    %v2648 = vsub.f32 %v2640, %v2644
    %v2649 = vsub.f32 %v2641, %v2647
    %v2650 = vmul.f32 %v2648, 1.442695
    %v2651 = vpow.pop %v2650
    %v2652 = vmul.f32 %v2649, 1.442695
    %v2653 = vpow.pop %v2652
    %v2654 = vsel %vm1004, %v2651, 0.0
    %2655 = vadd.xlane.f32.xlu0 %v2654
    %v2656 = vpop.xlane.xlu0 %2655
    %v2657 = vsel %vm1004, %v2653, 0.0
    %2658 = vadd.xlane.f32.xlu0 %v2657
    %v2659 = vpop.xlane.xlu0 %2658
    %v2660 = vmul.f32 %v2347, %v636
    %v2661 = vmul.f32 %v2352, %v636
    %v2663 = vsel %vm1004, %v2651, 0
    %v2666 = vsel %vm1004, %v2653, 0
    %2668 = vmatprep.subr.mxu0 0.0
    %2669 = vmatpush1.msra.mxu0 %v2660
    %2670 = vmatprep.subr.mxu0 0.0
    %2671 = vmatpush1.msra.mxu0 %v2661
    %2672 = vmatprep.subr.mxu0 0.0
    %2673 = vmatpush1.msra.mxu0 0.0
    %2674 = vmatprep.subr.mxu0 0.0
    %2675 = vmatpush1.msra.mxu0 0.0
    %2676 = vmatprep.subr.mxu0 0.0
    %2677 = vmatpush1.msra.mxu0 0.0
    %2678 = vmatprep.subr.mxu0 0.0
    %2679 = vmatpush1.msra.mxu0 0.0
    %2680 = vmatprep.subr.mxu0 0.0
    %2681 = vmatpush1.msra.mxu0 0.0
    %2682 = vmatprep.subr.mxu0 0.0
    %2683 = vmatpush1.msra.mxu0 0.0
    %2684 = vmatprep.subr.mxu0 0.0
    %2685 = vmatpush1.msra.mxu0 0.0
    %2686 = vmatprep.subr.mxu0 0.0
    %2687 = vmatpush1.msra.mxu0 0.0
    %2688 = vmatprep.subr.mxu0 0.0
    %2689 = vmatpush1.msra.mxu0 0.0
    %2690 = vmatprep.subr.mxu0 0.0
    %2691 = vmatpush1.msra.mxu0 0.0
    %2692 = vmatprep.subr.mxu0 0.0
    %2693 = vmatpush1.msra.mxu0 0.0
    %2694 = vmatprep.subr.mxu0 0.0
    %2695 = vmatpush1.msra.mxu0 0.0
    %2696 = vmatprep.subr.mxu0 0.0
    %2697 = vmatpush1.msra.mxu0 0.0
    %2698 = vmatprep.subr.mxu0 0.0
    %2699 = vmatpush1.msra.mxu0 0.0
    %2700 = vmatprep.subr.mxu0 0.0
    %2701 = vmatpush1.msra.mxu0 0.0
    %2702 = vmatprep.subr.mxu0 0.0
    %2703 = vmatpush1.msra.mxu0 0.0
    %2704 = vmatprep.subr.mxu0 0.0
    %2705 = vmatpush1.msra.mxu0 0.0
    %2706 = vmatprep.subr.mxu0 0.0
    %2707 = vmatpush1.msra.mxu0 0.0
    %2708 = vmatprep.subr.mxu0 0.0
    %2709 = vmatpush1.msra.mxu0 0.0
    %2710 = vmatprep.subr.mxu0 0.0
    %2711 = vmatpush1.msra.mxu0 0.0
    %2712 = vmatprep.subr.mxu0 0.0
    %2713 = vmatpush1.msra.mxu0 0.0
    %2714 = vmatprep.subr.mxu0 0.0
    %2715 = vmatpush1.msra.mxu0 0.0
    %2716 = vmatprep.subr.mxu0 0.0
    %2717 = vmatpush1.msra.mxu0 0.0
    %2718 = vmatprep.subr.mxu0 0.0
    %2719 = vmatpush1.msra.mxu0 0.0
    %2720 = vmatprep.subr.mxu0 0.0
    %2721 = vmatpush1.msra.mxu0 0.0
    %2722 = vmatprep.subr.mxu0 0.0
    %2723 = vmatpush1.msra.mxu0 0.0
    %2724 = vmatprep.subr.mxu0 0.0
    %2725 = vmatpush1.msra.mxu0 0.0
    %2726 = vmatprep.subr.mxu0 0.0
    %2727 = vmatpush1.msra.mxu0 0.0
    %2728 = vmatprep.subr.mxu0 0.0
    %2729 = vmatpush1.msra.mxu0 0.0
    %2730 = vmatprep.subr.mxu0 0.0
    %2731 = vmatpush1.msra.mxu0 0.0
    %2732 = vmatprep.mubr.f32.mxu0 0.0
    %2733 = vmatmul.mubr.f32.gmra.mrb[0].mxu0 %v2663
    %v2734 = vpop.f32.mrb[0].mxu0
    %v2735 = vadd.f32 0.0, %v2734
    %v2736 = vpop.f32.mrb[0].mxu0
    %2737 = vmatprep.mubr.f32.mxu0 0.0
    %2738 = vmatmul.mubr.f32.gmra.mrb[0].mxu0 %v2666
    %v2739 = vpop.f32.mrb[0].mxu0
    %v2740 = vadd.f32 0.0, %v2739
    %v2741 = vpop.f32.mrb[0].mxu0
    %2742 = vdwg.mxu0
    %v2743 = vrcp.pop %v2656
    %v2744 = vrcp.pop %v2659
    %v2745 = vmul.f32 %v2735, %v2743
    %v2746 = vmul.f32 %v2740, %v2744
    %v2747 = vadd.f32 %v2553, %v2745
    %v2748 = vadd.f32 %v2554, %v2746
    %v2749 = vmul.f32 %v2171, %v641
    %v2750 = vmul.f32 %v2176, %v641
    %v2752 = vsel %vm581, %v2749, 0
    %v2755 = vsel %vm581, %v2750, 0
    %2757 = vmatprep.subr.mxu0 0.0
    %2758 = vmatpush1.xpose.msra.mxu0 %v2364
    %2759 = vmatprep.subr.mxu0 0.0
    %2760 = vmatpush1.xpose.msra.mxu0 %v2367
    %2761 = vmatprep.subr.mxu0 0.0
    %2762 = vmatpush1.xpose.msra.mxu0 0.0
    %2763 = vmatprep.subr.mxu0 0.0
    %2764 = vmatpush1.xpose.msra.mxu0 0.0
    %2765 = vmatprep.subr.mxu0 0.0
    %2766 = vmatpush1.xpose.msra.mxu0 0.0
    %2767 = vmatprep.subr.mxu0 0.0
    %2768 = vmatpush1.xpose.msra.mxu0 0.0
    %2769 = vmatprep.subr.mxu0 0.0
    %2770 = vmatpush1.xpose.msra.mxu0 0.0
    %2771 = vmatprep.subr.mxu0 0.0
    %2772 = vmatpush1.xpose.msra.mxu0 0.0
    %2773 = vmatprep.subr.mxu0 0.0
    %2774 = vmatpush1.xpose.msra.mxu0 0.0
    %2775 = vmatprep.subr.mxu0 0.0
    %2776 = vmatpush1.xpose.msra.mxu0 0.0
    %2777 = vmatprep.subr.mxu0 0.0
    %2778 = vmatpush1.xpose.msra.mxu0 0.0
    %2779 = vmatprep.subr.mxu0 0.0
    %2780 = vmatpush1.xpose.msra.mxu0 0.0
    %2781 = vmatprep.subr.mxu0 0.0
    %2782 = vmatpush1.xpose.msra.mxu0 0.0
    %2783 = vmatprep.subr.mxu0 0.0
    %2784 = vmatpush1.xpose.msra.mxu0 0.0
    %2785 = vmatprep.subr.mxu0 0.0
    %2786 = vmatpush1.xpose.msra.mxu0 0.0
    %2787 = vmatprep.subr.mxu0 0.0
    %2788 = vmatpush1.xpose.msra.mxu0 0.0
    %2789 = vmatprep.subr.mxu0 0.0
    %2790 = vmatpush1.xpose.msra.mxu0 0.0
    %2791 = vmatprep.subr.mxu0 0.0
    %2792 = vmatpush1.xpose.msra.mxu0 0.0
    %2793 = vmatprep.subr.mxu0 0.0
    %2794 = vmatpush1.xpose.msra.mxu0 0.0
    %2795 = vmatprep.subr.mxu0 0.0
    %2796 = vmatpush1.xpose.msra.mxu0 0.0
    %2797 = vmatprep.subr.mxu0 0.0
    %2798 = vmatpush1.xpose.msra.mxu0 0.0
    %2799 = vmatprep.subr.mxu0 0.0
    %2800 = vmatpush1.xpose.msra.mxu0 0.0
    %2801 = vmatprep.subr.mxu0 0.0
    %2802 = vmatpush1.xpose.msra.mxu0 0.0
    %2803 = vmatprep.subr.mxu0 0.0
    %2804 = vmatpush1.xpose.msra.mxu0 0.0
    %2805 = vmatprep.subr.mxu0 0.0
    %2806 = vmatpush1.xpose.msra.mxu0 0.0
    %2807 = vmatprep.subr.mxu0 0.0
    %2808 = vmatpush1.xpose.msra.mxu0 0.0
    %2809 = vmatprep.subr.mxu0 0.0
    %2810 = vmatpush1.xpose.msra.mxu0 0.0
    %2811 = vmatprep.subr.mxu0 0.0
    %2812 = vmatpush1.xpose.msra.mxu0 0.0
    %2813 = vmatprep.subr.mxu0 0.0
    %2814 = vmatpush1.xpose.msra.mxu0 0.0
    %2815 = vmatprep.subr.mxu0 0.0
    %2816 = vmatpush1.xpose.msra.mxu0 0.0
    %2817 = vmatprep.subr.mxu0 0.0
    %2818 = vmatpush1.xpose.msra.mxu0 0.0
    %2819 = vmatprep.subr.mxu0 0.0
    %2820 = vmatpush1.xpose.msra.mxu0 0.0
    %2821 = vmatprep.mubr.f32.mxu0 0.0
    %2822 = vmatmul.mubr.f32.gmra.mrb[0].mxu0 %v2752
    %v2823 = vpop.f32.mrb[0].mxu0
    %v2824 = vadd.f32 0.0, %v2823
    %v2825 = vpop.f32.mrb[0].mxu0
    %2826 = vmatprep.mubr.f32.mxu0 0.0
    %2827 = vmatmul.mubr.f32.gmra.mrb[0].mxu0 %v2755
    %v2828 = vpop.f32.mrb[0].mxu0
    %v2829 = vadd.f32 0.0, %v2828
    %v2830 = vpop.f32.mrb[0].mxu0
    %2831 = vdwg.mxu0
    %v2832 = vmul.f32 %v2824, 0.35355338
    %v2833 = vmul.f32 %v2829, 0.35355338
    %v2834 = vadd.f32 %v2832, %v625
    %v2835 = vadd.f32 %v2833, %v626
    %v2836 = vsel %vm1004, %v2834, -inf
    %2837 = vmax.xlane.f32.xlu0 %v2836
    %v2838 = vpop.xlane.xlu0 %2837
    %v2839 = vsel %vm1004, %v2835, -inf
    %2840 = vmax.xlane.f32.xlu0 %v2839
    %v2841 = vpop.xlane.xlu0 %2840
    %v2842 = vsub.f32 %v2834, %v2838
    %v2843 = vsub.f32 %v2835, %v2841
    %v2844 = vmul.f32 %v2842, 1.442695
    %v2845 = vpow.pop %v2844
    %v2846 = vmul.f32 %v2843, 1.442695
    %v2847 = vpow.pop %v2846
    %v2848 = vsel %vm1004, %v2845, 0.0
    %2849 = vadd.xlane.f32.xlu0 %v2848
    %v2850 = vpop.xlane.xlu0 %2849
    %v2851 = vsel %vm1004, %v2847, 0.0
    %2852 = vadd.xlane.f32.xlu0 %v2851
    %v2853 = vpop.xlane.xlu0 %2852
    %v2854 = vmul.f32 %v2347, %v641
    %v2855 = vmul.f32 %v2352, %v641
    %v2857 = vsel %vm1004, %v2845, 0
    %v2860 = vsel %vm1004, %v2847, 0
    %2862 = vmatprep.subr.mxu0 0.0
    %2863 = vmatpush1.msra.mxu0 %v2854
    %2864 = vmatprep.subr.mxu0 0.0
    %2865 = vmatpush1.msra.mxu0 %v2855
    %2866 = vmatprep.subr.mxu0 0.0
    %2867 = vmatpush1.msra.mxu0 0.0
    %2868 = vmatprep.subr.mxu0 0.0
    %2869 = vmatpush1.msra.mxu0 0.0
    %2870 = vmatprep.subr.mxu0 0.0
    %2871 = vmatpush1.msra.mxu0 0.0
    %2872 = vmatprep.subr.mxu0 0.0
    %2873 = vmatpush1.msra.mxu0 0.0
    %2874 = vmatprep.subr.mxu0 0.0
    %2875 = vmatpush1.msra.mxu0 0.0
    %2876 = vmatprep.subr.mxu0 0.0
    %2877 = vmatpush1.msra.mxu0 0.0
    %2878 = vmatprep.subr.mxu0 0.0
    %2879 = vmatpush1.msra.mxu0 0.0
    %2880 = vmatprep.subr.mxu0 0.0
    %2881 = vmatpush1.msra.mxu0 0.0
    %2882 = vmatprep.subr.mxu0 0.0
    %2883 = vmatpush1.msra.mxu0 0.0
    %2884 = vmatprep.subr.mxu0 0.0
    %2885 = vmatpush1.msra.mxu0 0.0
    %2886 = vmatprep.subr.mxu0 0.0
    %2887 = vmatpush1.msra.mxu0 0.0
    %2888 = vmatprep.subr.mxu0 0.0
    %2889 = vmatpush1.msra.mxu0 0.0
    %2890 = vmatprep.subr.mxu0 0.0
    %2891 = vmatpush1.msra.mxu0 0.0
    %2892 = vmatprep.subr.mxu0 0.0
    %2893 = vmatpush1.msra.mxu0 0.0
    %2894 = vmatprep.subr.mxu0 0.0
    %2895 = vmatpush1.msra.mxu0 0.0
    %2896 = vmatprep.subr.mxu0 0.0
    %2897 = vmatpush1.msra.mxu0 0.0
    %2898 = vmatprep.subr.mxu0 0.0
    %2899 = vmatpush1.msra.mxu0 0.0
    %2900 = vmatprep.subr.mxu0 0.0
    %2901 = vmatpush1.msra.mxu0 0.0
    %2902 = vmatprep.subr.mxu0 0.0
    %2903 = vmatpush1.msra.mxu0 0.0
    %2904 = vmatprep.subr.mxu0 0.0
    %2905 = vmatpush1.msra.mxu0 0.0
    %2906 = vmatprep.subr.mxu0 0.0
    %2907 = vmatpush1.msra.mxu0 0.0
    %2908 = vmatprep.subr.mxu0 0.0
    %2909 = vmatpush1.msra.mxu0 0.0
    %2910 = vmatprep.subr.mxu0 0.0
    %2911 = vmatpush1.msra.mxu0 0.0
    %2912 = vmatprep.subr.mxu0 0.0
    %2913 = vmatpush1.msra.mxu0 0.0
    %2914 = vmatprep.subr.mxu0 0.0
    %2915 = vmatpush1.msra.mxu0 0.0
    %2916 = vmatprep.subr.mxu0 0.0
    %2917 = vmatpush1.msra.mxu0 0.0
    %2918 = vmatprep.subr.mxu0 0.0
    %2919 = vmatpush1.msra.mxu0 0.0
    %2920 = vmatprep.subr.mxu0 0.0
    %2921 = vmatpush1.msra.mxu0 0.0
    %2922 = vmatprep.subr.mxu0 0.0
    %2923 = vmatpush1.msra.mxu0 0.0
    %2924 = vmatprep.subr.mxu0 0.0
    %2925 = vmatpush1.msra.mxu0 0.0
    %2926 = vmatprep.mubr.f32.mxu0 0.0
    %2927 = vmatmul.mubr.f32.gmra.mrb[0].mxu0 %v2857
    %v2928 = vpop.f32.mrb[0].mxu0
    %v2929 = vadd.f32 0.0, %v2928
    %v2930 = vpop.f32.mrb[0].mxu0
    %2931 = vmatprep.mubr.f32.mxu0 0.0
    %2932 = vmatmul.mubr.f32.gmra.mrb[0].mxu0 %v2860
    %v2933 = vpop.f32.mrb[0].mxu0
    %v2934 = vadd.f32 0.0, %v2933
    %v2935 = vpop.f32.mrb[0].mxu0
    %2936 = vdwg.mxu0
    %v2937 = vrcp.pop %v2850
    %v2938 = vrcp.pop %v2853
    %v2939 = vmul.f32 %v2929, %v2937
    %v2940 = vmul.f32 %v2934, %v2938
    %v2941 = vadd.f32 %v2747, %v2939
    %v2942 = vadd.f32 %v2748, %v2940
    %v2943 = vmul.f32 %v2171, %v646
    %v2944 = vmul.f32 %v2176, %v646
    %v2946 = vsel %vm581, %v2943, 0
    %v2949 = vsel %vm581, %v2944, 0
    %2951 = vmatprep.subr.mxu0 0.0
    %2952 = vmatpush1.xpose.msra.mxu0 %v2364
    %2953 = vmatprep.subr.mxu0 0.0
    %2954 = vmatpush1.xpose.msra.mxu0 %v2367
    %2955 = vmatprep.subr.mxu0 0.0
    %2956 = vmatpush1.xpose.msra.mxu0 0.0
    %2957 = vmatprep.subr.mxu0 0.0
    %2958 = vmatpush1.xpose.msra.mxu0 0.0
    %2959 = vmatprep.subr.mxu0 0.0
    %2960 = vmatpush1.xpose.msra.mxu0 0.0
    %2961 = vmatprep.subr.mxu0 0.0
    %2962 = vmatpush1.xpose.msra.mxu0 0.0
    %2963 = vmatprep.subr.mxu0 0.0
    %2964 = vmatpush1.xpose.msra.mxu0 0.0
    %2965 = vmatprep.subr.mxu0 0.0
    %2966 = vmatpush1.xpose.msra.mxu0 0.0
    %2967 = vmatprep.subr.mxu0 0.0
    %2968 = vmatpush1.xpose.msra.mxu0 0.0
    %2969 = vmatprep.subr.mxu0 0.0
    %2970 = vmatpush1.xpose.msra.mxu0 0.0
    %2971 = vmatprep.subr.mxu0 0.0
    %2972 = vmatpush1.xpose.msra.mxu0 0.0
    %2973 = vmatprep.subr.mxu0 0.0
    %2974 = vmatpush1.xpose.msra.mxu0 0.0
    %2975 = vmatprep.subr.mxu0 0.0
    %2976 = vmatpush1.xpose.msra.mxu0 0.0
    %2977 = vmatprep.subr.mxu0 0.0
    %2978 = vmatpush1.xpose.msra.mxu0 0.0
    %2979 = vmatprep.subr.mxu0 0.0
    %2980 = vmatpush1.xpose.msra.mxu0 0.0
    %2981 = vmatprep.subr.mxu0 0.0
    %2982 = vmatpush1.xpose.msra.mxu0 0.0
    %2983 = vmatprep.subr.mxu0 0.0
    %2984 = vmatpush1.xpose.msra.mxu0 0.0
    %2985 = vmatprep.subr.mxu0 0.0
    %2986 = vmatpush1.xpose.msra.mxu0 0.0
    %2987 = vmatprep.subr.mxu0 0.0
    %2988 = vmatpush1.xpose.msra.mxu0 0.0
    %2989 = vmatprep.subr.mxu0 0.0
    %2990 = vmatpush1.xpose.msra.mxu0 0.0
    %2991 = vmatprep.subr.mxu0 0.0
    %2992 = vmatpush1.xpose.msra.mxu0 0.0
    %2993 = vmatprep.subr.mxu0 0.0
    %2994 = vmatpush1.xpose.msra.mxu0 0.0
    %2995 = vmatprep.subr.mxu0 0.0
    %2996 = vmatpush1.xpose.msra.mxu0 0.0
    %2997 = vmatprep.subr.mxu0 0.0
    %2998 = vmatpush1.xpose.msra.mxu0 0.0
    %2999 = vmatprep.subr.mxu0 0.0
    %3000 = vmatpush1.xpose.msra.mxu0 0.0
    %3001 = vmatprep.subr.mxu0 0.0
    %3002 = vmatpush1.xpose.msra.mxu0 0.0
    %3003 = vmatprep.subr.mxu0 0.0
    %3004 = vmatpush1.xpose.msra.mxu0 0.0
    %3005 = vmatprep.subr.mxu0 0.0
    %3006 = vmatpush1.xpose.msra.mxu0 0.0
    %3007 = vmatprep.subr.mxu0 0.0
    %3008 = vmatpush1.xpose.msra.mxu0 0.0
    %3009 = vmatprep.subr.mxu0 0.0
    %3010 = vmatpush1.xpose.msra.mxu0 0.0
    %3011 = vmatprep.subr.mxu0 0.0
    %3012 = vmatpush1.xpose.msra.mxu0 0.0
    %3013 = vmatprep.subr.mxu0 0.0
    %3014 = vmatpush1.xpose.msra.mxu0 0.0
    %3015 = vmatprep.mubr.f32.mxu0 0.0
    %3016 = vmatmul.mubr.f32.gmra.mrb[0].mxu0 %v2946
    %v3017 = vpop.f32.mrb[0].mxu0
    %v3018 = vadd.f32 0.0, %v3017
    %v3019 = vpop.f32.mrb[0].mxu0
    %3020 = vmatprep.mubr.f32.mxu0 0.0
    %3021 = vmatmul.mubr.f32.gmra.mrb[0].mxu0 %v2949
    %v3022 = vpop.f32.mrb[0].mxu0
    %v3023 = vadd.f32 0.0, %v3022
    %v3024 = vpop.f32.mrb[0].mxu0
    %3025 = vdwg.mxu0
    %v3026 = vmul.f32 %v3018, 0.35355338
    %v3027 = vmul.f32 %v3023, 0.35355338
    %v3028 = vadd.f32 %v3026, %v625
    %v3029 = vadd.f32 %v3027, %v626
    %v3030 = vsel %vm1004, %v3028, -inf
    %3031 = vmax.xlane.f32.xlu0 %v3030
    %v3032 = vpop.xlane.xlu0 %3031
    %v3033 = vsel %vm1004, %v3029, -inf
    %3034 = vmax.xlane.f32.xlu0 %v3033
    %v3035 = vpop.xlane.xlu0 %3034
    %v3036 = vsub.f32 %v3028, %v3032
    %v3037 = vsub.f32 %v3029, %v3035
    %v3038 = vmul.f32 %v3036, 1.442695
    %v3039 = vpow.pop %v3038
    %v3040 = vmul.f32 %v3037, 1.442695
    %v3041 = vpow.pop %v3040
    %v3042 = vsel %vm1004, %v3039, 0.0
    %3043 = vadd.xlane.f32.xlu0 %v3042
    %v3044 = vpop.xlane.xlu0 %3043
    %v3045 = vsel %vm1004, %v3041, 0.0
    %3046 = vadd.xlane.f32.xlu0 %v3045
    %v3047 = vpop.xlane.xlu0 %3046
    %v3048 = vmul.f32 %v2347, %v646
    %v3049 = vmul.f32 %v2352, %v646
    %v3051 = vsel %vm1004, %v3039, 0
    %v3054 = vsel %vm1004, %v3041, 0
    %3056 = vmatprep.subr.mxu0 0.0
    %3057 = vmatpush1.msra.mxu0 %v3048
    %3058 = vmatprep.subr.mxu0 0.0
    %3059 = vmatpush1.msra.mxu0 %v3049
    %3060 = vmatprep.subr.mxu0 0.0
    %3061 = vmatpush1.msra.mxu0 0.0
    %3062 = vmatprep.subr.mxu0 0.0
    %3063 = vmatpush1.msra.mxu0 0.0
    %3064 = vmatprep.subr.mxu0 0.0
    %3065 = vmatpush1.msra.mxu0 0.0
    %3066 = vmatprep.subr.mxu0 0.0
    %3067 = vmatpush1.msra.mxu0 0.0
    %3068 = vmatprep.subr.mxu0 0.0
    %3069 = vmatpush1.msra.mxu0 0.0
    %3070 = vmatprep.subr.mxu0 0.0
    %3071 = vmatpush1.msra.mxu0 0.0
    %3072 = vmatprep.subr.mxu0 0.0
    %3073 = vmatpush1.msra.mxu0 0.0
    %3074 = vmatprep.subr.mxu0 0.0
    %3075 = vmatpush1.msra.mxu0 0.0
    %3076 = vmatprep.subr.mxu0 0.0
    %3077 = vmatpush1.msra.mxu0 0.0
    %3078 = vmatprep.subr.mxu0 0.0
    %3079 = vmatpush1.msra.mxu0 0.0
    %3080 = vmatprep.subr.mxu0 0.0
    %3081 = vmatpush1.msra.mxu0 0.0
    %3082 = vmatprep.subr.mxu0 0.0
    %3083 = vmatpush1.msra.mxu0 0.0
    %3084 = vmatprep.subr.mxu0 0.0
    %3085 = vmatpush1.msra.mxu0 0.0
    %3086 = vmatprep.subr.mxu0 0.0
    %3087 = vmatpush1.msra.mxu0 0.0
    %3088 = vmatprep.subr.mxu0 0.0
    %3089 = vmatpush1.msra.mxu0 0.0
    %3090 = vmatprep.subr.mxu0 0.0
    %3091 = vmatpush1.msra.mxu0 0.0
    %3092 = vmatprep.subr.mxu0 0.0
    %3093 = vmatpush1.msra.mxu0 0.0
    %3094 = vmatprep.subr.mxu0 0.0
    %3095 = vmatpush1.msra.mxu0 0.0
    %3096 = vmatprep.subr.mxu0 0.0
    %3097 = vmatpush1.msra.mxu0 0.0
    %3098 = vmatprep.subr.mxu0 0.0
    %3099 = vmatpush1.msra.mxu0 0.0
    %3100 = vmatprep.subr.mxu0 0.0
    %3101 = vmatpush1.msra.mxu0 0.0
    %3102 = vmatprep.subr.mxu0 0.0
    %3103 = vmatpush1.msra.mxu0 0.0
    %3104 = vmatprep.subr.mxu0 0.0
    %3105 = vmatpush1.msra.mxu0 0.0
    %3106 = vmatprep.subr.mxu0 0.0
    %3107 = vmatpush1.msra.mxu0 0.0
    %3108 = vmatprep.subr.mxu0 0.0
    %3109 = vmatpush1.msra.mxu0 0.0
    %3110 = vmatprep.subr.mxu0 0.0
    %3111 = vmatpush1.msra.mxu0 0.0
    %3112 = vmatprep.subr.mxu0 0.0
    %3113 = vmatpush1.msra.mxu0 0.0
    %3114 = vmatprep.subr.mxu0 0.0
    %3115 = vmatpush1.msra.mxu0 0.0
    %3116 = vmatprep.subr.mxu0 0.0
    %3117 = vmatpush1.msra.mxu0 0.0
    %3118 = vmatprep.subr.mxu0 0.0
    %3119 = vmatpush1.msra.mxu0 0.0
    %3120 = vmatprep.mubr.f32.mxu0 0.0
    %3121 = vmatmul.mubr.f32.gmra.mrb[0].mxu0 %v3051
    %v3122 = vpop.f32.mrb[0].mxu0
    %v3123 = vadd.f32 0.0, %v3122
    %v3124 = vpop.f32.mrb[0].mxu0
    %3125 = vmatprep.mubr.f32.mxu0 0.0
    %3126 = vmatmul.mubr.f32.gmra.mrb[0].mxu0 %v3054
    %v3127 = vpop.f32.mrb[0].mxu0
    %v3128 = vadd.f32 0.0, %v3127
    %v3129 = vpop.f32.mrb[0].mxu0
    %3130 = vdwg.mxu0
    %v3131 = vrcp.pop %v3044
    %v3132 = vrcp.pop %v3047
    %v3133 = vmul.f32 %v3123, %v3131
    %v3134 = vmul.f32 %v3128, %v3132
    %v3135 = vadd.f32 %v2941, %v3133
    %v3136 = vadd.f32 %v2942, %v3134
    %s3137 = scalar_lea.vmem [#allocation25], 32
    %v3138 = vld [vmem:[%s3137] sm:$0xff]
    %v3139 = vld [vmem:[%s3137 + $0x8] sm:$0xff]
    %v3140 = vld [vmem:[%s3137 + $0x10] sm:$0xff]
    %v3141 = vld [vmem:[%s3137 + $0x18] sm:$0xff]
    %s3142 = scalar_lea.vmem [#allocation26], 1
    %v3143 = vld [vmem:[%s3142] sm:$0x1]
    %v3145 = vlaneseq
    %v3146 = vshrl.u32 %v3145, 7
    %v3147 = vsub.s32 0, %v3146
    %v3148 = vrot.slane %v3143, %v3147
    %v3151 = vsel %vm581, %v3135, 0
    %v3154 = vsel %vm581, %v3136, 0
    %3156 = vmatprep.subr.mxu0 0.0
    %3157 = vmatpush1.msra.mxu0 %v3138
    %3158 = vmatprep.subr.mxu0 0.0
    %3159 = vmatpush1.msra.mxu0 %v3139
    %3160 = vmatprep.subr.mxu0 0.0
    %3161 = vmatpush1.msra.mxu0 %v3140
    %3162 = vmatprep.subr.mxu0 0.0
    %3163 = vmatpush1.msra.mxu0 %v3141
    %3164 = vmatprep.subr.mxu0 0.0
    %3165 = vmatpush1.msra.mxu0 0.0
    %3166 = vmatprep.subr.mxu0 0.0
    %3167 = vmatpush1.msra.mxu0 0.0
    %3168 = vmatprep.subr.mxu0 0.0
    %3169 = vmatpush1.msra.mxu0 0.0
    %3170 = vmatprep.subr.mxu0 0.0
    %3171 = vmatpush1.msra.mxu0 0.0
    %3172 = vmatprep.subr.mxu0 0.0
    %3173 = vmatpush1.msra.mxu0 0.0
    %3174 = vmatprep.subr.mxu0 0.0
    %3175 = vmatpush1.msra.mxu0 0.0
    %3176 = vmatprep.subr.mxu0 0.0
    %3177 = vmatpush1.msra.mxu0 0.0
    %3178 = vmatprep.subr.mxu0 0.0
    %3179 = vmatpush1.msra.mxu0 0.0
    %3180 = vmatprep.subr.mxu0 0.0
    %3181 = vmatpush1.msra.mxu0 0.0
    %3182 = vmatprep.subr.mxu0 0.0
    %3183 = vmatpush1.msra.mxu0 0.0
    %3184 = vmatprep.subr.mxu0 0.0
    %3185 = vmatpush1.msra.mxu0 0.0
    %3186 = vmatprep.subr.mxu0 0.0
    %3187 = vmatpush1.msra.mxu0 0.0
    %3188 = vmatprep.subr.mxu0 0.0
    %3189 = vmatpush1.msra.mxu0 0.0
    %3190 = vmatprep.subr.mxu0 0.0
    %3191 = vmatpush1.msra.mxu0 0.0
    %3192 = vmatprep.subr.mxu0 0.0
    %3193 = vmatpush1.msra.mxu0 0.0
    %3194 = vmatprep.subr.mxu0 0.0
    %3195 = vmatpush1.msra.mxu0 0.0
    %3196 = vmatprep.subr.mxu0 0.0
    %3197 = vmatpush1.msra.mxu0 0.0
    %3198 = vmatprep.subr.mxu0 0.0
    %3199 = vmatpush1.msra.mxu0 0.0
    %3200 = vmatprep.subr.mxu0 0.0
    %3201 = vmatpush1.msra.mxu0 0.0
    %3202 = vmatprep.subr.mxu0 0.0
    %3203 = vmatpush1.msra.mxu0 0.0
    %3204 = vmatprep.subr.mxu0 0.0
    %3205 = vmatpush1.msra.mxu0 0.0
    %3206 = vmatprep.subr.mxu0 0.0
    %3207 = vmatpush1.msra.mxu0 0.0
    %3208 = vmatprep.subr.mxu0 0.0
    %3209 = vmatpush1.msra.mxu0 0.0
    %3210 = vmatprep.subr.mxu0 0.0
    %3211 = vmatpush1.msra.mxu0 0.0
    %3212 = vmatprep.subr.mxu0 0.0
    %3213 = vmatpush1.msra.mxu0 0.0
    %3214 = vmatprep.subr.mxu0 0.0
    %3215 = vmatpush1.msra.mxu0 0.0
    %3216 = vmatprep.subr.mxu0 0.0
    %3217 = vmatpush1.msra.mxu0 0.0
    %3218 = vmatprep.subr.mxu0 0.0
    %3219 = vmatpush1.msra.mxu0 0.0
    %3220 = vmatprep.mubr.f32.mxu0 0.0
    %3221 = vmatmul.mubr.f32.gmra.mrb[0].mxu0 %v3151
    %v3222 = vpop.f32.mrb[0].mxu0
    %v3223 = vadd.f32 %v3148, %v3222
    %v3224 = vpop.f32.mrb[0].mxu0
    %3225 = vmatprep.mubr.f32.mxu0 0.0
    %3226 = vmatmul.mubr.f32.gmra.mrb[0].mxu0 %v3154
    %v3227 = vpop.f32.mrb[0].mxu0
    %v3228 = vadd.f32 %v3148, %v3227
    %v3229 = vpop.f32.mrb[0].mxu0
    %3230 = vdwg.mxu0
    %v3231 = vadd.f32 %v2083, %v3223
    %v3232 = vadd.f32 %v2084, %v3228
    %s3233 = scalar_lea.vmem [#allocation28], 1
    %v3234 = vld [vmem:[%s3233] sm:$0x1]
    %s3235 = scalar_lea.vmem [#allocation29], 1
    %v3236 = vld [vmem:[%s3235] sm:$0x1]
    %v3237 = vsel %vm581, %v3231, 0.0
    %3238 = vadd.xlane.f32.xlu0 %v3237
    %v3239 = vpop.xlane.xlu0 %3238
    %v3240 = vsel %vm581, %v3232, 0.0
    %3241 = vadd.xlane.f32.xlu0 %v3240
    %v3242 = vpop.xlane.xlu0 %3241
    %v3243 = vmul.f32 %v3239, %v588
    %v3244 = vmul.f32 %v3242, %v588
    %v3245 = vsub.f32 %v3231, %v3243
    %v3246 = vsub.f32 %v3232, %v3244
    %v3247 = vmul.f32 %v3245, %v3245
    %v3248 = vmul.f32 %v3246, %v3246
    %v3249 = vsel %vm581, %v3247, 0.0
    %3250 = vadd.xlane.f32.xlu0 %v3249
    %v3251 = vpop.xlane.xlu0 %3250
    %v3252 = vsel %vm581, %v3248, 0.0
    %3253 = vadd.xlane.f32.xlu0 %v3252
    %v3254 = vpop.xlane.xlu0 %3253
    %v3255 = vmul.f32 %v3251, %v588
    %v3256 = vmul.f32 %v3254, %v588
    %v3257 = vadd.f32 %v3255, 1e-12
    %v3258 = vadd.f32 %v3256, 1e-12
    %v3259 = vrsqrt.pop %v3257
    %v3260 = vrsqrt.pop %v3258
    %v3261 = vmul.f32 %v3245, %v3259
    %v3262 = vmul.f32 %v3246, %v3260
    %v3264 = vlaneseq
    %v3265 = vshrl.u32 %v3264, 7
    %v3266 = vsub.s32 0, %v3265
    %v3267 = vrot.slane %v3234, %v3266
    %v3269 = vmul.f32 %v3261, %v3267
    %v3270 = vmul.f32 %v3262, %v3267
    %v3272 = vlaneseq
    %v3273 = vshrl.u32 %v3272, 7
    %v3274 = vsub.s32 0, %v3273
    %v3275 = vrot.slane %v3236, %v3274
    %v3277 = vadd.f32 %v3269, %v3275
    %v3278 = vadd.f32 %v3270, %v3275
    %s3279 = scalar_lea.vmem [#allocation31], 32
    %v3280 = vld [vmem:[%s3279] sm:$0xff]
    %v3281 = vld [vmem:[%s3279 + $0x8] sm:$0xff]
    %v3282 = vld [vmem:[%s3279 + $0x10] sm:$0xff]
    %v3283 = vld [vmem:[%s3279 + $0x18] sm:$0xff]
    %s3284 = scalar_lea.vmem [#allocation32], 1
    %v3285 = vld [vmem:[%s3284] sm:$0x1]
    %v3287 = vlaneseq
    %v3288 = vshrl.u32 %v3287, 7
    %v3289 = vsub.s32 0, %v3288
    %v3290 = vrot.slane %v3285, %v3289
    %v3293 = vsel %vm581, %v3277, 0
    %v3296 = vsel %vm581, %v3278, 0
    %3298 = vmatprep.subr.mxu0 0.0
    %3299 = vmatpush1.msra.mxu0 %v3280
    %3300 = vmatprep.subr.mxu0 0.0
    %3301 = vmatpush1.msra.mxu0 %v3281
    %3302 = vmatprep.subr.mxu0 0.0
    %3303 = vmatpush1.msra.mxu0 %v3282
    %3304 = vmatprep.subr.mxu0 0.0
    %3305 = vmatpush1.msra.mxu0 %v3283
    %3306 = vmatprep.subr.mxu0 0.0
    %3307 = vmatpush1.msra.mxu0 0.0
    %3308 = vmatprep.subr.mxu0 0.0
    %3309 = vmatpush1.msra.mxu0 0.0
    %3310 = vmatprep.subr.mxu0 0.0
    %3311 = vmatpush1.msra.mxu0 0.0
    %3312 = vmatprep.subr.mxu0 0.0
    %3313 = vmatpush1.msra.mxu0 0.0
    %3314 = vmatprep.subr.mxu0 0.0
    %3315 = vmatpush1.msra.mxu0 0.0
    %3316 = vmatprep.subr.mxu0 0.0
    %3317 = vmatpush1.msra.mxu0 0.0
    %3318 = vmatprep.subr.mxu0 0.0
    %3319 = vmatpush1.msra.mxu0 0.0
    %3320 = vmatprep.subr.mxu0 0.0
    %3321 = vmatpush1.msra.mxu0 0.0
    %3322 = vmatprep.subr.mxu0 0.0
    %3323 = vmatpush1.msra.mxu0 0.0
    %3324 = vmatprep.subr.mxu0 0.0
    %3325 = vmatpush1.msra.mxu0 0.0
    %3326 = vmatprep.subr.mxu0 0.0
    %3327 = vmatpush1.msra.mxu0 0.0
    %3328 = vmatprep.subr.mxu0 0.0
    %3329 = vmatpush1.msra.mxu0 0.0
    %3330 = vmatprep.subr.mxu0 0.0
    %3331 = vmatpush1.msra.mxu0 0.0
    %3332 = vmatprep.subr.mxu0 0.0
    %3333 = vmatpush1.msra.mxu0 0.0
    %3334 = vmatprep.subr.mxu0 0.0
    %3335 = vmatpush1.msra.mxu0 0.0
    %3336 = vmatprep.subr.mxu0 0.0
    %3337 = vmatpush1.msra.mxu0 0.0
    %3338 = vmatprep.subr.mxu0 0.0
    %3339 = vmatpush1.msra.mxu0 0.0
    %3340 = vmatprep.subr.mxu0 0.0
    %3341 = vmatpush1.msra.mxu0 0.0
    %3342 = vmatprep.subr.mxu0 0.0
    %3343 = vmatpush1.msra.mxu0 0.0
    %3344 = vmatprep.subr.mxu0 0.0
    %3345 = vmatpush1.msra.mxu0 0.0
    %3346 = vmatprep.subr.mxu0 0.0
    %3347 = vmatpush1.msra.mxu0 0.0
    %3348 = vmatprep.subr.mxu0 0.0
    %3349 = vmatpush1.msra.mxu0 0.0
    %3350 = vmatprep.subr.mxu0 0.0
    %3351 = vmatpush1.msra.mxu0 0.0
    %3352 = vmatprep.subr.mxu0 0.0
    %3353 = vmatpush1.msra.mxu0 0.0
    %3354 = vmatprep.subr.mxu0 0.0
    %3355 = vmatpush1.msra.mxu0 0.0
    %3356 = vmatprep.subr.mxu0 0.0
    %3357 = vmatpush1.msra.mxu0 0.0
    %3358 = vmatprep.subr.mxu0 0.0
    %3359 = vmatpush1.msra.mxu0 0.0
    %3360 = vmatprep.subr.mxu0 0.0
    %3361 = vmatpush1.msra.mxu0 0.0
    %3362 = vmatprep.mubr.f32.mxu0 0.0
    %3363 = vmatmul.mubr.f32.gmra.mrb[0].mxu0 %v3293
    %v3364 = vpop.f32.mrb[0].mxu0
    %v3365 = vadd.f32 %v3290, %v3364
    %v3366 = vpop.f32.mrb[0].mxu0
    %3367 = vmatprep.mubr.f32.mxu0 0.0
    %3368 = vmatmul.mubr.f32.gmra.mrb[0].mxu0 %v3296
    %v3369 = vpop.f32.mrb[0].mxu0
    %v3370 = vadd.f32 %v3290, %v3369
    %v3371 = vpop.f32.mrb[0].mxu0
    %3372 = vdwg.mxu0
    %v3373 = vmul.f32 %v3365, 0.5
    %v3374 = vmul.f32 %v3370, 0.5
    %v3375 = vmul.f32 %v3365, 0.044715
    %v3376 = vmul.f32 %v3370, 0.044715
    %v3377 = vmul.f32 %v3375, %v3365
    %v3378 = vmul.f32 %v3376, %v3370
    %v3379 = vmul.f32 %v3377, %v3365
    %v3380 = vmul.f32 %v3378, %v3370
    %v3381 = vadd.f32 %v3365, %v3379
    %v3382 = vadd.f32 %v3370, %v3380
    %v3383 = vmul.f32 %v3381, 0.7978846
    %v3384 = vmul.f32 %v3382, 0.7978846
    %v3385 = vtanh.pop %v3383
    %v3386 = vtanh.pop %v3384
    %v3387 = vadd.f32 %v3385, 1.0
    %v3388 = vadd.f32 %v3386, 1.0
    %v3389 = vmul.f32 %v3373, %v3387
    %v3390 = vmul.f32 %v3374, %v3388
    %s3391 = scalar_lea.vmem [#allocation34], 64
    %v3392 = vld [vmem:[%s3391] sm:$0xff]
    %v3393 = vld [vmem:[%s3391 + $0x8] sm:$0xff]
    %v3394 = vld [vmem:[%s3391 + $0x10] sm:$0xff]
    %v3395 = vld [vmem:[%s3391 + $0x18] sm:$0xff]
    %v3396 = vld [vmem:[%s3391 + $0x20] sm:$0xff]
    %v3397 = vld [vmem:[%s3391 + $0x28] sm:$0xff]
    %v3398 = vld [vmem:[%s3391 + $0x30] sm:$0xff]
    %v3399 = vld [vmem:[%s3391 + $0x38] sm:$0xff]
    %s3400 = scalar_lea.vmem [#allocation35], 1
    %v3401 = vld [vmem:[%s3400] sm:$0x1]
    %v3403 = vlaneseq
    %v3404 = vshrl.u32 %v3403, 7
    %v3405 = vsub.s32 0, %v3404
    %v3406 = vrot.slane %v3401, %v3405
    %v3409 = vsel %vm1957, %v3389, 0
    %v3412 = vsel %vm1957, %v3390, 0
    %3414 = vmatprep.subr.mxu0 0.0
    %3415 = vmatpush1.msra.mxu0 %v3392
    %3416 = vmatprep.subr.mxu0 0.0
    %3417 = vmatpush1.msra.mxu0 %v3393
    %3418 = vmatprep.subr.mxu0 0.0
    %3419 = vmatpush1.msra.mxu0 %v3394
    %3420 = vmatprep.subr.mxu0 0.0
    %3421 = vmatpush1.msra.mxu0 %v3395
    %3422 = vmatprep.subr.mxu0 0.0
    %3423 = vmatpush1.msra.mxu0 %v3396
    %3424 = vmatprep.subr.mxu0 0.0
    %3425 = vmatpush1.msra.mxu0 %v3397
    %3426 = vmatprep.subr.mxu0 0.0
    %3427 = vmatpush1.msra.mxu0 %v3398
    %3428 = vmatprep.subr.mxu0 0.0
    %3429 = vmatpush1.msra.mxu0 %v3399
    %3430 = vmatprep.subr.mxu0 0.0
    %3431 = vmatpush1.msra.mxu0 0.0
    %3432 = vmatprep.subr.mxu0 0.0
    %3433 = vmatpush1.msra.mxu0 0.0
    %3434 = vmatprep.subr.mxu0 0.0
    %3435 = vmatpush1.msra.mxu0 0.0
    %3436 = vmatprep.subr.mxu0 0.0
    %3437 = vmatpush1.msra.mxu0 0.0
    %3438 = vmatprep.subr.mxu0 0.0
    %3439 = vmatpush1.msra.mxu0 0.0
    %3440 = vmatprep.subr.mxu0 0.0
    %3441 = vmatpush1.msra.mxu0 0.0
    %3442 = vmatprep.subr.mxu0 0.0
    %3443 = vmatpush1.msra.mxu0 0.0
    %3444 = vmatprep.subr.mxu0 0.0
    %3445 = vmatpush1.msra.mxu0 0.0
    %3446 = vmatprep.subr.mxu0 0.0
    %3447 = vmatpush1.msra.mxu0 0.0
    %3448 = vmatprep.subr.mxu0 0.0
    %3449 = vmatpush1.msra.mxu0 0.0
    %3450 = vmatprep.subr.mxu0 0.0
    %3451 = vmatpush1.msra.mxu0 0.0
    %3452 = vmatprep.subr.mxu0 0.0
    %3453 = vmatpush1.msra.mxu0 0.0
    %3454 = vmatprep.subr.mxu0 0.0
    %3455 = vmatpush1.msra.mxu0 0.0
    %3456 = vmatprep.subr.mxu0 0.0
    %3457 = vmatpush1.msra.mxu0 0.0
    %3458 = vmatprep.subr.mxu0 0.0
    %3459 = vmatpush1.msra.mxu0 0.0
    %3460 = vmatprep.subr.mxu0 0.0
    %3461 = vmatpush1.msra.mxu0 0.0
    %3462 = vmatprep.subr.mxu0 0.0
    %3463 = vmatpush1.msra.mxu0 0.0
    %3464 = vmatprep.subr.mxu0 0.0
    %3465 = vmatpush1.msra.mxu0 0.0
    %3466 = vmatprep.subr.mxu0 0.0
    %3467 = vmatpush1.msra.mxu0 0.0
    %3468 = vmatprep.subr.mxu0 0.0
    %3469 = vmatpush1.msra.mxu0 0.0
    %3470 = vmatprep.subr.mxu0 0.0
    %3471 = vmatpush1.msra.mxu0 0.0
    %3472 = vmatprep.subr.mxu0 0.0
    %3473 = vmatpush1.msra.mxu0 0.0
    %3474 = vmatprep.subr.mxu0 0.0
    %3475 = vmatpush1.msra.mxu0 0.0
    %3476 = vmatprep.subr.mxu0 0.0
    %3477 = vmatpush1.msra.mxu0 0.0
    %3478 = vmatprep.mubr.f32.mxu0 0.0
    %3479 = vmatmul.mubr.f32.gmra.mrb[0].mxu0 %v3409
    %v3480 = vpop.f32.mrb[0].mxu0
    %v3481 = vadd.f32 %v3406, %v3480
    %v3482 = vpop.f32.mrb[0].mxu0
    %3483 = vmatprep.mubr.f32.mxu0 0.0
    %3484 = vmatmul.mubr.f32.gmra.mrb[0].mxu0 %v3412
    %v3485 = vpop.f32.mrb[0].mxu0
    %v3486 = vadd.f32 %v3406, %v3485
    %v3487 = vpop.f32.mrb[0].mxu0
    %3488 = vdwg.mxu0
    %v3489 = vadd.f32 %v3277, %v3481
    %v3490 = vadd.f32 %v3278, %v3486
    %s3491 = scalar_lea.vmem [#allocation37], 1
    %v3492 = vld [vmem:[%s3491] sm:$0x1]
    %s3493 = scalar_lea.vmem [#allocation38], 1
    %v3494 = vld [vmem:[%s3493] sm:$0x1]
    %v3495 = vsel %vm581, %v3489, 0.0
    %3496 = vadd.xlane.f32.xlu0 %v3495
    %v3497 = vpop.xlane.xlu0 %3496
    %v3498 = vsel %vm581, %v3490, 0.0
    %3499 = vadd.xlane.f32.xlu0 %v3498
    %v3500 = vpop.xlane.xlu0 %3499
    %v3501 = vmul.f32 %v3497, %v588
    %v3502 = vmul.f32 %v3500, %v588
    %v3503 = vsub.f32 %v3489, %v3501
    %v3504 = vsub.f32 %v3490, %v3502
    %v3505 = vmul.f32 %v3503, %v3503
    %v3506 = vmul.f32 %v3504, %v3504
    %v3507 = vsel %vm581, %v3505, 0.0
    %3508 = vadd.xlane.f32.xlu0 %v3507
    %v3509 = vpop.xlane.xlu0 %3508
    %v3510 = vsel %vm581, %v3506, 0.0
    %3511 = vadd.xlane.f32.xlu0 %v3510
    %v3512 = vpop.xlane.xlu0 %3511
    %v3513 = vmul.f32 %v3509, %v588
    %v3514 = vmul.f32 %v3512, %v588
    %v3515 = vadd.f32 %v3513, 1e-12
    %v3516 = vadd.f32 %v3514, 1e-12
    %v3517 = vrsqrt.pop %v3515
    %v3518 = vrsqrt.pop %v3516
    %v3519 = vmul.f32 %v3503, %v3517
    %v3520 = vmul.f32 %v3504, %v3518
    %v3522 = vlaneseq
    %v3523 = vshrl.u32 %v3522, 7
    %v3524 = vsub.s32 0, %v3523
    %v3525 = vrot.slane %v3492, %v3524
    %v3527 = vmul.f32 %v3519, %v3525
    %v3528 = vmul.f32 %v3520, %v3525
    %v3530 = vlaneseq
    %v3531 = vshrl.u32 %v3530, 7
    %v3532 = vsub.s32 0, %v3531
    %v3533 = vrot.slane %v3494, %v3532
    %v3535 = vadd.f32 %v3527, %v3533
    %v3536 = vadd.f32 %v3528, %v3533
    %v3537 = vld [vmem:[#allocation40] sm:$0xff]
    %v3538 = vld [vmem:[#allocation40 + $0x8] sm:$0xff]
    %v3539 = vld [vmem:[#allocation40 + $0x10] sm:$0xff]
    %v3540 = vld [vmem:[#allocation40 + $0x18] sm:$0xff]
    %v3541 = vld [vmem:[#allocation41] sm:$0x1]
    %v3543 = vlaneseq
    %v3544 = vshrl.u32 %v3543, 7
    %v3545 = vsub.s32 0, %v3544
    %v3546 = vrot.slane %v3541, %v3545
    %v3549 = vsel %vm581, %v3535, 0
    %v3552 = vsel %vm581, %v3536, 0
    %3554 = vmatprep.subr.mxu0 0.0
    %3555 = vmatpush1.msra.mxu0 %v3537
    %3556 = vmatprep.subr.mxu0 0.0
    %3557 = vmatpush1.msra.mxu0 %v3538
    %3558 = vmatprep.subr.mxu0 0.0
    %3559 = vmatpush1.msra.mxu0 %v3539
    %3560 = vmatprep.subr.mxu0 0.0
    %3561 = vmatpush1.msra.mxu0 %v3540
    %3562 = vmatprep.subr.mxu0 0.0
    %3563 = vmatpush1.msra.mxu0 0.0
    %3564 = vmatprep.subr.mxu0 0.0
    %3565 = vmatpush1.msra.mxu0 0.0
    %3566 = vmatprep.subr.mxu0 0.0
    %3567 = vmatpush1.msra.mxu0 0.0
    %3568 = vmatprep.subr.mxu0 0.0
    %3569 = vmatpush1.msra.mxu0 0.0
    %3570 = vmatprep.subr.mxu0 0.0
    %3571 = vmatpush1.msra.mxu0 0.0
    %3572 = vmatprep.subr.mxu0 0.0
    %3573 = vmatpush1.msra.mxu0 0.0
    %3574 = vmatprep.subr.mxu0 0.0
    %3575 = vmatpush1.msra.mxu0 0.0
    %3576 = vmatprep.subr.mxu0 0.0
    %3577 = vmatpush1.msra.mxu0 0.0
    %3578 = vmatprep.subr.mxu0 0.0
    %3579 = vmatpush1.msra.mxu0 0.0
    %3580 = vmatprep.subr.mxu0 0.0
    %3581 = vmatpush1.msra.mxu0 0.0
    %3582 = vmatprep.subr.mxu0 0.0
    %3583 = vmatpush1.msra.mxu0 0.0
    %3584 = vmatprep.subr.mxu0 0.0
    %3585 = vmatpush1.msra.mxu0 0.0
    %3586 = vmatprep.subr.mxu0 0.0
    %3587 = vmatpush1.msra.mxu0 0.0
    %3588 = vmatprep.subr.mxu0 0.0
    %3589 = vmatpush1.msra.mxu0 0.0
    %3590 = vmatprep.subr.mxu0 0.0
    %3591 = vmatpush1.msra.mxu0 0.0
    %3592 = vmatprep.subr.mxu0 0.0
    %3593 = vmatpush1.msra.mxu0 0.0
    %3594 = vmatprep.subr.mxu0 0.0
    %3595 = vmatpush1.msra.mxu0 0.0
    %3596 = vmatprep.subr.mxu0 0.0
    %3597 = vmatpush1.msra.mxu0 0.0
    %3598 = vmatprep.subr.mxu0 0.0
    %3599 = vmatpush1.msra.mxu0 0.0
    %3600 = vmatprep.subr.mxu0 0.0
    %3601 = vmatpush1.msra.mxu0 0.0
    %3602 = vmatprep.subr.mxu0 0.0
    %3603 = vmatpush1.msra.mxu0 0.0
    %3604 = vmatprep.subr.mxu0 0.0
    %3605 = vmatpush1.msra.mxu0 0.0
    %3606 = vmatprep.subr.mxu0 0.0
    %3607 = vmatpush1.msra.mxu0 0.0
    %3608 = vmatprep.subr.mxu0 0.0
    %3609 = vmatpush1.msra.mxu0 0.0
    %3610 = vmatprep.subr.mxu0 0.0
    %3611 = vmatpush1.msra.mxu0 0.0
    %3612 = vmatprep.subr.mxu0 0.0
    %3613 = vmatpush1.msra.mxu0 0.0
    %3614 = vmatprep.subr.mxu0 0.0
    %3615 = vmatpush1.msra.mxu0 0.0
    %3616 = vmatprep.subr.mxu0 0.0
    %3617 = vmatpush1.msra.mxu0 0.0
    %3618 = vmatprep.mubr.f32.mxu0 0.0
    %3619 = vmatmul.mubr.f32.gmra.mrb[0].mxu0 %v3549
    %v3620 = vpop.f32.mrb[0].mxu0
    %v3621 = vadd.f32 %v3546, %v3620
    %v3622 = vpop.f32.mrb[0].mxu0
    %3623 = vmatprep.mubr.f32.mxu0 0.0
    %3624 = vmatmul.mubr.f32.gmra.mrb[0].mxu0 %v3552
    %v3625 = vpop.f32.mrb[0].mxu0
    %v3626 = vadd.f32 %v3546, %v3625
    %v3627 = vpop.f32.mrb[0].mxu0
    %3628 = vdwg.mxu0
    %3629 = vst [vmem:[#allocation43] sm:$0xff] %v3621
    %3630 = vst [vmem:[#allocation43 + $0x8] sm:$0xff] %v3626
    // Predicated region
    $region210: #{extractive_qa_forward.1} parent=1 // pred_check
      _
    $region211: #{extractive_qa_forward.1} parent=1 // pred_check_branch
      %3632 = sbr.rel (0) target = $region213
    $region212: #{extractive_qa_forward.1} parent=1 // pred_region
      %s3634 = ssub.s32 256, 256
      %3635 = vsyncadd [#allocation4], %s3634
      %s3636 = sshll.u32 [#allocation43], 4
      %s3637 = int_to_ptr.vmem [resolvable:$true] %s3636
      %3642 = dma.vmem_to_hbm [thread:$0]  %s3637, 256, %s26, [#allocation4], 128, 128, 8
    $region213: #{extractive_qa_forward.1} parent=1 // pred_fallthru
      _
    // Predicated region
    $region214: #{extractive_qa_forward.1} parent=1 // pred_check
      _
    $region215: #{extractive_qa_forward.1} parent=1 // pred_check_branch
      %3644 = sbr.rel (0) target = $region217
    $region216: #{extractive_qa_forward.1} parent=1 // pred_region
      %3645 = dma.done [#allocation4], 256
    $region217: #{extractive_qa_forward.1} parent=1 // pred_fallthru
      _
    %3646 = vsyncpa [#allocation3], 1
    %3647 = vsyncpa [#allocation6], 1
    %3648 = vsyncpa [#allocation9], 1
    %3649 = vsyncpa [#allocation12], 1
    %3650 = vsyncpa [#allocation15], 1
    %3651 = vsyncpa [#allocation18], 1
    %3652 = vsyncpa [#allocation21], 1
    %3653 = vsyncpa [#allocation24], 1
    %3654 = vsyncpa [#allocation27], 1
    %3655 = vsyncpa [#allocation30], 1
    %3656 = vsyncpa [#allocation33], 1
    %3657 = vsyncpa [#allocation36], 1
    %3658 = vsyncpa [#allocation39], 1
    %3659 = vsyncpa [#allocation42], 1
    %3660 = vsyncpa [#allocation4], 1

</llo_original>
